<compile_context>
chip_gen: v7x
topology: tpu7x:2x2x1
jax: 0.10.0
libtpu: 0.0.40
codegen_flags: <defaults>
</compile_context>

<pallas_src>
import itertools

import numpy as np
import jax
import jax.numpy as jnp
from jax.experimental import pallas as pl
from jax.experimental.pallas import tpu as pltpu

EPS = 1e-5          # PyTorch InstanceNorm3d default eps
NEG_SLOPE = 0.01    # PyTorch LeakyReLU default negative_slope


def interp_matrix(n_in, n_out):
    """1-D linear interpolation matrix, align_corners=True (torch trilinear)."""
    out_idx = np.arange(n_out, dtype=np.float64)
    if n_out > 1:
        src = out_idx * (n_in - 1) / (n_out - 1)
    else:
        src = np.zeros_like(out_idx)
    i0 = np.clip(np.floor(src).astype(np.int64), 0, n_in - 1)
    i1 = np.minimum(i0 + 1, n_in - 1)
    frac = src - i0
    m = np.zeros((n_out, n_in), np.float64)
    m[np.arange(n_out), i0] += 1.0 - frac
    m[np.arange(n_out), i1] += frac
    return m


# ------------------------------- forward ------------------------------------

@jax.jit
def upcatconv_forward(x_l, x_h, params):
    N, C1, D, H, W = x_l.shape
    _, C2, D2, H2, W2 = x_h.shape
    S, S2 = D * H * W, D2 * H2 * W2
    Cc = 2 * C2
    Cout = params["w3"].shape[-1]

    # Padded-flat geometry for the 3x3x3 conv (padding=1):
    #   padded volume (D2+2, H2+2, W2+2) flattened row-major; a tap (kd,kh,kw)
    #   of output voxel (d,h,w) sits at flat index d*A + h*B + w + off, with
    #   off = kd*A + kh*B + kw.  So every tap is a contiguous lane window.
    Dp, Hp, Wp = D2 + 2, H2 + 2, W2 + 2
    A, B = Hp * Wp, Wp
    Spad = Dp * A
    off_max = 2 * A + 2 * B + 2
    L = Spad - off_max                       # number of flat output positions
    OFFS = [kd * A + kh * B + kw
            for kd, kh, kw in itertools.product(range(3), repeat=3)]

    inv_S = 1.0 / S
    inv_S2 = 1.0 / S2

    parallel = pltpu.CompilerParams(dimension_semantics=("parallel",))

    # ---- kernel 1: InstanceNorm + LeakyReLU + 1x1x1 conv, (C, S) layout ----
    def up_branch_kernel(x_ref, g_ref, b_ref, w_ref, wb_ref, o_ref):
        x = x_ref[0]                                        # (C1, S), lane-dense
        s1 = jnp.sum(x, axis=1, keepdims=True)              # one-pass stats
        s2 = jnp.sum(x * x, axis=1, keepdims=True)
        mean = s1 * inv_S
        var = s2 * inv_S - mean * mean
        xn = (x - mean) * jax.lax.rsqrt(var + EPS) * g_ref[...] + b_ref[...]
        xa = jnp.where(xn >= 0, xn, NEG_SLOPE * xn)
        y = jnp.dot(w_ref[...].astype(jnp.bfloat16),
                    xa.astype(jnp.bfloat16),
                    preferred_element_type=jnp.float32)     # (C2, S)
        o_ref[0] = y + wb_ref[...]

    y = pl.pallas_call(
        up_branch_kernel,
        out_shape=jax.ShapeDtypeStruct((N, C2, S), jnp.float32),
        grid=(N,),
        in_specs=[
            pl.BlockSpec((1, C1, S), lambda n: (n, 0, 0)),
            pl.BlockSpec((C1, 1), lambda n: (0, 0)),
            pl.BlockSpec((C1, 1), lambda n: (0, 0)),
            pl.BlockSpec((C2, C1), lambda n: (0, 0)),
            pl.BlockSpec((C2, 1), lambda n: (0, 0)),
        ],
        out_specs=pl.BlockSpec((1, C2, S), lambda n: (n, 0, 0)),
        compiler_params=parallel,
    )(x_l.reshape(N, C1, S),
      params["g1"].reshape(C1, 1), params["b1"].reshape(C1, 1),
      params["w1"].T, params["wb1"].reshape(C2, 1))

    # ---- glue: separable trilinear x2 upsample (no Kronecker matrix) -------
    Md = jnp.asarray(interp_matrix(D, D2), jnp.float32)
    Mh = jnp.asarray(interp_matrix(H, H2), jnp.float32)
    Mw = jnp.asarray(interp_matrix(W, W2), jnp.float32)
    y5 = y.reshape(N, C2, D, H, W)
    up = jnp.einsum('Dd,ncdhw->ncDhw', Md, y5)
    up = jnp.einsum('Hh,ncdhw->ncdHw', Mh, up)
    up = jnp.einsum('Ww,ncdhw->ncdhW', Mw, up)               # (N, C2, D2, H2, W2)

    # ---- glue: zero-pad (conv padding=1) + flatten to (N, C2, Spad) --------
    pads = ((0, 0), (0, 0), (1, 1), (1, 1), (1, 1))
    xh_p = jnp.pad(x_h, pads).reshape(N, C2, Spad)
    up_p = jnp.pad(up, pads).reshape(N, C2, Spad)
    mask_np = np.zeros((Dp, Hp, Wp), np.float32)
    mask_np[1:-1, 1:-1, 1:-1] = 1.0
    mask = jnp.asarray(mask_np.reshape(1, Spad))             # 1 on valid voxels

    # (kd,kh,kw,cin) row-major flattening -> matches OFFS x channel ordering.
    w3r = params["w3"].reshape(27 * Cc, Cout).T              # (Cout, 27*Cc)

    # ---- kernel 2: fused IN + LeakyReLU (concat) + 3x3x3 conv --------------
    def cat_norm_conv_kernel(xh_ref, up_ref, m_ref, g_ref, b_ref,
                             w_ref, wb_ref, o_ref, zbuf):
        m = m_ref[...]                                       # (1, Spad)
        g = g_ref[...]                                       # (Cc, 1)
        b = b_ref[...]

        def norm_branch(z, gg, bb):
            # Sums over the padded buffer equal sums over the S2 real voxels
            # (pad is zero), so divide by S2, not Spad.
            s1 = jnp.sum(z, axis=1, keepdims=True)
            s2 = jnp.sum(z * z, axis=1, keepdims=True)
            mean = s1 * inv_S2
            var = s2 * inv_S2 - mean * mean
            zn = (z - mean) * jax.lax.rsqrt(var + EPS) * gg + bb
            zn = jnp.where(zn >= 0, zn, NEG_SLOPE * zn)
            return zn * m                                    # re-zero the halo

        zh = norm_branch(xh_ref[0], g[:C2], b[:C2])          # (C2, Spad)
        zu = norm_branch(up_ref[0], g[C2:], b[C2:])          # (C2, Spad)
        zbuf[...] = jnp.concatenate([zh, zu], axis=0)        # VMEM "concat"

        # 27 lane-offset windows of the flat padded volume -> one K=27*Cc matmul
        taps = jnp.concatenate([zbuf[:, off:off + L] for off in OFFS], axis=0)
        out = jnp.dot(w_ref[...].astype(jnp.bfloat16),
                      taps.astype(jnp.bfloat16),
                      preferred_element_type=jnp.float32)    # (Cout, L)
        o_ref[0] = out + wb_ref[...]

    out_raw = pl.pallas_call(
        cat_norm_conv_kernel,
        out_shape=jax.ShapeDtypeStruct((N, Cout, L), jnp.float32),
        grid=(N,),
        in_specs=[
            pl.BlockSpec((1, C2, Spad), lambda n: (n, 0, 0)),
            pl.BlockSpec((1, C2, Spad), lambda n: (n, 0, 0)),
            pl.BlockSpec((1, Spad), lambda n: (0, 0)),
            pl.BlockSpec((Cc, 1), lambda n: (0, 0)),
            pl.BlockSpec((Cc, 1), lambda n: (0, 0)),
            pl.BlockSpec((Cout, 27 * Cc), lambda n: (0, 0)),
            pl.BlockSpec((Cout, 1), lambda n: (0, 0)),
        ],
        out_specs=pl.BlockSpec((1, Cout, L), lambda n: (n, 0, 0)),
        scratch_shapes=[pltpu.VMEM((Cc, Spad), jnp.float32)],
        compiler_params=parallel,
    )(xh_p, up_p, mask,
      params["g2"].reshape(Cc, 1), params["b2"].reshape(Cc, 1),
      w3r, params["wb3"].reshape(Cout, 1))

    # ---- glue: un-flatten padded-grid output, crop to valid region ---------
    out_full = jnp.pad(out_raw, ((0, 0), (0, 0), (0, off_max)))
    out5 = out_full.reshape(N, Cout, Dp, Hp, Wp)[:, :, :D2, :H2, :W2]
    return out5                                              # NCDHW


# ------------------------- pure-JAX reference -------------------------------

def reference(x_l, x_h, params, Md, Mh, Mw):
    C1, C2 = x_l.shape[1], x_h.shape[1]
    g1 = params["g1"].reshape(1, C1, 1, 1, 1)
    b1 = params["b1"].reshape(1, C1, 1, 1, 1)
    mean = jnp.mean(x_l, axis=(2, 3, 4), keepdims=True)
    var = jnp.var(x_l, axis=(2, 3, 4), keepdims=True)
    xa = (x_l - mean) / jnp.sqrt(var + EPS) * g1 + b1
    xa = jnp.where(xa >= 0, xa, NEG_SLOPE * xa)
    y = jnp.einsum("ncdhw,co->nodhw", xa, params["w1"]) \
        + params["wb1"].reshape(1, C2, 1, 1, 1)
    up = jnp.einsum("Dd,Hh,Ww,ncdhw->ncDHW", Md, Mh, Mw, y)
    cat = jnp.concatenate([x_h, up], axis=1)
    Cc = cat.shape[1]
    g2 = params["g2"].reshape(1, Cc, 1, 1, 1)
    b2 = params["b2"].reshape(1, Cc, 1, 1, 1)
    mean2 = jnp.mean(cat, axis=(2, 3, 4), keepdims=True)
    var2 = jnp.var(cat, axis=(2, 3, 4), keepdims=True)
    ca = (cat - mean2) / jnp.sqrt(var2 + EPS) * g2 + b2
    ca = jnp.where(ca >= 0, ca, NEG_SLOPE * ca)
    ca_ndhwc = jnp.transpose(ca, (0, 2, 3, 4, 1))
    o = jax.lax.conv_general_dilated(
        ca_ndhwc, params["w3"], (1, 1, 1), "SAME",
        dimension_numbers=("NDHWC", "DHWIO", "NDHWC"))
    o = o + params["wb3"].reshape(1, 1, 1, 1, -1)
    return jnp.transpose(o, (0, 4, 1, 2, 3))


# --------------------------------- main --------------------------------------

if __name__ == "__main__":
    # Small shapes consistent with the module (dim=3, scale_factor=2):
    N, C1, C2, Cout = 2, 8, 4, 8
    D, H, W = 4, 8, 8
    D2, H2, W2 = 2 * D, 2 * H, 2 * W
    Cc = 2 * C2

    key = jax.random.PRNGKey(0)
    ks = jax.random.split(key, 10)
    params = {
        "g1": 1.0 + 0.1 * jax.random.normal(ks[0], (C1,), jnp.float32),
        "b1": 0.1 * jax.random.normal(ks[1], (C1,), jnp.float32),
        "w1": 0.2 * jax.random.normal(ks[2], (C1, C2), jnp.float32),   # 1x1x1 conv
        "wb1": 0.1 * jax.random.normal(ks[3], (C2,), jnp.float32),
        "g2": 1.0 + 0.1 * jax.random.normal(ks[4], (Cc,), jnp.float32),
        "b2": 0.1 * jax.random.normal(ks[5], (Cc,), jnp.float32),
        "w3": 0.1 * jax.random.normal(ks[6], (3, 3, 3, Cc, Cout), jnp.float32),
        "wb3": 0.1 * jax.random.normal(ks[7], (Cout,), jnp.float32),
    }

    x_l = jax.random.normal(ks[8], (N, C1, D, H, W), jnp.float32)
    x_h = jax.random.normal(ks[9], (N, C2, D2, H2, W2), jnp.float32)

    out = jax.block_until_ready(upcatconv_forward(x_l, x_h, params))
    assert out.shape == (N, Cout, D2, H2, W2), out.shape

    Md = jnp.asarray(interp_matrix(D, D2), jnp.float32)
    Mh = jnp.asarray(interp_matrix(H, H2), jnp.float32)
    Mw = jnp.asarray(interp_matrix(W, W2), jnp.float32)
    ref = jax.block_until_ready(reference(x_l, x_h, params, Md, Mh, Mw))
    max_err = float(jnp.max(jnp.abs(out - ref)))
    assert np.allclose(np.asarray(out), np.asarray(ref),
                       rtol=5e-2, atol=5e-2), max_err

    print("KERNEL_OK")
</pallas_src>

<mosaic_0001>
module attributes {stable_mosaic.version = 11 : i64} {
  func.func @up_branch_kernel(%arg0: i32, %arg1: memref<1x8x256xf32, #tpu.memory_space<vmem>>, %arg2: memref<8x1xf32, #tpu.memory_space<vmem>>, %arg3: memref<8x1xf32, #tpu.memory_space<vmem>>, %arg4: memref<4x8xf32, #tpu.memory_space<vmem>>, %arg5: memref<4x1xf32, #tpu.memory_space<vmem>>, %arg6: memref<1x4x256xf32, #tpu.memory_space<vmem>>) attributes {dimension_semantics = [#tpu.dimension_semantics<parallel>], iteration_bounds = array<i64: 2>, scalar_prefetch = 0 : i64, scratch_operands = 0 : i64, tpu.core_type = #tpu.core_type<tc>, window_params = [{transform_indices = @transform_0, window_bounds = array<i64: 1, 8, 256>}, {pipeline_mode = #tpu.pipeline_mode<synchronous>, transform_indices = @transform_1, window_bounds = array<i64: 8, 1>}, {pipeline_mode = #tpu.pipeline_mode<synchronous>, transform_indices = @transform_2, window_bounds = array<i64: 8, 1>}, {pipeline_mode = #tpu.pipeline_mode<synchronous>, transform_indices = @transform_3, window_bounds = array<i64: 4, 8>}, {pipeline_mode = #tpu.pipeline_mode<synchronous>, transform_indices = @transform_4, window_bounds = array<i64: 4, 1>}, {transform_indices = @transform_5, window_bounds = array<i64: 1, 4, 256>}]} {
    %c0 = arith.constant 0 : index
    %c0_0 = arith.constant 0 : index
    %c0_1 = arith.constant 0 : index
    %0 = vector.load %arg1[%c0, %c0_0, %c0_1] : memref<1x8x256xf32, #tpu.memory_space<vmem>>, vector<1x8x256xf32>
    %1 = vector.shape_cast %0 : vector<1x8x256xf32> to vector<8x256xf32>
    %cst = arith.constant dense<0.000000e+00> : vector<8xf32>
    %2 = vector.multi_reduction <add>, %1, %cst [1] : vector<8x256xf32> to vector<8xf32>
    %3 = vector.shape_cast %2 : vector<8xf32> to vector<8x1xf32>
    %4 = arith.mulf %1, %1 : vector<8x256xf32>
    %cst_2 = arith.constant dense<0.000000e+00> : vector<8xf32>
    %5 = vector.multi_reduction <add>, %4, %cst_2 [1] : vector<8x256xf32> to vector<8xf32>
    %6 = vector.shape_cast %5 : vector<8xf32> to vector<8x1xf32>
    %cst_3 = arith.constant 3.906250e-03 : f32
    %7 = vector.broadcast %cst_3 : f32 to vector<8x1xf32>
    %8 = arith.mulf %3, %7 : vector<8x1xf32>
    %cst_4 = arith.constant 3.906250e-03 : f32
    %9 = vector.broadcast %cst_4 : f32 to vector<8x1xf32>
    %10 = arith.mulf %6, %9 : vector<8x1xf32>
    %11 = arith.mulf %8, %8 : vector<8x1xf32>
    %12 = arith.subf %10, %11 : vector<8x1xf32>
    %13 = vector.broadcast %8 : vector<8x1xf32> to vector<8x256xf32>
    %14 = arith.subf %1, %13 : vector<8x256xf32>
    %cst_5 = arith.constant 9.99999974E-6 : f32
    %15 = vector.broadcast %cst_5 : f32 to vector<8x1xf32>
    %16 = arith.addf %12, %15 : vector<8x1xf32>
    %17 = math.rsqrt %16 : vector<8x1xf32>
    %18 = vector.broadcast %17 : vector<8x1xf32> to vector<8x256xf32>
    %19 = arith.mulf %14, %18 : vector<8x256xf32>
    %c0_6 = arith.constant 0 : index
    %c0_7 = arith.constant 0 : index
    %20 = vector.load %arg2[%c0_6, %c0_7] : memref<8x1xf32, #tpu.memory_space<vmem>>, vector<8x1xf32>
    %21 = vector.broadcast %20 : vector<8x1xf32> to vector<8x256xf32>
    %22 = arith.mulf %19, %21 : vector<8x256xf32>
    %c0_8 = arith.constant 0 : index
    %c0_9 = arith.constant 0 : index
    %23 = vector.load %arg3[%c0_8, %c0_9] : memref<8x1xf32, #tpu.memory_space<vmem>>, vector<8x1xf32>
    %24 = vector.broadcast %23 : vector<8x1xf32> to vector<8x256xf32>
    %25 = arith.addf %22, %24 : vector<8x256xf32>
    %cst_10 = arith.constant 0.000000e+00 : f32
    %26 = vector.broadcast %cst_10 : f32 to vector<8x256xf32>
    %27 = arith.cmpf oge, %25, %26 : vector<8x256xf32>
    %cst_11 = arith.constant 0.00999999977 : f32
    %28 = vector.broadcast %cst_11 : f32 to vector<8x256xf32>
    %29 = arith.mulf %28, %25 : vector<8x256xf32>
    %30 = arith.select %27, %25, %29 : vector<8x256xi1>, vector<8x256xf32>
    %c0_12 = arith.constant 0 : index
    %c0_13 = arith.constant 0 : index
    %31 = vector.load %arg4[%c0_12, %c0_13] : memref<4x8xf32, #tpu.memory_space<vmem>>, vector<4x8xf32>
    %32 = arith.truncf %31 : vector<4x8xf32> to vector<4x8xbf16>
    %33 = arith.truncf %30 : vector<8x256xf32> to vector<8x256xbf16>
    %cst_14 = arith.constant dense<0.000000e+00> : vector<4x256xf32>
    %34 = tpu.matmul %32, %33, %cst_14 {dimension_numbers = #tpu.dot_dimension_numbers<[1], [0], [0], [1], [0, 0, 1, 1], [], []>} : vector<4x8xbf16>, vector<8x256xbf16>, vector<4x256xf32> -> vector<4x256xf32>
    %c0_15 = arith.constant 0 : index
    %c0_16 = arith.constant 0 : index
    %35 = vector.load %arg5[%c0_15, %c0_16] : memref<4x1xf32, #tpu.memory_space<vmem>>, vector<4x1xf32>
    %36 = vector.broadcast %35 : vector<4x1xf32> to vector<4x256xf32>
    %37 = arith.addf %34, %36 : vector<4x256xf32>
    %c0_17 = arith.constant 0 : index
    %c0_18 = arith.constant 0 : index
    %c0_19 = arith.constant 0 : index
    %38 = vector.load %arg6[%c0_17, %c0_18, %c0_19] : memref<1x4x256xf32, #tpu.memory_space<vmem>>, vector<1x4x256xf32>
    %39 = vector.shape_cast %38 : vector<1x4x256xf32> to vector<4x256xf32>
    %40 = vector.shape_cast %37 : vector<4x256xf32> to vector<1x4x256xf32>
    tpu.vector_store %arg6[%c0_17, %c0_18, %c0_19], %40 {strides = array<i32>} : memref<1x4x256xf32, #tpu.memory_space<vmem>>, vector<1x4x256xf32>,
    return
  }
  func.func @transform_0(%arg0: i32) -> (i32, i32, i32) {
    %c0_i32 = arith.constant 0 : i32
    %c0_i32_0 = arith.constant 0 : i32
    %c0_i32_1 = arith.constant 0 : i32
    return %arg0, %c0_i32, %c0_i32_0 : i32, i32, i32
  }
  func.func @transform_1(%arg0: i32) -> (i32, i32) {
    %c0_i32 = arith.constant 0 : i32
    %c0_i32_0 = arith.constant 0 : i32
    %c0_i32_1 = arith.constant 0 : i32
    return %c0_i32, %c0_i32_0 : i32, i32
  }
  func.func @transform_2(%arg0: i32) -> (i32, i32) {
    %c0_i32 = arith.constant 0 : i32
    %c0_i32_0 = arith.constant 0 : i32
    %c0_i32_1 = arith.constant 0 : i32
    return %c0_i32, %c0_i32_0 : i32, i32
  }
  func.func @transform_3(%arg0: i32) -> (i32, i32) {
    %c0_i32 = arith.constant 0 : i32
    %c0_i32_0 = arith.constant 0 : i32
    %c0_i32_1 = arith.constant 0 : i32
    return %c0_i32, %c0_i32_0 : i32, i32
  }
  func.func @transform_4(%arg0: i32) -> (i32, i32) {
    %c0_i32 = arith.constant 0 : i32
    %c0_i32_0 = arith.constant 0 : i32
    %c0_i32_1 = arith.constant 0 : i32
    return %c0_i32, %c0_i32_0 : i32, i32
  }
  func.func @transform_5(%arg0: i32) -> (i32, i32, i32) {
    %c0_i32 = arith.constant 0 : i32
    %c0_i32_0 = arith.constant 0 : i32
    %c0_i32_1 = arith.constant 0 : i32
    return %arg0, %c0_i32, %c0_i32_0 : i32, i32, i32
  }
}

module attributes {stable_mosaic.version = 11 : i64} {
  func.func @cat_norm_conv_kernel(%arg0: i32, %arg1: memref<1x4x3240xf32, #tpu.memory_space<vmem>>, %arg2: memref<1x4x3240xf32, #tpu.memory_space<vmem>>, %arg3: memref<1x3240xf32, #tpu.memory_space<vmem>>, %arg4: memref<8x1xf32, #tpu.memory_space<vmem>>, %arg5: memref<8x1xf32, #tpu.memory_space<vmem>>, %arg6: memref<8x216xf32, #tpu.memory_space<vmem>>, %arg7: memref<8x1xf32, #tpu.memory_space<vmem>>, %arg8: memref<1x8x2554xf32, #tpu.memory_space<vmem>>, %arg9: memref<8x3240xf32, #tpu.memory_space<vmem>>) attributes {dimension_semantics = [#tpu.dimension_semantics<parallel>], iteration_bounds = array<i64: 2>, scalar_prefetch = 0 : i64, scratch_operands = 1 : i64, tpu.core_type = #tpu.core_type<tc>, window_params = [{transform_indices = @transform_0, window_bounds = array<i64: 1, 4, 3240>}, {transform_indices = @transform_1, window_bounds = array<i64: 1, 4, 3240>}, {pipeline_mode = #tpu.pipeline_mode<synchronous>, transform_indices = @transform_2, window_bounds = array<i64: 1, 3240>}, {pipeline_mode = #tpu.pipeline_mode<synchronous>, transform_indices = @transform_3, window_bounds = array<i64: 8, 1>}, {pipeline_mode = #tpu.pipeline_mode<synchronous>, transform_indices = @transform_4, window_bounds = array<i64: 8, 1>}, {pipeline_mode = #tpu.pipeline_mode<synchronous>, transform_indices = @transform_5, window_bounds = array<i64: 8, 216>}, {pipeline_mode = #tpu.pipeline_mode<synchronous>, transform_indices = @transform_6, window_bounds = array<i64: 8, 1>}, {transform_indices = @transform_7, window_bounds = array<i64: 1, 8, 2554>}]} {
    %c0 = arith.constant 0 : index
    %c0_0 = arith.constant 0 : index
    %0 = vector.load %arg3[%c0, %c0_0] : memref<1x3240xf32, #tpu.memory_space<vmem>>, vector<1x3240xf32>
    %c0_1 = arith.constant 0 : index
    %c0_2 = arith.constant 0 : index
    %1 = vector.load %arg4[%c0_1, %c0_2] : memref<8x1xf32, #tpu.memory_space<vmem>>, vector<8x1xf32>
    %c0_3 = arith.constant 0 : index
    %c0_4 = arith.constant 0 : index
    %2 = vector.load %arg5[%c0_3, %c0_4] : memref<8x1xf32, #tpu.memory_space<vmem>>, vector<8x1xf32>
    %c0_5 = arith.constant 0 : index
    %c0_6 = arith.constant 0 : index
    %c0_7 = arith.constant 0 : index
    %3 = vector.load %arg1[%c0_5, %c0_6, %c0_7] : memref<1x4x3240xf32, #tpu.memory_space<vmem>>, vector<1x4x3240xf32>
    %4 = vector.shape_cast %3 : vector<1x4x3240xf32> to vector<4x3240xf32>
    %5 = vector.extract_strided_slice %1 {offsets = [0, 0], sizes = [4, 1], strides = [1, 1]} : vector<8x1xf32> to vector<4x1xf32>
    %6 = vector.extract_strided_slice %2 {offsets = [0, 0], sizes = [4, 1], strides = [1, 1]} : vector<8x1xf32> to vector<4x1xf32>
    %cst = arith.constant dense<0.000000e+00> : vector<4xf32>
    %7 = vector.multi_reduction <add>, %4, %cst [1] : vector<4x3240xf32> to vector<4xf32>
    %8 = vector.shape_cast %7 : vector<4xf32> to vector<4x1xf32>
    %9 = arith.mulf %4, %4 : vector<4x3240xf32>
    %cst_8 = arith.constant dense<0.000000e+00> : vector<4xf32>
    %10 = vector.multi_reduction <add>, %9, %cst_8 [1] : vector<4x3240xf32> to vector<4xf32>
    %11 = vector.shape_cast %10 : vector<4xf32> to vector<4x1xf32>
    %cst_9 = arith.constant 4.8828125E-4 : f32
    %12 = vector.broadcast %cst_9 : f32 to vector<4x1xf32>
    %13 = arith.mulf %8, %12 : vector<4x1xf32>
    %cst_10 = arith.constant 4.8828125E-4 : f32
    %14 = vector.broadcast %cst_10 : f32 to vector<4x1xf32>
    %15 = arith.mulf %11, %14 : vector<4x1xf32>
    %16 = arith.mulf %13, %13 : vector<4x1xf32>
    %17 = arith.subf %15, %16 : vector<4x1xf32>
    %18 = vector.broadcast %13 : vector<4x1xf32> to vector<4x3240xf32>
    %19 = arith.subf %4, %18 : vector<4x3240xf32>
    %cst_11 = arith.constant 9.99999974E-6 : f32
    %20 = vector.broadcast %cst_11 : f32 to vector<4x1xf32>
    %21 = arith.addf %17, %20 : vector<4x1xf32>
    %22 = math.rsqrt %21 : vector<4x1xf32>
    %23 = vector.broadcast %22 : vector<4x1xf32> to vector<4x3240xf32>
    %24 = arith.mulf %19, %23 : vector<4x3240xf32>
    %25 = vector.broadcast %5 : vector<4x1xf32> to vector<4x3240xf32>
    %26 = arith.mulf %24, %25 : vector<4x3240xf32>
    %27 = vector.broadcast %6 : vector<4x1xf32> to vector<4x3240xf32>
    %28 = arith.addf %26, %27 : vector<4x3240xf32>
    %cst_12 = arith.constant 0.000000e+00 : f32
    %29 = vector.broadcast %cst_12 : f32 to vector<4x3240xf32>
    %30 = arith.cmpf oge, %28, %29 : vector<4x3240xf32>
    %cst_13 = arith.constant 0.00999999977 : f32
    %31 = vector.broadcast %cst_13 : f32 to vector<4x3240xf32>
    %32 = arith.mulf %31, %28 : vector<4x3240xf32>
    %33 = arith.select %30, %28, %32 : vector<4x3240xi1>, vector<4x3240xf32>
    %34 = vector.broadcast %0 : vector<1x3240xf32> to vector<4x3240xf32>
    %35 = arith.mulf %33, %34 : vector<4x3240xf32>
    %c0_14 = arith.constant 0 : index
    %c0_15 = arith.constant 0 : index
    %c0_16 = arith.constant 0 : index
    %36 = vector.load %arg2[%c0_14, %c0_15, %c0_16] : memref<1x4x3240xf32, #tpu.memory_space<vmem>>, vector<1x4x3240xf32>
    %37 = vector.shape_cast %36 : vector<1x4x3240xf32> to vector<4x3240xf32>
    %38 = vector.extract_strided_slice %1 {offsets = [4, 0], sizes = [4, 1], strides = [1, 1]} : vector<8x1xf32> to vector<4x1xf32>
    %39 = vector.extract_strided_slice %2 {offsets = [4, 0], sizes = [4, 1], strides = [1, 1]} : vector<8x1xf32> to vector<4x1xf32>
    %cst_17 = arith.constant dense<0.000000e+00> : vector<4xf32>
    %40 = vector.multi_reduction <add>, %37, %cst_17 [1] : vector<4x3240xf32> to vector<4xf32>
    %41 = vector.shape_cast %40 : vector<4xf32> to vector<4x1xf32>
    %42 = arith.mulf %37, %37 : vector<4x3240xf32>
    %cst_18 = arith.constant dense<0.000000e+00> : vector<4xf32>
    %43 = vector.multi_reduction <add>, %42, %cst_18 [1] : vector<4x3240xf32> to vector<4xf32>
    %44 = vector.shape_cast %43 : vector<4xf32> to vector<4x1xf32>
    %cst_19 = arith.constant 4.8828125E-4 : f32
    %45 = vector.broadcast %cst_19 : f32 to vector<4x1xf32>
    %46 = arith.mulf %41, %45 : vector<4x1xf32>
    %cst_20 = arith.constant 4.8828125E-4 : f32
    %47 = vector.broadcast %cst_20 : f32 to vector<4x1xf32>
    %48 = arith.mulf %44, %47 : vector<4x1xf32>
    %49 = arith.mulf %46, %46 : vector<4x1xf32>
    %50 = arith.subf %48, %49 : vector<4x1xf32>
    %51 = vector.broadcast %46 : vector<4x1xf32> to vector<4x3240xf32>
    %52 = arith.subf %37, %51 : vector<4x3240xf32>
    %cst_21 = arith.constant 9.99999974E-6 : f32
    %53 = vector.broadcast %cst_21 : f32 to vector<4x1xf32>
    %54 = arith.addf %50, %53 : vector<4x1xf32>
    %55 = math.rsqrt %54 : vector<4x1xf32>
    %56 = vector.broadcast %55 : vector<4x1xf32> to vector<4x3240xf32>
    %57 = arith.mulf %52, %56 : vector<4x3240xf32>
    %58 = vector.broadcast %38 : vector<4x1xf32> to vector<4x3240xf32>
    %59 = arith.mulf %57, %58 : vector<4x3240xf32>
    %60 = vector.broadcast %39 : vector<4x1xf32> to vector<4x3240xf32>
    %61 = arith.addf %59, %60 : vector<4x3240xf32>
    %cst_22 = arith.constant 0.000000e+00 : f32
    %62 = vector.broadcast %cst_22 : f32 to vector<4x3240xf32>
    %63 = arith.cmpf oge, %61, %62 : vector<4x3240xf32>
    %cst_23 = arith.constant 0.00999999977 : f32
    %64 = vector.broadcast %cst_23 : f32 to vector<4x3240xf32>
    %65 = arith.mulf %64, %61 : vector<4x3240xf32>
    %66 = arith.select %63, %61, %65 : vector<4x3240xi1>, vector<4x3240xf32>
    %67 = vector.broadcast %0 : vector<1x3240xf32> to vector<4x3240xf32>
    %68 = arith.mulf %66, %67 : vector<4x3240xf32>
    %69 = tpu.concatenate %35, %68 in 0 : vector<4x3240xf32>, vector<4x3240xf32> -> vector<8x3240xf32>
    %c0_24 = arith.constant 0 : index
    %c0_25 = arith.constant 0 : index
    %70 = vector.load %arg9[%c0_24, %c0_25] : memref<8x3240xf32, #tpu.memory_space<vmem>>, vector<8x3240xf32>
    tpu.vector_store %arg9[%c0_24, %c0_25], %69 {strides = array<i32>} : memref<8x3240xf32, #tpu.memory_space<vmem>>, vector<8x3240xf32>,
    %c0_26 = arith.constant 0 : index
    %c0_27 = arith.constant 0 : index
    %71 = vector.load %arg9[%c0_26, %c0_27] : memref<8x3240xf32, #tpu.memory_space<vmem>>, vector<8x2554xf32>
    %c0_28 = arith.constant 0 : index
    %c1 = arith.constant 1 : index
    %72 = vector.load %arg9[%c0_28, %c1] : memref<8x3240xf32, #tpu.memory_space<vmem>>, vector<8x2554xf32>
    %c0_29 = arith.constant 0 : index
    %c2 = arith.constant 2 : index
    %73 = vector.load %arg9[%c0_29, %c2] : memref<8x3240xf32, #tpu.memory_space<vmem>>, vector<8x2554xf32>
    %c0_30 = arith.constant 0 : index
    %c18 = arith.constant 18 : index
    %74 = vector.load %arg9[%c0_30, %c18] : memref<8x3240xf32, #tpu.memory_space<vmem>>, vector<8x2554xf32>
    %c0_31 = arith.constant 0 : index
    %c19 = arith.constant 19 : index
    %75 = vector.load %arg9[%c0_31, %c19] : memref<8x3240xf32, #tpu.memory_space<vmem>>, vector<8x2554xf32>
    %c0_32 = arith.constant 0 : index
    %c20 = arith.constant 20 : index
    %76 = vector.load %arg9[%c0_32, %c20] : memref<8x3240xf32, #tpu.memory_space<vmem>>, vector<8x2554xf32>
    %c0_33 = arith.constant 0 : index
    %c36 = arith.constant 36 : index
    %77 = vector.load %arg9[%c0_33, %c36] : memref<8x3240xf32, #tpu.memory_space<vmem>>, vector<8x2554xf32>
    %c0_34 = arith.constant 0 : index
    %c37 = arith.constant 37 : index
    %78 = vector.load %arg9[%c0_34, %c37] : memref<8x3240xf32, #tpu.memory_space<vmem>>, vector<8x2554xf32>
    %c0_35 = arith.constant 0 : index
    %c38 = arith.constant 38 : index
    %79 = vector.load %arg9[%c0_35, %c38] : memref<8x3240xf32, #tpu.memory_space<vmem>>, vector<8x2554xf32>
    %c0_36 = arith.constant 0 : index
    %c324 = arith.constant 324 : index
    %80 = vector.load %arg9[%c0_36, %c324] : memref<8x3240xf32, #tpu.memory_space<vmem>>, vector<8x2554xf32>
    %c0_37 = arith.constant 0 : index
    %c325 = arith.constant 325 : index
    %81 = vector.load %arg9[%c0_37, %c325] : memref<8x3240xf32, #tpu.memory_space<vmem>>, vector<8x2554xf32>
    %c0_38 = arith.constant 0 : index
    %c326 = arith.constant 326 : index
    %82 = vector.load %arg9[%c0_38, %c326] : memref<8x3240xf32, #tpu.memory_space<vmem>>, vector<8x2554xf32>
    %c0_39 = arith.constant 0 : index
    %c342 = arith.constant 342 : index
    %83 = vector.load %arg9[%c0_39, %c342] : memref<8x3240xf32, #tpu.memory_space<vmem>>, vector<8x2554xf32>
    %c0_40 = arith.constant 0 : index
    %c343 = arith.constant 343 : index
    %84 = vector.load %arg9[%c0_40, %c343] : memref<8x3240xf32, #tpu.memory_space<vmem>>, vector<8x2554xf32>
    %c0_41 = arith.constant 0 : index
    %c344 = arith.constant 344 : index
    %85 = vector.load %arg9[%c0_41, %c344] : memref<8x3240xf32, #tpu.memory_space<vmem>>, vector<8x2554xf32>
    %c0_42 = arith.constant 0 : index
    %c360 = arith.constant 360 : index
    %86 = vector.load %arg9[%c0_42, %c360] : memref<8x3240xf32, #tpu.memory_space<vmem>>, vector<8x2554xf32>
    %c0_43 = arith.constant 0 : index
    %c361 = arith.constant 361 : index
    %87 = vector.load %arg9[%c0_43, %c361] : memref<8x3240xf32, #tpu.memory_space<vmem>>, vector<8x2554xf32>
    %c0_44 = arith.constant 0 : index
    %c362 = arith.constant 362 : index
    %88 = vector.load %arg9[%c0_44, %c362] : memref<8x3240xf32, #tpu.memory_space<vmem>>, vector<8x2554xf32>
    %c0_45 = arith.constant 0 : index
    %c648 = arith.constant 648 : index
    %89 = vector.load %arg9[%c0_45, %c648] : memref<8x3240xf32, #tpu.memory_space<vmem>>, vector<8x2554xf32>
    %c0_46 = arith.constant 0 : index
    %c649 = arith.constant 649 : index
    %90 = vector.load %arg9[%c0_46, %c649] : memref<8x3240xf32, #tpu.memory_space<vmem>>, vector<8x2554xf32>
    %c0_47 = arith.constant 0 : index
    %c650 = arith.constant 650 : index
    %91 = vector.load %arg9[%c0_47, %c650] : memref<8x3240xf32, #tpu.memory_space<vmem>>, vector<8x2554xf32>
    %c0_48 = arith.constant 0 : index
    %c666 = arith.constant 666 : index
    %92 = vector.load %arg9[%c0_48, %c666] : memref<8x3240xf32, #tpu.memory_space<vmem>>, vector<8x2554xf32>
    %c0_49 = arith.constant 0 : index
    %c667 = arith.constant 667 : index
    %93 = vector.load %arg9[%c0_49, %c667] : memref<8x3240xf32, #tpu.memory_space<vmem>>, vector<8x2554xf32>
    %c0_50 = arith.constant 0 : index
    %c668 = arith.constant 668 : index
    %94 = vector.load %arg9[%c0_50, %c668] : memref<8x3240xf32, #tpu.memory_space<vmem>>, vector<8x2554xf32>
    %c0_51 = arith.constant 0 : index
    %c684 = arith.constant 684 : index
    %95 = vector.load %arg9[%c0_51, %c684] : memref<8x3240xf32, #tpu.memory_space<vmem>>, vector<8x2554xf32>
    %c0_52 = arith.constant 0 : index
    %c685 = arith.constant 685 : index
    %96 = vector.load %arg9[%c0_52, %c685] : memref<8x3240xf32, #tpu.memory_space<vmem>>, vector<8x2554xf32>
    %c0_53 = arith.constant 0 : index
    %c686 = arith.constant 686 : index
    %97 = vector.load %arg9[%c0_53, %c686] : memref<8x3240xf32, #tpu.memory_space<vmem>>, vector<8x2554xf32>
    %98 = tpu.concatenate %71, %72, %73, %74, %75, %76, %77, %78, %79, %80, %81, %82, %83, %84, %85, %86 in 0 : vector<8x2554xf32>, vector<8x2554xf32>, vector<8x2554xf32>, vector<8x2554xf32>, vector<8x2554xf32>, vector<8x2554xf32>, vector<8x2554xf32>, vector<8x2554xf32>, vector<8x2554xf32>, vector<8x2554xf32>, vector<8x2554xf32>, vector<8x2554xf32>, vector<8x2554xf32>, vector<8x2554xf32>, vector<8x2554xf32>, vector<8x2554xf32> -> vector<128x2554xf32>
    %99 = tpu.concatenate %87, %88, %89, %90, %91, %92, %93, %94, %95, %96, %97 in 0 : vector<8x2554xf32>, vector<8x2554xf32>, vector<8x2554xf32>, vector<8x2554xf32>, vector<8x2554xf32>, vector<8x2554xf32>, vector<8x2554xf32>, vector<8x2554xf32>, vector<8x2554xf32>, vector<8x2554xf32>, vector<8x2554xf32> -> vector<88x2554xf32>
    %100 = tpu.concatenate %98, %99 in 0 : vector<128x2554xf32>, vector<88x2554xf32> -> vector<216x2554xf32>
    %c0_54 = arith.constant 0 : index
    %c0_55 = arith.constant 0 : index
    %101 = vector.load %arg6[%c0_54, %c0_55] : memref<8x216xf32, #tpu.memory_space<vmem>>, vector<8x216xf32>
    %102 = arith.truncf %101 : vector<8x216xf32> to vector<8x216xbf16>
    %103 = arith.truncf %100 : vector<216x2554xf32> to vector<216x2554xbf16>
    %cst_56 = arith.constant dense<0.000000e+00> : vector<8x2554xf32>
    %104 = tpu.matmul %102, %103, %cst_56 {dimension_numbers = #tpu.dot_dimension_numbers<[1], [0], [0], [1], [0, 0, 1, 1], [], []>} : vector<8x216xbf16>, vector<216x2554xbf16>, vector<8x2554xf32> -> vector<8x2554xf32>
    %c0_57 = arith.constant 0 : index
    %c0_58 = arith.constant 0 : index
    %105 = vector.load %arg7[%c0_57, %c0_58] : memref<8x1xf32, #tpu.memory_space<vmem>>, vector<8x1xf32>
    %106 = vector.broadcast %105 : vector<8x1xf32> to vector<8x2554xf32>
    %107 = arith.addf %104, %106 : vector<8x2554xf32>
    %c0_59 = arith.constant 0 : index
    %c0_60 = arith.constant 0 : index
    %c0_61 = arith.constant 0 : index
    %108 = vector.load %arg8[%c0_59, %c0_60, %c0_61] : memref<1x8x2554xf32, #tpu.memory_space<vmem>>, vector<1x8x2554xf32>
    %109 = vector.shape_cast %108 : vector<1x8x2554xf32> to vector<8x2554xf32>
    %110 = vector.shape_cast %107 : vector<8x2554xf32> to vector<1x8x2554xf32>
    tpu.vector_store %arg8[%c0_59, %c0_60, %c0_61], %110 {strides = array<i32>} : memref<1x8x2554xf32, #tpu.memory_space<vmem>>, vector<1x8x2554xf32>,
    return
  }
  func.func @transform_0(%arg0: i32) -> (i32, i32, i32) {
    %c0_i32 = arith.constant 0 : i32
    %c0_i32_0 = arith.constant 0 : i32
    %c0_i32_1 = arith.constant 0 : i32
    return %arg0, %c0_i32, %c0_i32_0 : i32, i32, i32
  }
  func.func @transform_1(%arg0: i32) -> (i32, i32, i32) {
    %c0_i32 = arith.constant 0 : i32
    %c0_i32_0 = arith.constant 0 : i32
    %c0_i32_1 = arith.constant 0 : i32
    return %arg0, %c0_i32, %c0_i32_0 : i32, i32, i32
  }
  func.func @transform_2(%arg0: i32) -> (i32, i32) {
    %c0_i32 = arith.constant 0 : i32
    %c0_i32_0 = arith.constant 0 : i32
    %c0_i32_1 = arith.constant 0 : i32
    return %c0_i32, %c0_i32_0 : i32, i32
  }
  func.func @transform_3(%arg0: i32) -> (i32, i32) {
    %c0_i32 = arith.constant 0 : i32
    %c0_i32_0 = arith.constant 0 : i32
    %c0_i32_1 = arith.constant 0 : i32
    return %c0_i32, %c0_i32_0 : i32, i32
  }
  func.func @transform_4(%arg0: i32) -> (i32, i32) {
    %c0_i32 = arith.constant 0 : i32
    %c0_i32_0 = arith.constant 0 : i32
    %c0_i32_1 = arith.constant 0 : i32
    return %c0_i32, %c0_i32_0 : i32, i32
  }
  func.func @transform_5(%arg0: i32) -> (i32, i32) {
    %c0_i32 = arith.constant 0 : i32
    %c0_i32_0 = arith.constant 0 : i32
    %c0_i32_1 = arith.constant 0 : i32
    return %c0_i32, %c0_i32_0 : i32, i32
  }
  func.func @transform_6(%arg0: i32) -> (i32, i32) {
    %c0_i32 = arith.constant 0 : i32
    %c0_i32_0 = arith.constant 0 : i32
    %c0_i32_1 = arith.constant 0 : i32
    return %c0_i32, %c0_i32_0 : i32, i32
  }
  func.func @transform_7(%arg0: i32) -> (i32, i32, i32) {
    %c0_i32 = arith.constant 0 : i32
    %c0_i32_0 = arith.constant 0 : i32
    %c0_i32_1 = arith.constant 0 : i32
    return %arg0, %c0_i32, %c0_i32_0 : i32, i32, i32
  }
}

</mosaic_0001>

<llo_original>
// kernel: upcatconv_forward.2
$region0: #{upcatconv_forward.2}
  #allocation0 [shape = 'u32[]', space=smem, size = 0x4, offset = 0x4, fixed_abs, tag = 'smem constant byte address 0x4 - core index']
  #allocation1 [shape = 'u32[144,128]{1,0:T(1,128)}', space=vmem, size = 0x12000, scoped, tag = 'internal scratch']
  %s0 = inlined_call_operand.vmem [shape: f32[2,8,256], index: 0, kind: input, shape index: {}]
  %s1 = inlined_call_operand.vmem [shape: f32[8,1], index: 1, kind: input, shape index: {}]
  %s2 = inlined_call_operand.vmem [shape: f32[8,1], index: 2, kind: input, shape index: {}]
  %s3 = inlined_call_operand.hbm [shape: f32[4,8], index: 3, kind: input, shape index: {}]
  %s4 = inlined_call_operand.vmem [shape: f32[4,1], index: 4, kind: input, shape index: {}]
  %s5 = inlined_call_operand.vmem [shape: f32[2,4,256], index: 5, kind: output, shape index: {}]
  %s6 = sld [smem:[#allocation0]]
  $region57: #{upcatconv_forward.2} parent=0
    _
  %s8 = ssub.s32 1, %s6
  %s9 = scalar_select 0, %s8, %s6
  $region1: #{upcatconv_forward.2} parent=0
    #allocation2 [shape = 'u8[2048]{0}', space=vmem, size = 0x800, scoped, tag = 'input window, operand 3, single buffered']
    #allocation3 [shape = 's32[2]{0}', space=sflag, size = 0x8, scoped, tag = 'scoped memory for upcatconv_forward.2']
    %10 = vsyncpa [#allocation3], 0
    loop: start=0, step=1, limit=4
    $region2: #{upcatconv_forward.2} parent=1 // loop_pre_header
      _
    $region3: #{upcatconv_forward.2} parent=1 // loop_header
      %s12 = sphi 0, %s16
      %p13 = scmp.ge.s32.totalorder %s12, 4
      %s22 = sphi 0, %s24
      %s25 = sphi 0, %s22
      %s26 = sphi 0, %s25
      %s42 = sphi 0, %s26
      %s46 = sphi 0, %s46
      %s48 = sphi 0, %s46
      %s49 = sphi 0, %s48
      %s63 = sphi 0, %s49
      %s67 = sphi 0, %s67
      %s69 = sphi 0, %s67
      %s70 = sphi 0, %s69
      %s84 = sphi 0, %s70
      %s88 = sphi 0, %s88
      %s90 = sphi 0, %s88
      %s91 = sphi 0, %s90
      %s105 = sphi 0, %s91
      %s109 = sphi 0, %s109
      %s111 = sphi 0, %s109
      %s112 = sphi 0, %s111
      %s126 = sphi 0, %s112
      %s132 = sphi 0, %s134
      %s135 = sphi 0, %s132
      %s136 = sphi 0, %s135
      %s152 = sphi 0, %s136
    $region4: #{upcatconv_forward.2} parent=1 // loop_header_branch
      %15 = sbr.rel (%p13) target = $region8
    $region5: #{upcatconv_forward.2} parent=1 // loop_body
      %s17 = ssub.s32 %s12, 1
      %s18 = ssub.s32 %s12, 2
      %s19 = sadd.s32 %s12, 1
      %s20 = ssub.s32 %s12, %s19
      %p21 = scmp.eq.s32.totalorder %s20, 0
      %s23 = sadd.s32 %s22, 1
      %s24 = scalar_select %p21, %s22, %s23
      %p27 = pneg %p21
      %p28 = scmp.eq.s32.totalorder %s12, 1
      %p29 = por %p27, %p28
      %p30 = scmp.ne.s32.totalorder %s22, %s25
      %p31 = scmp.eq.s32.totalorder %s12, 0
      %p32 = por %p30, %p31
      %p33 = scmp.ne.s32.totalorder %s22, %s25
      %p34 = scmp.eq.s32.totalorder %s17, 1
      %p35 = por %p33, %p34
      %p36 = scmp.ne.s32.totalorder %s25, %s26
      %p37 = scmp.eq.s32.totalorder %s17, 0
      %p38 = por %p36, %p37
      %p39 = scmp.ne.s32.totalorder %s25, %s26
      %p40 = scmp.eq.s32.totalorder %s18, 1
      %p41 = por %p39, %p40
      %p43 = scmp.ne.s32.totalorder %s26, %s42
      %p44 = scmp.eq.s32.totalorder %s18, 0
      %p45 = por %p43, %p44
      %s47 = sadd.s32 %s46, 1
      %p50 = scmp.eq.s32.totalorder %s12, 1
      %p51 = scmp.ne.s32.totalorder %s46, %s48
      %p52 = scmp.eq.s32.totalorder %s12, 0
      %p53 = por %p51, %p52
      %p54 = scmp.ne.s32.totalorder %s46, %s48
      %p55 = scmp.eq.s32.totalorder %s17, 1
      %p56 = por %p54, %p55
      %p57 = scmp.ne.s32.totalorder %s48, %s49
      %p58 = scmp.eq.s32.totalorder %s17, 0
      %p59 = por %p57, %p58
      %p60 = scmp.ne.s32.totalorder %s48, %s49
      %p61 = scmp.eq.s32.totalorder %s18, 1
      %p62 = por %p60, %p61
      %p64 = scmp.ne.s32.totalorder %s49, %s63
      %p65 = scmp.eq.s32.totalorder %s18, 0
      %p66 = por %p64, %p65
      %s68 = sadd.s32 %s67, 1
      %p71 = scmp.eq.s32.totalorder %s12, 1
      %p72 = scmp.ne.s32.totalorder %s67, %s69
      %p73 = scmp.eq.s32.totalorder %s12, 0
      %p74 = por %p72, %p73
      %p75 = scmp.ne.s32.totalorder %s67, %s69
      %p76 = scmp.eq.s32.totalorder %s17, 1
      %p77 = por %p75, %p76
      %p78 = scmp.ne.s32.totalorder %s69, %s70
      %p79 = scmp.eq.s32.totalorder %s17, 0
      %p80 = por %p78, %p79
      %p81 = scmp.ne.s32.totalorder %s69, %s70
      %p82 = scmp.eq.s32.totalorder %s18, 1
      %p83 = por %p81, %p82
      %p85 = scmp.ne.s32.totalorder %s70, %s84
      %p86 = scmp.eq.s32.totalorder %s18, 0
      %p87 = por %p85, %p86
      %s89 = sadd.s32 %s88, 1
      %p92 = scmp.eq.s32.totalorder %s12, 1
      %p93 = scmp.ne.s32.totalorder %s88, %s90
      %p94 = scmp.eq.s32.totalorder %s12, 0
      %p95 = por %p93, %p94
      %p96 = scmp.ne.s32.totalorder %s88, %s90
      %p97 = scmp.eq.s32.totalorder %s17, 1
      %p98 = por %p96, %p97
      %p99 = scmp.ne.s32.totalorder %s90, %s91
      %p100 = scmp.eq.s32.totalorder %s17, 0
      %p101 = por %p99, %p100
      %p102 = scmp.ne.s32.totalorder %s90, %s91
      %p103 = scmp.eq.s32.totalorder %s18, 1
      %p104 = por %p102, %p103
      %p106 = scmp.ne.s32.totalorder %s91, %s105
      %p107 = scmp.eq.s32.totalorder %s18, 0
      %p108 = por %p106, %p107
      %s110 = sadd.s32 %s109, 1
      %p113 = scmp.eq.s32.totalorder %s12, 1
      %p114 = scmp.ne.s32.totalorder %s109, %s111
      %p115 = scmp.eq.s32.totalorder %s12, 0
      %p116 = por %p114, %p115
      %p117 = scmp.ne.s32.totalorder %s109, %s111
      %p118 = scmp.eq.s32.totalorder %s17, 1
      %p119 = por %p117, %p118
      %p120 = scmp.ne.s32.totalorder %s111, %s112
      %p121 = scmp.eq.s32.totalorder %s17, 0
      %p122 = por %p120, %p121
      %p123 = scmp.ne.s32.totalorder %s111, %s112
      %p124 = scmp.eq.s32.totalorder %s18, 1
      %p125 = por %p123, %p124
      %p127 = scmp.ne.s32.totalorder %s112, %s126
      %p128 = scmp.eq.s32.totalorder %s18, 0
      %p129 = por %p127, %p128
      %s130 = ssub.s32 %s12, %s19
      %p131 = scmp.eq.s32.totalorder %s130, 0
      %s133 = sadd.s32 %s132, 1
      %s134 = scalar_select %p131, %s132, %s133
      %p137 = pneg %p131
      %p138 = scmp.eq.s32.totalorder %s12, 1
      %p139 = por %p137, %p138
      %p140 = scmp.ne.s32.totalorder %s132, %s135
      %p141 = scmp.eq.s32.totalorder %s12, 0
      %p142 = por %p140, %p141
      %p143 = scmp.ne.s32.totalorder %s132, %s135
      %p144 = scmp.eq.s32.totalorder %s17, 1
      %p145 = por %p143, %p144
      %p146 = scmp.ne.s32.totalorder %s135, %s136
      %p147 = scmp.eq.s32.totalorder %s17, 0
      %p148 = por %p146, %p147
      %p149 = scmp.ne.s32.totalorder %s135, %s136
      %p150 = scmp.eq.s32.totalorder %s18, 1
      %p151 = por %p149, %p150
      %p153 = scmp.ne.s32.totalorder %s136, %s152
      %p154 = scmp.eq.s32.totalorder %s18, 0
      %p155 = por %p153, %p154
      %p156 = scmp.le.s32.totalorder 1, %s12
      %p157 = scmp.lt.s32.totalorder %s12, 3
      %p158 = pnand %p156, %p157
      %p159 = pneg %p158
      // Predicated region
      $region9: #{upcatconv_forward.2} parent=5 // pred_check
        _
      $region10: #{upcatconv_forward.2} parent=5 // pred_check_branch
        %161 = sbr.rel (%p158) target = $region12
      $region11: #{upcatconv_forward.2} parent=5 // pred_region
        %s162 = ssub.s32 %s12, 1
        // Predicated region
        $region13: #{upcatconv_forward.2} parent=11 // pred_check
          %p163 = pneg %p59
        $region14: #{upcatconv_forward.2} parent=11 // pred_check_branch
          %165 = sbr.rel (%p163) target = $region16
        $region15: #{upcatconv_forward.2} parent=11 // pred_region
          _
        $region16: #{upcatconv_forward.2} parent=11 // pred_fallthru
          _
        // Predicated region
        $region17: #{upcatconv_forward.2} parent=11 // pred_check
          %p166 = pneg %p80
        $region18: #{upcatconv_forward.2} parent=11 // pred_check_branch
          %168 = sbr.rel (%p166) target = $region20
        $region19: #{upcatconv_forward.2} parent=11 // pred_region
          _
        $region20: #{upcatconv_forward.2} parent=11 // pred_fallthru
          _
        // Predicated region
        $region21: #{upcatconv_forward.2} parent=11 // pred_check
          %p169 = pneg %p101
        $region22: #{upcatconv_forward.2} parent=11 // pred_check_branch
          %171 = sbr.rel (%p169) target = $region24
        $region23: #{upcatconv_forward.2} parent=11 // pred_region
          %s173 = ssub.s32 64, 64
          %174 = vsyncadd [#allocation3], %s173
          %s176 = sshll.u32 [#allocation2], 4
          %s177 = int_to_ptr.vmem [resolvable:$true] %s176
          %179 = dma.hbm_to_vmem [thread:$0]  %s3, 64, %s177, [#allocation3]
        $region24: #{upcatconv_forward.2} parent=11 // pred_fallthru
          _
        // Predicated region
        $region25: #{upcatconv_forward.2} parent=11 // pred_check
          %p180 = pneg %p122
        $region26: #{upcatconv_forward.2} parent=11 // pred_check_branch
          %182 = sbr.rel (%p180) target = $region28
        $region27: #{upcatconv_forward.2} parent=11 // pred_region
          _
        $region28: #{upcatconv_forward.2} parent=11 // pred_fallthru
          _
      $region12: #{upcatconv_forward.2} parent=5 // pred_fallthru
        _
      %p183 = scmp.lt.s32.totalorder %s12, 2
      // Predicated region
      $region29: #{upcatconv_forward.2} parent=5 // pred_check
        %p184 = pneg %p183
      $region30: #{upcatconv_forward.2} parent=5 // pred_check_branch
        %186 = sbr.rel (%p184) target = $region32
      $region31: #{upcatconv_forward.2} parent=5 // pred_region
        // Predicated region
        $region33: #{upcatconv_forward.2} parent=31 // pred_check
          %p187 = pneg %p32
        $region34: #{upcatconv_forward.2} parent=31 // pred_check_branch
          %189 = sbr.rel (%p187) target = $region36
        $region35: #{upcatconv_forward.2} parent=31 // pred_region
          %p190 = scmp.lt.s32.totalorder %s12, 1
          %s191 = scalar_select %p190, %s12, 1
          %s192 = smul.addr %s191, 2
          %s193 = smul.addr %s192, 8
          %s194 = scalar_lea.vmem %s0, %s193
        $region36: #{upcatconv_forward.2} parent=31 // pred_fallthru
          _
      $region32: #{upcatconv_forward.2} parent=5 // pred_fallthru
        _
      %p195 = scmp.le.s32.totalorder 1, %s12
      %p196 = scmp.lt.s32.totalorder %s12, 3
      %p197 = pnand %p195, %p196
      %p198 = pneg %p197
      // Predicated region
      $region37: #{upcatconv_forward.2} parent=5 // pred_check
        _
      $region38: #{upcatconv_forward.2} parent=5 // pred_check_branch
        %200 = sbr.rel (%p197) target = $region40
      $region39: #{upcatconv_forward.2} parent=5 // pred_region
        %s201 = ssub.s32 %s12, 1
        // Predicated region
        $region41: #{upcatconv_forward.2} parent=39 // pred_check
          %p202 = pneg %p101
        $region42: #{upcatconv_forward.2} parent=39 // pred_check_branch
          %204 = sbr.rel (%p202) target = $region44
        $region43: #{upcatconv_forward.2} parent=39 // pred_region
          %205 = dma.done [#allocation3], 64
        $region44: #{upcatconv_forward.2} parent=39 // pred_fallthru
          _
        %p206 = scmp.lt.s32.totalorder %s17, 1
        %s207 = scalar_select %p206, %s17, 1
        %s208 = smul.addr %s207, 2
        %s209 = smul.addr %s208, 8
        %s210 = scalar_lea.vmem %s0, %s209
        %p211 = pneg %p38
        %p212 = pneg %p35
        %p213 = pneg %p59
        %p214 = pneg %p56
        %p215 = pneg %p80
        %p216 = pneg %p77
        %p217 = pneg %p101
        %p218 = pneg %p98
        %p219 = pneg %p122
        %p220 = pneg %p119
        %p221 = pneg %p148
        %p222 = pneg %p145
        %p223 = scmp.lt.s32.totalorder %s17, 1
        %s224 = scalar_select %p223, %s17, 1
        %s225 = smul.addr %s224, 2
        %s226 = smul.addr %s225, 4
        %s227 = scalar_lea.vmem %s5, %s226
        %p228 = scmp.lt.s32.totalorder %s17, 1
        %s229 = scalar_select %p228, %s17, 1
        %s230 = smul.addr %s229, 2
        %s231 = smul.addr %s230, 8
        %s232 = scalar_lea.vmem %s0, %s231
        %p233 = scmp.lt.s32.totalorder %s17, 1
        %s234 = scalar_select %p233, %s17, 1
        %s235 = smul.addr %s234, 2
        %s236 = smul.addr %s235, 4
        %s237 = scalar_lea.vmem %s5, %s236
        %v239 = vld [vmem:[%s232] sm:$0xff]
        %v240 = vld [vmem:[%s232 + $0x8] sm:$0xff]
        %v241 = vadd.f32 %v239, %v240
        %242 = vadd.xlane.f32.xlu0 %v241
        %v243 = vpop.xlane.xlu0 %242
        %v244 = vmul.f32 %v239, %v239
        %v245 = vmul.f32 %v240, %v240
        %v246 = vadd.f32 %v244, %v245
        %247 = vadd.xlane.f32.xlu0 %v246
        %v248 = vpop.xlane.xlu0 %247
        %v249 = vmul.f32 %v243, 0.00390625
        %v250 = vmul.f32 %v248, 0.00390625
        %v251 = vmul.f32 %v249, %v249
        %v252 = vsub.f32 %v250, %v251
        %v253 = vsub.f32 %v239, %v249
        %v254 = vsub.f32 %v240, %v249
        %v255 = vadd.f32 %v252, 1e-05
        %v256 = vrsqrt.pop %v255
        %v257 = vmul.f32 %v253, %v256
        %v258 = vmul.f32 %v254, %v256
        %v259 = vld [vmem:[%s1] sm:$0xff]
        %261 = vset.pattern.permute.xlu0 0
        %262 = vperm.xlu0 %261, %v259
        %v263 = vpop.permute.xlu0 %262
        %v265 = vmul.f32 %v257, %v263
        %v266 = vmul.f32 %v258, %v263
        %v267 = vld [vmem:[%s2] sm:$0xff]
        %269 = vset.pattern.permute.xlu0 0
        %270 = vperm.xlu0 %269, %v267
        %v271 = vpop.permute.xlu0 %270
        %v273 = vadd.f32 %v265, %v271
        %v274 = vadd.f32 %v266, %v271
        %vm275 = vcmp.ge.f32.partialorder %v273, 0.0
        %vm276 = vcmp.ge.f32.partialorder %v274, 0.0
        %v277 = vmul.f32 %v273, 0.01
        %v278 = vmul.f32 %v274, 0.01
        %v279 = vsel %vm275, %v273, %v277
        %v280 = vsel %vm276, %v274, %v278
        %v281 = vld [vmem:[#allocation2] sm:$0xf]
        %v282 = vpack.c.bf16 %v281, %v281
        %v283 = vpack.c.bf16 %v279, %v279
        %v284 = vpack.c.bf16 %v280, %v280
        %v285 = vld [vmem:[%s4] sm:$0xf]
        %287 = vset.pattern.permute.xlu0 0
        %288 = vperm.xlu0 %287, %v285
        %v289 = vpop.permute.xlu0 %288
        %vm291 = vcmask 64512
        %v293 = vsel %vm291, %v282, 0
        %vm295 = vcmask 1043456
        %v297 = vsel %vm295, %v283, 0
        %v300 = vsel %vm295, %v284, 0
        %302 = vmatprep.subr.bf16.mxu0 %v300
        %303 = vmatpush1.bf16.msra.mxu0 %v297
        %304 = vmatprep.subr.bf16.mxu0 0
        %305 = vmatpush1.bf16.msra.mxu0 0
        %306 = vmatprep.subr.bf16.mxu0 0
        %307 = vmatpush1.bf16.msra.mxu0 0
        %308 = vmatprep.subr.bf16.mxu0 0
        %309 = vmatpush1.bf16.msra.mxu0 0
        %310 = vmatprep.subr.bf16.mxu0 0
        %311 = vmatpush1.bf16.msra.mxu0 0
        %312 = vmatprep.subr.bf16.mxu0 0
        %313 = vmatpush1.bf16.msra.mxu0 0
        %314 = vmatprep.subr.bf16.mxu0 0
        %315 = vmatpush1.bf16.msra.mxu0 0
        %316 = vmatprep.subr.bf16.mxu0 0
        %317 = vmatpush1.bf16.msra.mxu0 0
        %318 = vmatprep.subr.bf16.mxu0 0
        %319 = vmatpush1.bf16.msra.mxu0 0
        %320 = vmatprep.subr.bf16.mxu0 0
        %321 = vmatpush1.bf16.msra.mxu0 0
        %322 = vmatprep.subr.bf16.mxu0 0
        %323 = vmatpush1.bf16.msra.mxu0 0
        %324 = vmatprep.subr.bf16.mxu0 0
        %325 = vmatpush1.bf16.msra.mxu0 0
        %326 = vmatprep.subr.bf16.mxu0 0
        %327 = vmatpush1.bf16.msra.mxu0 0
        %328 = vmatprep.subr.bf16.mxu0 0
        %329 = vmatpush1.bf16.msra.mxu0 0
        %330 = vmatprep.subr.bf16.mxu0 0
        %331 = vmatpush1.bf16.msra.mxu0 0
        %332 = vmatprep.subr.bf16.mxu0 0
        %333 = vmatpush1.bf16.msra.mxu0 0
        %334 = vmatprep.mubr.bf16.mxu0 0
        %335 = vmatmul.mubr.bf16.gmra.mrb[0].mxu0 %v293
        %v336 = vpop.f32.mrb[0].mxu0
        %v337 = vadd.f32 %v289, %v336
        %v338 = vpop.f32.mrb[0].mxu0
        %v339 = vadd.f32 %v289, %v338
        %v340 = vpop.f32.mrb[0].mxu0
        %v341 = vpop.f32.mrb[0].mxu0
        %342 = vdwg.mxu0
        %v345 = vcombine.low %v337, %v339
        %347 = vst [vmem:[%s237] sm:$0xff] %v345
        %p348 = scmp.lt.s32.totalorder %s17, 1
        %s349 = scalar_select %p348, %s17, 1
        %s350 = smul.addr %s349, 2
        %s351 = smul.addr %s350, 4
        %s352 = scalar_lea.vmem %s5, %s351
        // Predicated region
        $region45: #{upcatconv_forward.2} parent=39 // pred_check
          %p353 = pneg %p145
        $region46: #{upcatconv_forward.2} parent=39 // pred_check_branch
          %355 = sbr.rel (%p353) target = $region48
        $region47: #{upcatconv_forward.2} parent=39 // pred_region
          _
        $region48: #{upcatconv_forward.2} parent=39 // pred_fallthru
          _
      $region40: #{upcatconv_forward.2} parent=5 // pred_fallthru
        _
      %p356 = scmp.le.s32.totalorder 2, %s12
      // Predicated region
      $region49: #{upcatconv_forward.2} parent=5 // pred_check
        %p357 = pneg %p356
      $region50: #{upcatconv_forward.2} parent=5 // pred_check_branch
        %359 = sbr.rel (%p357) target = $region52
      $region51: #{upcatconv_forward.2} parent=5 // pred_region
        %s360 = ssub.s32 %s12, 2
        // Predicated region
        $region53: #{upcatconv_forward.2} parent=51 // pred_check
          %p361 = pneg %p151
        $region54: #{upcatconv_forward.2} parent=51 // pred_check_branch
          %363 = sbr.rel (%p361) target = $region56
        $region55: #{upcatconv_forward.2} parent=51 // pred_region
          %p364 = scmp.lt.s32.totalorder %s18, 1
          %s365 = scalar_select %p364, %s18, 1
          %s366 = smul.addr %s365, 2
          %s367 = smul.addr %s366, 4
          %s368 = scalar_lea.vmem %s5, %s367
        $region56: #{upcatconv_forward.2} parent=51 // pred_fallthru
          _
      $region52: #{upcatconv_forward.2} parent=5 // pred_fallthru
        _
    $region6: #{upcatconv_forward.2} parent=1 // loop_footer
      %s16 = sadd.s32 1, %s12
    $region7: #{upcatconv_forward.2} parent=1 // loop_footer_branch
      %11 = sbr.rel target = $region3
    $region8: #{upcatconv_forward.2} parent=1 // loop_exit
      _
    %369 = vsyncpa [#allocation3], 1
    %s370 = scalar_lea.sflag [#allocation3], 1
    %371 = vsyncpa %s370, 1

// kernel: upcatconv_forward.3
$region0: #{upcatconv_forward.3}
  #allocation0 [shape = 'u32[]', space=smem, size = 0x4, offset = 0x4, fixed_abs, tag = 'smem constant byte address 0x4 - core index']
  #allocation1 [shape = 'u32[144,128]{1,0:T(1,128)}', space=vmem, size = 0x12000, scoped, tag = 'internal scratch']
  #allocation2 [shape = 'f32[8,3240]{1,0:T(8,128)}', space=vmem, size = 0x1a000, scoped, tag = 'scratch operand']
  %s0 = inlined_call_operand.vmem [shape: f32[2,4,3240], index: 0, kind: input, shape index: {}]
  %s1 = inlined_call_operand.vmem [shape: f32[2,4,3240], index: 1, kind: input, shape index: {}]
  %s2 = inlined_call_operand.vmem [shape: f32[1,3240], index: 2, kind: input, shape index: {}]
  %s3 = inlined_call_operand.vmem [shape: f32[8,1], index: 3, kind: input, shape index: {}]
  %s4 = inlined_call_operand.vmem [shape: f32[8,1], index: 4, kind: input, shape index: {}]
  %s5 = inlined_call_operand.vmem [shape: f32[8,216], index: 5, kind: input, shape index: {}]
  %s6 = inlined_call_operand.vmem [shape: f32[8,1], index: 6, kind: input, shape index: {}]
  %s7 = inlined_call_operand.vmem [shape: f32[2,8,2554], index: 7, kind: output, shape index: {}]
  %s8 = sld [smem:[#allocation0]]
  $region61: #{upcatconv_forward.3} parent=0
    _
  %s10 = ssub.s32 1, %s8
  %s11 = scalar_select 0, %s10, %s8
  loop: start=0, step=1, limit=4
  $region2: #{upcatconv_forward.3} parent=0 // loop_pre_header
    _
  $region3: #{upcatconv_forward.3} parent=0 // loop_header
    %s13 = sphi 0, %s17
    %p14 = scmp.ge.s32.totalorder %s13, 4
    %s23 = sphi 0, %s25
    %s26 = sphi 0, %s23
    %s27 = sphi 0, %s26
    %s43 = sphi 0, %s27
    %s49 = sphi 0, %s51
    %s52 = sphi 0, %s49
    %s53 = sphi 0, %s52
    %s69 = sphi 0, %s53
    %s73 = sphi 0, %s73
    %s75 = sphi 0, %s73
    %s76 = sphi 0, %s75
    %s90 = sphi 0, %s76
    %s94 = sphi 0, %s94
    %s96 = sphi 0, %s94
    %s97 = sphi 0, %s96
    %s111 = sphi 0, %s97
    %s115 = sphi 0, %s115
    %s117 = sphi 0, %s115
    %s118 = sphi 0, %s117
    %s132 = sphi 0, %s118
    %s136 = sphi 0, %s136
    %s138 = sphi 0, %s136
    %s139 = sphi 0, %s138
    %s153 = sphi 0, %s139
    %s157 = sphi 0, %s157
    %s159 = sphi 0, %s157
    %s160 = sphi 0, %s159
    %s174 = sphi 0, %s160
    %s180 = sphi 0, %s182
    %s183 = sphi 0, %s180
    %s184 = sphi 0, %s183
    %s200 = sphi 0, %s184
  $region4: #{upcatconv_forward.3} parent=0 // loop_header_branch
    %16 = sbr.rel (%p14) target = $region8
  $region5: #{upcatconv_forward.3} parent=0 // loop_body
    %s18 = ssub.s32 %s13, 1
    %s19 = ssub.s32 %s13, 2
    %s20 = sadd.s32 %s13, 1
    %s21 = ssub.s32 %s13, %s20
    %p22 = scmp.eq.s32.totalorder %s21, 0
    %s24 = sadd.s32 %s23, 1
    %s25 = scalar_select %p22, %s23, %s24
    %p28 = pneg %p22
    %p29 = scmp.eq.s32.totalorder %s13, 1
    %p30 = por %p28, %p29
    %p31 = scmp.ne.s32.totalorder %s23, %s26
    %p32 = scmp.eq.s32.totalorder %s13, 0
    %p33 = por %p31, %p32
    %p34 = scmp.ne.s32.totalorder %s23, %s26
    %p35 = scmp.eq.s32.totalorder %s18, 1
    %p36 = por %p34, %p35
    %p37 = scmp.ne.s32.totalorder %s26, %s27
    %p38 = scmp.eq.s32.totalorder %s18, 0
    %p39 = por %p37, %p38
    %p40 = scmp.ne.s32.totalorder %s26, %s27
    %p41 = scmp.eq.s32.totalorder %s19, 1
    %p42 = por %p40, %p41
    %p44 = scmp.ne.s32.totalorder %s27, %s43
    %p45 = scmp.eq.s32.totalorder %s19, 0
    %p46 = por %p44, %p45
    %s47 = ssub.s32 %s13, %s20
    %p48 = scmp.eq.s32.totalorder %s47, 0
    %s50 = sadd.s32 %s49, 1
    %s51 = scalar_select %p48, %s49, %s50
    %p54 = pneg %p48
    %p55 = scmp.eq.s32.totalorder %s13, 1
    %p56 = por %p54, %p55
    %p57 = scmp.ne.s32.totalorder %s49, %s52
    %p58 = scmp.eq.s32.totalorder %s13, 0
    %p59 = por %p57, %p58
    %p60 = scmp.ne.s32.totalorder %s49, %s52
    %p61 = scmp.eq.s32.totalorder %s18, 1
    %p62 = por %p60, %p61
    %p63 = scmp.ne.s32.totalorder %s52, %s53
    %p64 = scmp.eq.s32.totalorder %s18, 0
    %p65 = por %p63, %p64
    %p66 = scmp.ne.s32.totalorder %s52, %s53
    %p67 = scmp.eq.s32.totalorder %s19, 1
    %p68 = por %p66, %p67
    %p70 = scmp.ne.s32.totalorder %s53, %s69
    %p71 = scmp.eq.s32.totalorder %s19, 0
    %p72 = por %p70, %p71
    %s74 = sadd.s32 %s73, 1
    %p77 = scmp.eq.s32.totalorder %s13, 1
    %p78 = scmp.ne.s32.totalorder %s73, %s75
    %p79 = scmp.eq.s32.totalorder %s13, 0
    %p80 = por %p78, %p79
    %p81 = scmp.ne.s32.totalorder %s73, %s75
    %p82 = scmp.eq.s32.totalorder %s18, 1
    %p83 = por %p81, %p82
    %p84 = scmp.ne.s32.totalorder %s75, %s76
    %p85 = scmp.eq.s32.totalorder %s18, 0
    %p86 = por %p84, %p85
    %p87 = scmp.ne.s32.totalorder %s75, %s76
    %p88 = scmp.eq.s32.totalorder %s19, 1
    %p89 = por %p87, %p88
    %p91 = scmp.ne.s32.totalorder %s76, %s90
    %p92 = scmp.eq.s32.totalorder %s19, 0
    %p93 = por %p91, %p92
    %s95 = sadd.s32 %s94, 1
    %p98 = scmp.eq.s32.totalorder %s13, 1
    %p99 = scmp.ne.s32.totalorder %s94, %s96
    %p100 = scmp.eq.s32.totalorder %s13, 0
    %p101 = por %p99, %p100
    %p102 = scmp.ne.s32.totalorder %s94, %s96
    %p103 = scmp.eq.s32.totalorder %s18, 1
    %p104 = por %p102, %p103
    %p105 = scmp.ne.s32.totalorder %s96, %s97
    %p106 = scmp.eq.s32.totalorder %s18, 0
    %p107 = por %p105, %p106
    %p108 = scmp.ne.s32.totalorder %s96, %s97
    %p109 = scmp.eq.s32.totalorder %s19, 1
    %p110 = por %p108, %p109
    %p112 = scmp.ne.s32.totalorder %s97, %s111
    %p113 = scmp.eq.s32.totalorder %s19, 0
    %p114 = por %p112, %p113
    %s116 = sadd.s32 %s115, 1
    %p119 = scmp.eq.s32.totalorder %s13, 1
    %p120 = scmp.ne.s32.totalorder %s115, %s117
    %p121 = scmp.eq.s32.totalorder %s13, 0
    %p122 = por %p120, %p121
    %p123 = scmp.ne.s32.totalorder %s115, %s117
    %p124 = scmp.eq.s32.totalorder %s18, 1
    %p125 = por %p123, %p124
    %p126 = scmp.ne.s32.totalorder %s117, %s118
    %p127 = scmp.eq.s32.totalorder %s18, 0
    %p128 = por %p126, %p127
    %p129 = scmp.ne.s32.totalorder %s117, %s118
    %p130 = scmp.eq.s32.totalorder %s19, 1
    %p131 = por %p129, %p130
    %p133 = scmp.ne.s32.totalorder %s118, %s132
    %p134 = scmp.eq.s32.totalorder %s19, 0
    %p135 = por %p133, %p134
    %s137 = sadd.s32 %s136, 1
    %p140 = scmp.eq.s32.totalorder %s13, 1
    %p141 = scmp.ne.s32.totalorder %s136, %s138
    %p142 = scmp.eq.s32.totalorder %s13, 0
    %p143 = por %p141, %p142
    %p144 = scmp.ne.s32.totalorder %s136, %s138
    %p145 = scmp.eq.s32.totalorder %s18, 1
    %p146 = por %p144, %p145
    %p147 = scmp.ne.s32.totalorder %s138, %s139
    %p148 = scmp.eq.s32.totalorder %s18, 0
    %p149 = por %p147, %p148
    %p150 = scmp.ne.s32.totalorder %s138, %s139
    %p151 = scmp.eq.s32.totalorder %s19, 1
    %p152 = por %p150, %p151
    %p154 = scmp.ne.s32.totalorder %s139, %s153
    %p155 = scmp.eq.s32.totalorder %s19, 0
    %p156 = por %p154, %p155
    %s158 = sadd.s32 %s157, 1
    %p161 = scmp.eq.s32.totalorder %s13, 1
    %p162 = scmp.ne.s32.totalorder %s157, %s159
    %p163 = scmp.eq.s32.totalorder %s13, 0
    %p164 = por %p162, %p163
    %p165 = scmp.ne.s32.totalorder %s157, %s159
    %p166 = scmp.eq.s32.totalorder %s18, 1
    %p167 = por %p165, %p166
    %p168 = scmp.ne.s32.totalorder %s159, %s160
    %p169 = scmp.eq.s32.totalorder %s18, 0
    %p170 = por %p168, %p169
    %p171 = scmp.ne.s32.totalorder %s159, %s160
    %p172 = scmp.eq.s32.totalorder %s19, 1
    %p173 = por %p171, %p172
    %p175 = scmp.ne.s32.totalorder %s160, %s174
    %p176 = scmp.eq.s32.totalorder %s19, 0
    %p177 = por %p175, %p176
    %s178 = ssub.s32 %s13, %s20
    %p179 = scmp.eq.s32.totalorder %s178, 0
    %s181 = sadd.s32 %s180, 1
    %s182 = scalar_select %p179, %s180, %s181
    %p185 = pneg %p179
    %p186 = scmp.eq.s32.totalorder %s13, 1
    %p187 = por %p185, %p186
    %p188 = scmp.ne.s32.totalorder %s180, %s183
    %p189 = scmp.eq.s32.totalorder %s13, 0
    %p190 = por %p188, %p189
    %p191 = scmp.ne.s32.totalorder %s180, %s183
    %p192 = scmp.eq.s32.totalorder %s18, 1
    %p193 = por %p191, %p192
    %p194 = scmp.ne.s32.totalorder %s183, %s184
    %p195 = scmp.eq.s32.totalorder %s18, 0
    %p196 = por %p194, %p195
    %p197 = scmp.ne.s32.totalorder %s183, %s184
    %p198 = scmp.eq.s32.totalorder %s19, 1
    %p199 = por %p197, %p198
    %p201 = scmp.ne.s32.totalorder %s184, %s200
    %p202 = scmp.eq.s32.totalorder %s19, 0
    %p203 = por %p201, %p202
    %p204 = scmp.le.s32.totalorder 1, %s13
    %p205 = scmp.lt.s32.totalorder %s13, 3
    %p206 = pnand %p204, %p205
    %p207 = pneg %p206
    // Predicated region
    $region9: #{upcatconv_forward.3} parent=5 // pred_check
      _
    $region10: #{upcatconv_forward.3} parent=5 // pred_check_branch
      %209 = sbr.rel (%p206) target = $region12
    $region11: #{upcatconv_forward.3} parent=5 // pred_region
      %s210 = ssub.s32 %s13, 1
      // Predicated region
      $region13: #{upcatconv_forward.3} parent=11 // pred_check
        %p211 = pneg %p86
      $region14: #{upcatconv_forward.3} parent=11 // pred_check_branch
        %213 = sbr.rel (%p211) target = $region16
      $region15: #{upcatconv_forward.3} parent=11 // pred_region
        _
      $region16: #{upcatconv_forward.3} parent=11 // pred_fallthru
        _
      // Predicated region
      $region17: #{upcatconv_forward.3} parent=11 // pred_check
        %p214 = pneg %p107
      $region18: #{upcatconv_forward.3} parent=11 // pred_check_branch
        %216 = sbr.rel (%p214) target = $region20
      $region19: #{upcatconv_forward.3} parent=11 // pred_region
        _
      $region20: #{upcatconv_forward.3} parent=11 // pred_fallthru
        _
      // Predicated region
      $region21: #{upcatconv_forward.3} parent=11 // pred_check
        %p217 = pneg %p128
      $region22: #{upcatconv_forward.3} parent=11 // pred_check_branch
        %219 = sbr.rel (%p217) target = $region24
      $region23: #{upcatconv_forward.3} parent=11 // pred_region
        _
      $region24: #{upcatconv_forward.3} parent=11 // pred_fallthru
        _
      // Predicated region
      $region25: #{upcatconv_forward.3} parent=11 // pred_check
        %p220 = pneg %p149
      $region26: #{upcatconv_forward.3} parent=11 // pred_check_branch
        %222 = sbr.rel (%p220) target = $region28
      $region27: #{upcatconv_forward.3} parent=11 // pred_region
        _
      $region28: #{upcatconv_forward.3} parent=11 // pred_fallthru
        _
      // Predicated region
      $region29: #{upcatconv_forward.3} parent=11 // pred_check
        %p223 = pneg %p170
      $region30: #{upcatconv_forward.3} parent=11 // pred_check_branch
        %225 = sbr.rel (%p223) target = $region32
      $region31: #{upcatconv_forward.3} parent=11 // pred_region
        _
      $region32: #{upcatconv_forward.3} parent=11 // pred_fallthru
        _
    $region12: #{upcatconv_forward.3} parent=5 // pred_fallthru
      _
    %p226 = scmp.lt.s32.totalorder %s13, 2
    // Predicated region
    $region33: #{upcatconv_forward.3} parent=5 // pred_check
      %p227 = pneg %p226
    $region34: #{upcatconv_forward.3} parent=5 // pred_check_branch
      %229 = sbr.rel (%p227) target = $region36
    $region35: #{upcatconv_forward.3} parent=5 // pred_region
      // Predicated region
      $region37: #{upcatconv_forward.3} parent=35 // pred_check
        %p230 = pneg %p33
      $region38: #{upcatconv_forward.3} parent=35 // pred_check_branch
        %232 = sbr.rel (%p230) target = $region40
      $region39: #{upcatconv_forward.3} parent=35 // pred_region
        %p233 = scmp.lt.s32.totalorder %s13, 1
        %s234 = scalar_select %p233, %s13, 1
        %s235 = smul.addr %s234, 26
        %s236 = smul.addr %s235, 4
        %s237 = scalar_lea.vmem %s0, %s236
      $region40: #{upcatconv_forward.3} parent=35 // pred_fallthru
        _
      // Predicated region
      $region41: #{upcatconv_forward.3} parent=35 // pred_check
        %p238 = pneg %p59
      $region42: #{upcatconv_forward.3} parent=35 // pred_check_branch
        %240 = sbr.rel (%p238) target = $region44
      $region43: #{upcatconv_forward.3} parent=35 // pred_region
        %p241 = scmp.lt.s32.totalorder %s13, 1
        %s242 = scalar_select %p241, %s13, 1
        %s243 = smul.addr %s242, 26
        %s244 = smul.addr %s243, 4
        %s245 = scalar_lea.vmem %s1, %s244
      $region44: #{upcatconv_forward.3} parent=35 // pred_fallthru
        _
    $region36: #{upcatconv_forward.3} parent=5 // pred_fallthru
      _
    %p246 = scmp.le.s32.totalorder 1, %s13
    %p247 = scmp.lt.s32.totalorder %s13, 3
    %p248 = pnand %p246, %p247
    %p249 = pneg %p248
    // Predicated region
    $region45: #{upcatconv_forward.3} parent=5 // pred_check
      _
    $region46: #{upcatconv_forward.3} parent=5 // pred_check_branch
      %251 = sbr.rel (%p248) target = $region48
    $region47: #{upcatconv_forward.3} parent=5 // pred_region
      %s252 = ssub.s32 %s13, 1
      %p253 = scmp.lt.s32.totalorder %s18, 1
      %s254 = scalar_select %p253, %s18, 1
      %s255 = smul.addr %s254, 26
      %s256 = smul.addr %s255, 4
      %s257 = scalar_lea.vmem %s0, %s256
      %p258 = pneg %p39
      %p259 = pneg %p36
      %p260 = scmp.lt.s32.totalorder %s18, 1
      %s261 = scalar_select %p260, %s18, 1
      %s262 = smul.addr %s261, 26
      %s263 = smul.addr %s262, 4
      %s264 = scalar_lea.vmem %s1, %s263
      %p265 = pneg %p65
      %p266 = pneg %p62
      %p267 = pneg %p86
      %p268 = pneg %p83
      %p269 = pneg %p107
      %p270 = pneg %p104
      %p271 = pneg %p128
      %p272 = pneg %p125
      %p273 = pneg %p149
      %p274 = pneg %p146
      %p275 = pneg %p170
      %p276 = pneg %p167
      %p277 = pneg %p196
      %p278 = pneg %p193
      %p279 = scmp.lt.s32.totalorder %s18, 1
      %s280 = scalar_select %p279, %s18, 1
      %s281 = smul.addr %s280, 20
      %s282 = smul.addr %s281, 8
      %s283 = scalar_lea.vmem %s7, %s282
      %p284 = scmp.lt.s32.totalorder %s18, 1
      %s285 = scalar_select %p284, %s18, 1
      %s286 = smul.addr %s285, 26
      %s287 = smul.addr %s286, 4
      %s288 = scalar_lea.vmem %s0, %s287
      %p289 = scmp.lt.s32.totalorder %s18, 1
      %s290 = scalar_select %p289, %s18, 1
      %s291 = smul.addr %s290, 26
      %s292 = smul.addr %s291, 4
      %s293 = scalar_lea.vmem %s1, %s292
      %p294 = scmp.lt.s32.totalorder %s18, 1
      %s295 = scalar_select %p294, %s18, 1
      %s296 = smul.addr %s295, 20
      %s297 = smul.addr %s296, 8
      %s298 = scalar_lea.vmem %s7, %s297
      %v300 = vld [vmem:[%s2] sm:$0xff]
      %v301 = vld [vmem:[%s2 + $0x8] sm:$0xff]
      %v302 = vld [vmem:[%s2 + $0x10] sm:$0xff]
      %v303 = vld [vmem:[%s2 + $0x18] sm:$0x3]
      %v304 = vld [vmem:[%s3] sm:$0xff]
      %v305 = vld [vmem:[%s4] sm:$0xff]
      %v306 = vld [vmem:[%s288] sm:$0xff]
      %v307 = vld [vmem:[%s288 + $0x8] sm:$0xff]
      %v308 = vld [vmem:[%s288 + $0x10] sm:$0xff]
      %v309 = vld [vmem:[%s288 + $0x18] sm:$0xff]
      %v310 = vld [vmem:[%s288 + $0x20] sm:$0xff]
      %v311 = vld [vmem:[%s288 + $0x28] sm:$0xff]
      %v312 = vld [vmem:[%s288 + $0x30] sm:$0xff]
      %v313 = vld [vmem:[%s288 + $0x38] sm:$0xff]
      %v314 = vld [vmem:[%s288 + $0x40] sm:$0xff]
      %v315 = vld [vmem:[%s288 + $0x48] sm:$0xff]
      %v316 = vld [vmem:[%s288 + $0x50] sm:$0xff]
      %v317 = vld [vmem:[%s288 + $0x58] sm:$0xff]
      %v318 = vld [vmem:[%s288 + $0x60] sm:$0xff]
      %v332 = vcombine.high %v306, %v306
      %v333 = vcombine.high %v307, %v307
      %v334 = vcombine.high %v308, %v308
      %v335 = vcombine.high %v309, %v309
      %v336 = vcombine.high %v310, %v310
      %v337 = vcombine.high %v311, %v311
      %v338 = vcombine.high %v312, %v312
      %v339 = vcombine.high %v313, %v313
      %v340 = vcombine.high %v314, %v314
      %v341 = vcombine.high %v315, %v315
      %v342 = vcombine.high %v316, %v316
      %v343 = vcombine.high %v317, %v317
      %v344 = vcombine.high %v318, %v318
      %vm358 = vcmask 1043456
      %v359 = vsel %vm358, %v306, 0.0
      %v360 = vsel %vm358, %v332, 0.0
      %v361 = vadd.f32 %v359, %v360
      %v362 = vsel %vm358, %v307, 0.0
      %v363 = vadd.f32 %v361, %v362
      %v364 = vsel %vm358, %v333, 0.0
      %v365 = vadd.f32 %v363, %v364
      %v366 = vsel %vm358, %v308, 0.0
      %v367 = vadd.f32 %v365, %v366
      %v368 = vsel %vm358, %v334, 0.0
      %v369 = vadd.f32 %v367, %v368
      %v370 = vsel %vm358, %v309, 0.0
      %v371 = vadd.f32 %v369, %v370
      %v372 = vsel %vm358, %v335, 0.0
      %v373 = vadd.f32 %v371, %v372
      %v374 = vsel %vm358, %v310, 0.0
      %v375 = vadd.f32 %v373, %v374
      %v376 = vsel %vm358, %v336, 0.0
      %v377 = vadd.f32 %v375, %v376
      %v378 = vsel %vm358, %v311, 0.0
      %v379 = vadd.f32 %v377, %v378
      %v380 = vsel %vm358, %v337, 0.0
      %v381 = vadd.f32 %v379, %v380
      %v382 = vsel %vm358, %v312, 0.0
      %v383 = vadd.f32 %v381, %v382
      %v384 = vsel %vm358, %v338, 0.0
      %v385 = vadd.f32 %v383, %v384
      %v386 = vsel %vm358, %v313, 0.0
      %v387 = vadd.f32 %v385, %v386
      %v388 = vsel %vm358, %v339, 0.0
      %v389 = vadd.f32 %v387, %v388
      %v390 = vsel %vm358, %v314, 0.0
      %v391 = vadd.f32 %v389, %v390
      %v392 = vsel %vm358, %v340, 0.0
      %v393 = vadd.f32 %v391, %v392
      %v394 = vsel %vm358, %v315, 0.0
      %v395 = vadd.f32 %v393, %v394
      %v396 = vsel %vm358, %v341, 0.0
      %v397 = vadd.f32 %v395, %v396
      %v398 = vsel %vm358, %v316, 0.0
      %v399 = vadd.f32 %v397, %v398
      %v400 = vsel %vm358, %v342, 0.0
      %v401 = vadd.f32 %v399, %v400
      %v402 = vsel %vm358, %v317, 0.0
      %v403 = vadd.f32 %v401, %v402
      %v404 = vsel %vm358, %v343, 0.0
      %v405 = vadd.f32 %v403, %v404
      %v406 = vsel %vm358, %v318, 0.0
      %v407 = vadd.f32 %v405, %v406
      %vm408 = vcmask 322560
      %v409 = vsel %vm408, %v344, 0.0
      %v410 = vadd.f32 %v407, %v409
      %411 = vadd.xlane.f32.xlu0 %v410
      %v412 = vpop.xlane.xlu0 %411
      %v413 = vmul.f32 %v306, %v306
      %v414 = vmul.f32 %v307, %v307
      %v415 = vmul.f32 %v308, %v308
      %v416 = vmul.f32 %v309, %v309
      %v417 = vmul.f32 %v310, %v310
      %v418 = vmul.f32 %v311, %v311
      %v419 = vmul.f32 %v312, %v312
      %v420 = vmul.f32 %v313, %v313
      %v421 = vmul.f32 %v314, %v314
      %v422 = vmul.f32 %v315, %v315
      %v423 = vmul.f32 %v316, %v316
      %v424 = vmul.f32 %v317, %v317
      %v425 = vmul.f32 %v318, %v318
      %v439 = vcombine.high %v413, %v413
      %v440 = vcombine.high %v414, %v414
      %v441 = vcombine.high %v415, %v415
      %v442 = vcombine.high %v416, %v416
      %v443 = vcombine.high %v417, %v417
      %v444 = vcombine.high %v418, %v418
      %v445 = vcombine.high %v419, %v419
      %v446 = vcombine.high %v420, %v420
      %v447 = vcombine.high %v421, %v421
      %v448 = vcombine.high %v422, %v422
      %v449 = vcombine.high %v423, %v423
      %v450 = vcombine.high %v424, %v424
      %v451 = vcombine.high %v425, %v425
      %v465 = vsel %vm358, %v413, 0.0
      %v466 = vsel %vm358, %v439, 0.0
      %v467 = vadd.f32 %v465, %v466
      %v468 = vsel %vm358, %v414, 0.0
      %v469 = vadd.f32 %v467, %v468
      %v470 = vsel %vm358, %v440, 0.0
      %v471 = vadd.f32 %v469, %v470
      %v472 = vsel %vm358, %v415, 0.0
      %v473 = vadd.f32 %v471, %v472
      %v474 = vsel %vm358, %v441, 0.0
      %v475 = vadd.f32 %v473, %v474
      %v476 = vsel %vm358, %v416, 0.0
      %v477 = vadd.f32 %v475, %v476
      %v478 = vsel %vm358, %v442, 0.0
      %v479 = vadd.f32 %v477, %v478
      %v480 = vsel %vm358, %v417, 0.0
      %v481 = vadd.f32 %v479, %v480
      %v482 = vsel %vm358, %v443, 0.0
      %v483 = vadd.f32 %v481, %v482
      %v484 = vsel %vm358, %v418, 0.0
      %v485 = vadd.f32 %v483, %v484
      %v486 = vsel %vm358, %v444, 0.0
      %v487 = vadd.f32 %v485, %v486
      %v488 = vsel %vm358, %v419, 0.0
      %v489 = vadd.f32 %v487, %v488
      %v490 = vsel %vm358, %v445, 0.0
      %v491 = vadd.f32 %v489, %v490
      %v492 = vsel %vm358, %v420, 0.0
      %v493 = vadd.f32 %v491, %v492
      %v494 = vsel %vm358, %v446, 0.0
      %v495 = vadd.f32 %v493, %v494
      %v496 = vsel %vm358, %v421, 0.0
      %v497 = vadd.f32 %v495, %v496
      %v498 = vsel %vm358, %v447, 0.0
      %v499 = vadd.f32 %v497, %v498
      %v500 = vsel %vm358, %v422, 0.0
      %v501 = vadd.f32 %v499, %v500
      %v502 = vsel %vm358, %v448, 0.0
      %v503 = vadd.f32 %v501, %v502
      %v504 = vsel %vm358, %v423, 0.0
      %v505 = vadd.f32 %v503, %v504
      %v506 = vsel %vm358, %v449, 0.0
      %v507 = vadd.f32 %v505, %v506
      %v508 = vsel %vm358, %v424, 0.0
      %v509 = vadd.f32 %v507, %v508
      %v510 = vsel %vm358, %v450, 0.0
      %v511 = vadd.f32 %v509, %v510
      %v512 = vsel %vm358, %v425, 0.0
      %v513 = vadd.f32 %v511, %v512
      %v514 = vsel %vm408, %v451, 0.0
      %v515 = vadd.f32 %v513, %v514
      %516 = vadd.xlane.f32.xlu0 %v515
      %v517 = vpop.xlane.xlu0 %516
      %v518 = vmul.f32 %v412, 0.00048828125
      %v519 = vmul.f32 %v517, 0.00048828125
      %v520 = vmul.f32 %v518, %v518
      %v521 = vsub.f32 %v519, %v520
      %v524 = vunpack.c.l.s4 839922192
      %v525 = vunpack.c.0.s8 %v524
      %v526 = vlaneseq
      %v527 = vshrl.u32 %v526, 7
      %v528 = vsub.s32 %v525, %v527
      %v529 = vrot.slane %v518, %v528
      %v531 = vsub.f32 %v306, %v529
      %v532 = vsub.f32 %v307, %v529
      %v533 = vsub.f32 %v308, %v529
      %v534 = vsub.f32 %v309, %v529
      %v535 = vsub.f32 %v310, %v529
      %v536 = vsub.f32 %v311, %v529
      %v537 = vsub.f32 %v312, %v529
      %v538 = vsub.f32 %v313, %v529
      %v539 = vsub.f32 %v314, %v529
      %v540 = vsub.f32 %v315, %v529
      %v541 = vsub.f32 %v316, %v529
      %v542 = vsub.f32 %v317, %v529
      %v543 = vsub.f32 %v318, %v529
      %v544 = vadd.f32 %v521, 1e-05
      %v545 = vrsqrt.pop %v544
      %v548 = vunpack.c.l.s4 839922192
      %v549 = vunpack.c.0.s8 %v548
      %v550 = vlaneseq
      %v551 = vshrl.u32 %v550, 7
      %v552 = vsub.s32 %v549, %v551
      %v553 = vrot.slane %v545, %v552
      %v555 = vmul.f32 %v531, %v553
      %v556 = vmul.f32 %v532, %v553
      %v557 = vmul.f32 %v533, %v553
      %v558 = vmul.f32 %v534, %v553
      %v559 = vmul.f32 %v535, %v553
      %v560 = vmul.f32 %v536, %v553
      %v561 = vmul.f32 %v537, %v553
      %v562 = vmul.f32 %v538, %v553
      %v563 = vmul.f32 %v539, %v553
      %v564 = vmul.f32 %v540, %v553
      %v565 = vmul.f32 %v541, %v553
      %v566 = vmul.f32 %v542, %v553
      %v567 = vmul.f32 %v543, %v553
      %569 = vset.pattern.permute.xlu0 0
      %570 = vperm.xlu0 %569, %v304
      %v571 = vpop.permute.xlu0 %570
      %v573 = vunpack.c.l.s4 839922192
      %v574 = vunpack.c.0.s8 %v573
      %v575 = vlaneseq
      %v576 = vshrl.u32 %v575, 7
      %v577 = vsub.s32 %v574, %v576
      %v578 = vrot.slane %v571, %v577
      %v580 = vmul.f32 %v555, %v578
      %v581 = vmul.f32 %v556, %v578
      %v582 = vmul.f32 %v557, %v578
      %v583 = vmul.f32 %v558, %v578
      %v584 = vmul.f32 %v559, %v578
      %v585 = vmul.f32 %v560, %v578
      %v586 = vmul.f32 %v561, %v578
      %v587 = vmul.f32 %v562, %v578
      %v588 = vmul.f32 %v563, %v578
      %v589 = vmul.f32 %v564, %v578
      %v590 = vmul.f32 %v565, %v578
      %v591 = vmul.f32 %v566, %v578
      %v592 = vmul.f32 %v567, %v578
      %594 = vset.pattern.permute.xlu0 0
      %595 = vperm.xlu0 %594, %v305
      %v596 = vpop.permute.xlu0 %595
      %v598 = vunpack.c.l.s4 839922192
      %v599 = vunpack.c.0.s8 %v598
      %v600 = vlaneseq
      %v601 = vshrl.u32 %v600, 7
      %v602 = vsub.s32 %v599, %v601
      %v603 = vrot.slane %v596, %v602
      %v605 = vadd.f32 %v580, %v603
      %v606 = vadd.f32 %v581, %v603
      %v607 = vadd.f32 %v582, %v603
      %v608 = vadd.f32 %v583, %v603
      %v609 = vadd.f32 %v584, %v603
      %v610 = vadd.f32 %v585, %v603
      %v611 = vadd.f32 %v586, %v603
      %v612 = vadd.f32 %v587, %v603
      %v613 = vadd.f32 %v588, %v603
      %v614 = vadd.f32 %v589, %v603
      %v615 = vadd.f32 %v590, %v603
      %v616 = vadd.f32 %v591, %v603
      %v617 = vadd.f32 %v592, %v603
      %vm618 = vcmp.ge.f32.partialorder %v605, 0.0
      %vm619 = vcmp.ge.f32.partialorder %v606, 0.0
      %vm620 = vcmp.ge.f32.partialorder %v607, 0.0
      %vm621 = vcmp.ge.f32.partialorder %v608, 0.0
      %vm622 = vcmp.ge.f32.partialorder %v609, 0.0
      %vm623 = vcmp.ge.f32.partialorder %v610, 0.0
      %vm624 = vcmp.ge.f32.partialorder %v611, 0.0
      %vm625 = vcmp.ge.f32.partialorder %v612, 0.0
      %vm626 = vcmp.ge.f32.partialorder %v613, 0.0
      %vm627 = vcmp.ge.f32.partialorder %v614, 0.0
      %vm628 = vcmp.ge.f32.partialorder %v615, 0.0
      %vm629 = vcmp.ge.f32.partialorder %v616, 0.0
      %vm630 = vcmp.ge.f32.partialorder %v617, 0.0
      %v631 = vmul.f32 %v605, 0.01
      %v632 = vmul.f32 %v606, 0.01
      %v633 = vmul.f32 %v607, 0.01
      %v634 = vmul.f32 %v608, 0.01
      %v635 = vmul.f32 %v609, 0.01
      %v636 = vmul.f32 %v610, 0.01
      %v637 = vmul.f32 %v611, 0.01
      %v638 = vmul.f32 %v612, 0.01
      %v639 = vmul.f32 %v613, 0.01
      %v640 = vmul.f32 %v614, 0.01
      %v641 = vmul.f32 %v615, 0.01
      %v642 = vmul.f32 %v616, 0.01
      %v643 = vmul.f32 %v617, 0.01
      %v644 = vsel %vm618, %v605, %v631
      %v645 = vsel %vm619, %v606, %v632
      %v646 = vsel %vm620, %v607, %v633
      %v647 = vsel %vm621, %v608, %v634
      %v648 = vsel %vm622, %v609, %v635
      %v649 = vsel %vm623, %v610, %v636
      %v650 = vsel %vm624, %v611, %v637
      %v651 = vsel %vm625, %v612, %v638
      %v652 = vsel %vm626, %v613, %v639
      %v653 = vsel %vm627, %v614, %v640
      %v654 = vsel %vm628, %v615, %v641
      %v655 = vsel %vm629, %v616, %v642
      %v656 = vsel %vm630, %v617, %v643
      %v661 = vlaneseq
      %v662 = vshrl.u32 %v661, 7
      %v663 = vsub.s32 0, %v662
      %v664 = vrot.slane %v300, %v663
      %v665 = vlaneseq
      %v666 = vshrl.u32 %v665, 7
      %v667 = vsub.s32 1, %v666
      %v668 = vrot.slane %v300, %v667
      %v669 = vlaneseq
      %v670 = vshrl.u32 %v669, 7
      %v671 = vsub.s32 2, %v670
      %v672 = vrot.slane %v300, %v671
      %v673 = vlaneseq
      %v674 = vshrl.u32 %v673, 7
      %v675 = vsub.s32 3, %v674
      %v676 = vrot.slane %v300, %v675
      %v677 = vlaneseq
      %v678 = vshrl.u32 %v677, 7
      %v679 = vsub.s32 4, %v678
      %v680 = vrot.slane %v300, %v679
      %v681 = vlaneseq
      %v682 = vshrl.u32 %v681, 7
      %v683 = vsub.s32 5, %v682
      %v684 = vrot.slane %v300, %v683
      %v685 = vlaneseq
      %v686 = vshrl.u32 %v685, 7
      %v687 = vsub.s32 6, %v686
      %v688 = vrot.slane %v300, %v687
      %v689 = vlaneseq
      %v690 = vshrl.u32 %v689, 7
      %v691 = vsub.s32 7, %v690
      %v692 = vrot.slane %v300, %v691
      %v693 = vlaneseq
      %v694 = vshrl.u32 %v693, 7
      %v695 = vsub.s32 0, %v694
      %v696 = vrot.slane %v301, %v695
      %v697 = vlaneseq
      %v698 = vshrl.u32 %v697, 7
      %v699 = vsub.s32 1, %v698
      %v700 = vrot.slane %v301, %v699
      %v701 = vlaneseq
      %v702 = vshrl.u32 %v701, 7
      %v703 = vsub.s32 2, %v702
      %v704 = vrot.slane %v301, %v703
      %v705 = vlaneseq
      %v706 = vshrl.u32 %v705, 7
      %v707 = vsub.s32 3, %v706
      %v708 = vrot.slane %v301, %v707
      %v709 = vlaneseq
      %v710 = vshrl.u32 %v709, 7
      %v711 = vsub.s32 4, %v710
      %v712 = vrot.slane %v301, %v711
      %v713 = vlaneseq
      %v714 = vshrl.u32 %v713, 7
      %v715 = vsub.s32 5, %v714
      %v716 = vrot.slane %v301, %v715
      %v717 = vlaneseq
      %v718 = vshrl.u32 %v717, 7
      %v719 = vsub.s32 6, %v718
      %v720 = vrot.slane %v301, %v719
      %v721 = vlaneseq
      %v722 = vshrl.u32 %v721, 7
      %v723 = vsub.s32 7, %v722
      %v724 = vrot.slane %v301, %v723
      %v725 = vlaneseq
      %v726 = vshrl.u32 %v725, 7
      %v727 = vsub.s32 0, %v726
      %v728 = vrot.slane %v302, %v727
      %v729 = vlaneseq
      %v730 = vshrl.u32 %v729, 7
      %v731 = vsub.s32 1, %v730
      %v732 = vrot.slane %v302, %v731
      %v733 = vlaneseq
      %v734 = vshrl.u32 %v733, 7
      %v735 = vsub.s32 2, %v734
      %v736 = vrot.slane %v302, %v735
      %v737 = vlaneseq
      %v738 = vshrl.u32 %v737, 7
      %v739 = vsub.s32 3, %v738
      %v740 = vrot.slane %v302, %v739
      %v741 = vlaneseq
      %v742 = vshrl.u32 %v741, 7
      %v743 = vsub.s32 4, %v742
      %v744 = vrot.slane %v302, %v743
      %v745 = vlaneseq
      %v746 = vshrl.u32 %v745, 7
      %v747 = vsub.s32 5, %v746
      %v748 = vrot.slane %v302, %v747
      %v749 = vlaneseq
      %v750 = vshrl.u32 %v749, 7
      %v751 = vsub.s32 6, %v750
      %v752 = vrot.slane %v302, %v751
      %v753 = vlaneseq
      %v754 = vshrl.u32 %v753, 7
      %v755 = vsub.s32 7, %v754
      %v756 = vrot.slane %v302, %v755
      %v757 = vlaneseq
      %v758 = vshrl.u32 %v757, 7
      %v759 = vsub.s32 0, %v758
      %v760 = vrot.slane %v303, %v759
      %v761 = vlaneseq
      %v762 = vshrl.u32 %v761, 7
      %v763 = vsub.s32 1, %v762
      %v764 = vrot.slane %v303, %v763
      %v765 = vcombine.low %v664, %v668
      %v766 = vcombine.low %v672, %v676
      %v767 = vcombine.low %v680, %v684
      %v768 = vcombine.low %v688, %v692
      %v769 = vcombine.low %v696, %v700
      %v770 = vcombine.low %v704, %v708
      %v771 = vcombine.low %v712, %v716
      %v772 = vcombine.low %v720, %v724
      %v773 = vcombine.low %v728, %v732
      %v774 = vcombine.low %v736, %v740
      %v775 = vcombine.low %v744, %v748
      %v776 = vcombine.low %v752, %v756
      %v777 = vcombine.low %v760, %v764
      %v791 = vmul.f32 %v644, %v765
      %v792 = vmul.f32 %v645, %v766
      %v793 = vmul.f32 %v646, %v767
      %v794 = vmul.f32 %v647, %v768
      %v795 = vmul.f32 %v648, %v769
      %v796 = vmul.f32 %v649, %v770
      %v797 = vmul.f32 %v650, %v771
      %v798 = vmul.f32 %v651, %v772
      %v799 = vmul.f32 %v652, %v773
      %v800 = vmul.f32 %v653, %v774
      %v801 = vmul.f32 %v654, %v775
      %v802 = vmul.f32 %v655, %v776
      %v803 = vmul.f32 %v656, %v777
      %v804 = vld [vmem:[%s293] sm:$0xff]
      %v805 = vld [vmem:[%s293 + $0x8] sm:$0xff]
      %v806 = vld [vmem:[%s293 + $0x10] sm:$0xff]
      %v807 = vld [vmem:[%s293 + $0x18] sm:$0xff]
      %v808 = vld [vmem:[%s293 + $0x20] sm:$0xff]
      %v809 = vld [vmem:[%s293 + $0x28] sm:$0xff]
      %v810 = vld [vmem:[%s293 + $0x30] sm:$0xff]
      %v811 = vld [vmem:[%s293 + $0x38] sm:$0xff]
      %v812 = vld [vmem:[%s293 + $0x40] sm:$0xff]
      %v813 = vld [vmem:[%s293 + $0x48] sm:$0xff]
      %v814 = vld [vmem:[%s293 + $0x50] sm:$0xff]
      %v815 = vld [vmem:[%s293 + $0x58] sm:$0xff]
      %v816 = vld [vmem:[%s293 + $0x60] sm:$0xff]
      %v830 = vcombine.high %v804, %v804
      %v831 = vcombine.high %v805, %v805
      %v832 = vcombine.high %v806, %v806
      %v833 = vcombine.high %v807, %v807
      %v834 = vcombine.high %v808, %v808
      %v835 = vcombine.high %v809, %v809
      %v836 = vcombine.high %v810, %v810
      %v837 = vcombine.high %v811, %v811
      %v838 = vcombine.high %v812, %v812
      %v839 = vcombine.high %v813, %v813
      %v840 = vcombine.high %v814, %v814
      %v841 = vcombine.high %v815, %v815
      %v842 = vcombine.high %v816, %v816
      %v856 = vsel %vm358, %v804, 0.0
      %v857 = vsel %vm358, %v830, 0.0
      %v858 = vadd.f32 %v856, %v857
      %v859 = vsel %vm358, %v805, 0.0
      %v860 = vadd.f32 %v858, %v859
      %v861 = vsel %vm358, %v831, 0.0
      %v862 = vadd.f32 %v860, %v861
      %v863 = vsel %vm358, %v806, 0.0
      %v864 = vadd.f32 %v862, %v863
      %v865 = vsel %vm358, %v832, 0.0
      %v866 = vadd.f32 %v864, %v865
      %v867 = vsel %vm358, %v807, 0.0
      %v868 = vadd.f32 %v866, %v867
      %v869 = vsel %vm358, %v833, 0.0
      %v870 = vadd.f32 %v868, %v869
      %v871 = vsel %vm358, %v808, 0.0
      %v872 = vadd.f32 %v870, %v871
      %v873 = vsel %vm358, %v834, 0.0
      %v874 = vadd.f32 %v872, %v873
      %v875 = vsel %vm358, %v809, 0.0
      %v876 = vadd.f32 %v874, %v875
      %v877 = vsel %vm358, %v835, 0.0
      %v878 = vadd.f32 %v876, %v877
      %v879 = vsel %vm358, %v810, 0.0
      %v880 = vadd.f32 %v878, %v879
      %v881 = vsel %vm358, %v836, 0.0
      %v882 = vadd.f32 %v880, %v881
      %v883 = vsel %vm358, %v811, 0.0
      %v884 = vadd.f32 %v882, %v883
      %v885 = vsel %vm358, %v837, 0.0
      %v886 = vadd.f32 %v884, %v885
      %v887 = vsel %vm358, %v812, 0.0
      %v888 = vadd.f32 %v886, %v887
      %v889 = vsel %vm358, %v838, 0.0
      %v890 = vadd.f32 %v888, %v889
      %v891 = vsel %vm358, %v813, 0.0
      %v892 = vadd.f32 %v890, %v891
      %v893 = vsel %vm358, %v839, 0.0
      %v894 = vadd.f32 %v892, %v893
      %v895 = vsel %vm358, %v814, 0.0
      %v896 = vadd.f32 %v894, %v895
      %v897 = vsel %vm358, %v840, 0.0
      %v898 = vadd.f32 %v896, %v897
      %v899 = vsel %vm358, %v815, 0.0
      %v900 = vadd.f32 %v898, %v899
      %v901 = vsel %vm358, %v841, 0.0
      %v902 = vadd.f32 %v900, %v901
      %v903 = vsel %vm358, %v816, 0.0
      %v904 = vadd.f32 %v902, %v903
      %v905 = vsel %vm408, %v842, 0.0
      %v906 = vadd.f32 %v904, %v905
      %907 = vadd.xlane.f32.xlu0 %v906
      %v908 = vpop.xlane.xlu0 %907
      %v909 = vmul.f32 %v804, %v804
      %v910 = vmul.f32 %v805, %v805
      %v911 = vmul.f32 %v806, %v806
      %v912 = vmul.f32 %v807, %v807
      %v913 = vmul.f32 %v808, %v808
      %v914 = vmul.f32 %v809, %v809
      %v915 = vmul.f32 %v810, %v810
      %v916 = vmul.f32 %v811, %v811
      %v917 = vmul.f32 %v812, %v812
      %v918 = vmul.f32 %v813, %v813
      %v919 = vmul.f32 %v814, %v814
      %v920 = vmul.f32 %v815, %v815
      %v921 = vmul.f32 %v816, %v816
      %v935 = vcombine.high %v909, %v909
      %v936 = vcombine.high %v910, %v910
      %v937 = vcombine.high %v911, %v911
      %v938 = vcombine.high %v912, %v912
      %v939 = vcombine.high %v913, %v913
      %v940 = vcombine.high %v914, %v914
      %v941 = vcombine.high %v915, %v915
      %v942 = vcombine.high %v916, %v916
      %v943 = vcombine.high %v917, %v917
      %v944 = vcombine.high %v918, %v918
      %v945 = vcombine.high %v919, %v919
      %v946 = vcombine.high %v920, %v920
      %v947 = vcombine.high %v921, %v921
      %v961 = vsel %vm358, %v909, 0.0
      %v962 = vsel %vm358, %v935, 0.0
      %v963 = vadd.f32 %v961, %v962
      %v964 = vsel %vm358, %v910, 0.0
      %v965 = vadd.f32 %v963, %v964
      %v966 = vsel %vm358, %v936, 0.0
      %v967 = vadd.f32 %v965, %v966
      %v968 = vsel %vm358, %v911, 0.0
      %v969 = vadd.f32 %v967, %v968
      %v970 = vsel %vm358, %v937, 0.0
      %v971 = vadd.f32 %v969, %v970
      %v972 = vsel %vm358, %v912, 0.0
      %v973 = vadd.f32 %v971, %v972
      %v974 = vsel %vm358, %v938, 0.0
      %v975 = vadd.f32 %v973, %v974
      %v976 = vsel %vm358, %v913, 0.0
      %v977 = vadd.f32 %v975, %v976
      %v978 = vsel %vm358, %v939, 0.0
      %v979 = vadd.f32 %v977, %v978
      %v980 = vsel %vm358, %v914, 0.0
      %v981 = vadd.f32 %v979, %v980
      %v982 = vsel %vm358, %v940, 0.0
      %v983 = vadd.f32 %v981, %v982
      %v984 = vsel %vm358, %v915, 0.0
      %v985 = vadd.f32 %v983, %v984
      %v986 = vsel %vm358, %v941, 0.0
      %v987 = vadd.f32 %v985, %v986
      %v988 = vsel %vm358, %v916, 0.0
      %v989 = vadd.f32 %v987, %v988
      %v990 = vsel %vm358, %v942, 0.0
      %v991 = vadd.f32 %v989, %v990
      %v992 = vsel %vm358, %v917, 0.0
      %v993 = vadd.f32 %v991, %v992
      %v994 = vsel %vm358, %v943, 0.0
      %v995 = vadd.f32 %v993, %v994
      %v996 = vsel %vm358, %v918, 0.0
      %v997 = vadd.f32 %v995, %v996
      %v998 = vsel %vm358, %v944, 0.0
      %v999 = vadd.f32 %v997, %v998
      %v1000 = vsel %vm358, %v919, 0.0
      %v1001 = vadd.f32 %v999, %v1000
      %v1002 = vsel %vm358, %v945, 0.0
      %v1003 = vadd.f32 %v1001, %v1002
      %v1004 = vsel %vm358, %v920, 0.0
      %v1005 = vadd.f32 %v1003, %v1004
      %v1006 = vsel %vm358, %v946, 0.0
      %v1007 = vadd.f32 %v1005, %v1006
      %v1008 = vsel %vm358, %v921, 0.0
      %v1009 = vadd.f32 %v1007, %v1008
      %v1010 = vsel %vm408, %v947, 0.0
      %v1011 = vadd.f32 %v1009, %v1010
      %1012 = vadd.xlane.f32.xlu0 %v1011
      %v1013 = vpop.xlane.xlu0 %1012
      %v1014 = vmul.f32 %v908, 0.00048828125
      %v1015 = vmul.f32 %v1013, 0.00048828125
      %v1016 = vmul.f32 %v1014, %v1014
      %v1017 = vsub.f32 %v1015, %v1016
      %v1020 = vunpack.c.l.s4 839922192
      %v1021 = vunpack.c.0.s8 %v1020
      %v1022 = vlaneseq
      %v1023 = vshrl.u32 %v1022, 7
      %v1024 = vsub.s32 %v1021, %v1023
      %v1025 = vrot.slane %v1014, %v1024
      %v1027 = vsub.f32 %v804, %v1025
      %v1028 = vsub.f32 %v805, %v1025
      %v1029 = vsub.f32 %v806, %v1025
      %v1030 = vsub.f32 %v807, %v1025
      %v1031 = vsub.f32 %v808, %v1025
      %v1032 = vsub.f32 %v809, %v1025
      %v1033 = vsub.f32 %v810, %v1025
      %v1034 = vsub.f32 %v811, %v1025
      %v1035 = vsub.f32 %v812, %v1025
      %v1036 = vsub.f32 %v813, %v1025
      %v1037 = vsub.f32 %v814, %v1025
      %v1038 = vsub.f32 %v815, %v1025
      %v1039 = vsub.f32 %v816, %v1025
      %v1040 = vadd.f32 %v1017, 1e-05
      %v1041 = vrsqrt.pop %v1040
      %v1044 = vunpack.c.l.s4 839922192
      %v1045 = vunpack.c.0.s8 %v1044
      %v1046 = vlaneseq
      %v1047 = vshrl.u32 %v1046, 7
      %v1048 = vsub.s32 %v1045, %v1047
      %v1049 = vrot.slane %v1041, %v1048
      %v1051 = vmul.f32 %v1027, %v1049
      %v1052 = vmul.f32 %v1028, %v1049
      %v1053 = vmul.f32 %v1029, %v1049
      %v1054 = vmul.f32 %v1030, %v1049
      %v1055 = vmul.f32 %v1031, %v1049
      %v1056 = vmul.f32 %v1032, %v1049
      %v1057 = vmul.f32 %v1033, %v1049
      %v1058 = vmul.f32 %v1034, %v1049
      %v1059 = vmul.f32 %v1035, %v1049
      %v1060 = vmul.f32 %v1036, %v1049
      %v1061 = vmul.f32 %v1037, %v1049
      %v1062 = vmul.f32 %v1038, %v1049
      %v1063 = vmul.f32 %v1039, %v1049
      %v1065 = vunpack.c.l.s4 1985246804
      %v1066 = vunpack.c.0.s8 %v1065
      %v1067 = vlaneseq
      %v1068 = vshrl.u32 %v1067, 7
      %v1069 = vsub.s32 %v1066, %v1068
      %v1070 = vrot.slane %v571, %v1069
      %v1072 = vmul.f32 %v1051, %v1070
      %v1073 = vmul.f32 %v1052, %v1070
      %v1074 = vmul.f32 %v1053, %v1070
      %v1075 = vmul.f32 %v1054, %v1070
      %v1076 = vmul.f32 %v1055, %v1070
      %v1077 = vmul.f32 %v1056, %v1070
      %v1078 = vmul.f32 %v1057, %v1070
      %v1079 = vmul.f32 %v1058, %v1070
      %v1080 = vmul.f32 %v1059, %v1070
      %v1081 = vmul.f32 %v1060, %v1070
      %v1082 = vmul.f32 %v1061, %v1070
      %v1083 = vmul.f32 %v1062, %v1070
      %v1084 = vmul.f32 %v1063, %v1070
      %v1086 = vunpack.c.l.s4 1985246804
      %v1087 = vunpack.c.0.s8 %v1086
      %v1088 = vlaneseq
      %v1089 = vshrl.u32 %v1088, 7
      %v1090 = vsub.s32 %v1087, %v1089
      %v1091 = vrot.slane %v596, %v1090
      %v1093 = vadd.f32 %v1072, %v1091
      %v1094 = vadd.f32 %v1073, %v1091
      %v1095 = vadd.f32 %v1074, %v1091
      %v1096 = vadd.f32 %v1075, %v1091
      %v1097 = vadd.f32 %v1076, %v1091
      %v1098 = vadd.f32 %v1077, %v1091
      %v1099 = vadd.f32 %v1078, %v1091
      %v1100 = vadd.f32 %v1079, %v1091
      %v1101 = vadd.f32 %v1080, %v1091
      %v1102 = vadd.f32 %v1081, %v1091
      %v1103 = vadd.f32 %v1082, %v1091
      %v1104 = vadd.f32 %v1083, %v1091
      %v1105 = vadd.f32 %v1084, %v1091
      %vm1106 = vcmp.ge.f32.partialorder %v1093, 0.0
      %vm1107 = vcmp.ge.f32.partialorder %v1094, 0.0
      %vm1108 = vcmp.ge.f32.partialorder %v1095, 0.0
      %vm1109 = vcmp.ge.f32.partialorder %v1096, 0.0
      %vm1110 = vcmp.ge.f32.partialorder %v1097, 0.0
      %vm1111 = vcmp.ge.f32.partialorder %v1098, 0.0
      %vm1112 = vcmp.ge.f32.partialorder %v1099, 0.0
      %vm1113 = vcmp.ge.f32.partialorder %v1100, 0.0
      %vm1114 = vcmp.ge.f32.partialorder %v1101, 0.0
      %vm1115 = vcmp.ge.f32.partialorder %v1102, 0.0
      %vm1116 = vcmp.ge.f32.partialorder %v1103, 0.0
      %vm1117 = vcmp.ge.f32.partialorder %v1104, 0.0
      %vm1118 = vcmp.ge.f32.partialorder %v1105, 0.0
      %v1119 = vmul.f32 %v1093, 0.01
      %v1120 = vmul.f32 %v1094, 0.01
      %v1121 = vmul.f32 %v1095, 0.01
      %v1122 = vmul.f32 %v1096, 0.01
      %v1123 = vmul.f32 %v1097, 0.01
      %v1124 = vmul.f32 %v1098, 0.01
      %v1125 = vmul.f32 %v1099, 0.01
      %v1126 = vmul.f32 %v1100, 0.01
      %v1127 = vmul.f32 %v1101, 0.01
      %v1128 = vmul.f32 %v1102, 0.01
      %v1129 = vmul.f32 %v1103, 0.01
      %v1130 = vmul.f32 %v1104, 0.01
      %v1131 = vmul.f32 %v1105, 0.01
      %v1132 = vsel %vm1106, %v1093, %v1119
      %v1133 = vsel %vm1107, %v1094, %v1120
      %v1134 = vsel %vm1108, %v1095, %v1121
      %v1135 = vsel %vm1109, %v1096, %v1122
      %v1136 = vsel %vm1110, %v1097, %v1123
      %v1137 = vsel %vm1111, %v1098, %v1124
      %v1138 = vsel %vm1112, %v1099, %v1125
      %v1139 = vsel %vm1113, %v1100, %v1126
      %v1140 = vsel %vm1114, %v1101, %v1127
      %v1141 = vsel %vm1115, %v1102, %v1128
      %v1142 = vsel %vm1116, %v1103, %v1129
      %v1143 = vsel %vm1117, %v1104, %v1130
      %v1144 = vsel %vm1118, %v1105, %v1131
      %v1145 = vmul.f32 %v1132, %v765
      %v1146 = vmul.f32 %v1133, %v766
      %v1147 = vmul.f32 %v1134, %v767
      %v1148 = vmul.f32 %v1135, %v768
      %v1149 = vmul.f32 %v1136, %v769
      %v1150 = vmul.f32 %v1137, %v770
      %v1151 = vmul.f32 %v1138, %v771
      %v1152 = vmul.f32 %v1139, %v772
      %v1153 = vmul.f32 %v1140, %v773
      %v1154 = vmul.f32 %v1141, %v774
      %v1155 = vmul.f32 %v1142, %v775
      %v1156 = vmul.f32 %v1143, %v776
      %v1157 = vmul.f32 %v1144, %v777
      %v1171 = vcombine.high %v791, %v791
      %v1172 = vcombine.high %v792, %v792
      %v1173 = vcombine.high %v793, %v793
      %v1174 = vcombine.high %v794, %v794
      %v1175 = vcombine.high %v795, %v795
      %v1176 = vcombine.high %v796, %v796
      %v1177 = vcombine.high %v797, %v797
      %v1178 = vcombine.high %v798, %v798
      %v1179 = vcombine.high %v799, %v799
      %v1180 = vcombine.high %v800, %v800
      %v1181 = vcombine.high %v801, %v801
      %v1182 = vcombine.high %v802, %v802
      %v1183 = vcombine.high %v803, %v803
      %v1210 = vcombine.low %v1145, %v1145
      %v1211 = vcombine.low %v1146, %v1146
      %v1212 = vcombine.low %v1147, %v1147
      %v1213 = vcombine.low %v1148, %v1148
      %v1214 = vcombine.low %v1149, %v1149
      %v1215 = vcombine.low %v1150, %v1150
      %v1216 = vcombine.low %v1151, %v1151
      %v1217 = vcombine.low %v1152, %v1152
      %v1218 = vcombine.low %v1153, %v1153
      %v1219 = vcombine.low %v1154, %v1154
      %v1220 = vcombine.low %v1155, %v1155
      %v1221 = vcombine.low %v1156, %v1156
      %v1222 = vcombine.low %v1157, %v1157
      %v1236 = vsel %vm358, %v791, %v1210
      %v1237 = vsel %vm358, %v1171, %v1145
      %v1238 = vsel %vm358, %v792, %v1211
      %v1239 = vsel %vm358, %v1172, %v1146
      %v1240 = vsel %vm358, %v793, %v1212
      %v1241 = vsel %vm358, %v1173, %v1147
      %v1242 = vsel %vm358, %v794, %v1213
      %v1243 = vsel %vm358, %v1174, %v1148
      %v1244 = vsel %vm358, %v795, %v1214
      %v1245 = vsel %vm358, %v1175, %v1149
      %v1246 = vsel %vm358, %v796, %v1215
      %v1247 = vsel %vm358, %v1176, %v1150
      %v1248 = vsel %vm358, %v797, %v1216
      %v1249 = vsel %vm358, %v1177, %v1151
      %v1250 = vsel %vm358, %v798, %v1217
      %v1251 = vsel %vm358, %v1178, %v1152
      %v1252 = vsel %vm358, %v799, %v1218
      %v1253 = vsel %vm358, %v1179, %v1153
      %v1254 = vsel %vm358, %v800, %v1219
      %v1255 = vsel %vm358, %v1180, %v1154
      %v1256 = vsel %vm358, %v801, %v1220
      %v1257 = vsel %vm358, %v1181, %v1155
      %v1258 = vsel %vm358, %v802, %v1221
      %v1259 = vsel %vm358, %v1182, %v1156
      %v1260 = vsel %vm358, %v803, %v1222
      %v1261 = vsel %vm358, %v1183, %v1157
      %1262 = vst [vmem:[#allocation2] sm:$0xff] %v1236
      %1263 = vst [vmem:[#allocation2 + $0x8] sm:$0xff] %v1237
      %1264 = vst [vmem:[#allocation2 + $0x10] sm:$0xff] %v1238
      %1265 = vst [vmem:[#allocation2 + $0x18] sm:$0xff] %v1239
      %1266 = vst [vmem:[#allocation2 + $0x20] sm:$0xff] %v1240
      %1267 = vst [vmem:[#allocation2 + $0x28] sm:$0xff] %v1241
      %1268 = vst [vmem:[#allocation2 + $0x30] sm:$0xff] %v1242
      %1269 = vst [vmem:[#allocation2 + $0x38] sm:$0xff] %v1243
      %1270 = vst [vmem:[#allocation2 + $0x40] sm:$0xff] %v1244
      %1271 = vst [vmem:[#allocation2 + $0x48] sm:$0xff] %v1245
      %1272 = vst [vmem:[#allocation2 + $0x50] sm:$0xff] %v1246
      %1273 = vst [vmem:[#allocation2 + $0x58] sm:$0xff] %v1247
      %1274 = vst [vmem:[#allocation2 + $0x60] sm:$0xff] %v1248
      %1275 = vst [vmem:[#allocation2 + $0x68] sm:$0xff] %v1249
      %1276 = vst [vmem:[#allocation2 + $0x70] sm:$0xff] %v1250
      %1277 = vst [vmem:[#allocation2 + $0x78] sm:$0xff] %v1251
      %1278 = vst [vmem:[#allocation2 + $0x80] sm:$0xff] %v1252
      %1279 = vst [vmem:[#allocation2 + $0x88] sm:$0xff] %v1253
      %1280 = vst [vmem:[#allocation2 + $0x90] sm:$0xff] %v1254
      %1281 = vst [vmem:[#allocation2 + $0x98] sm:$0xff] %v1255
      %1282 = vst [vmem:[#allocation2 + $0xa0] sm:$0xff] %v1256
      %1283 = vst [vmem:[#allocation2 + $0xa8] sm:$0xff] %v1257
      %1284 = vst [vmem:[#allocation2 + $0xb0] sm:$0xff] %v1258
      %1285 = vst [vmem:[#allocation2 + $0xb8] sm:$0xff] %v1259
      %1286 = vst [vmem:[#allocation2 + $0xc0] sm:$0xff] %v1260
      %vm1287 = vcmask 326656
      %1288 = vst.msk [vmem:[#allocation2 + $0xc8] sm:$0xff] %vm1287, %v1261
      %v1289 = vld [vmem:[#allocation2] sm:$0xff]
      %v1290 = vld [vmem:[#allocation2 + $0x8] sm:$0xff]
      %v1291 = vld [vmem:[#allocation2 + $0x10] sm:$0xff]
      %v1292 = vld [vmem:[#allocation2 + $0x18] sm:$0xff]
      %v1293 = vld [vmem:[#allocation2 + $0x20] sm:$0xff]
      %v1294 = vld [vmem:[#allocation2 + $0x28] sm:$0xff]
      %v1295 = vld [vmem:[#allocation2 + $0x30] sm:$0xff]
      %v1296 = vld [vmem:[#allocation2 + $0x38] sm:$0xff]
      %v1297 = vld [vmem:[#allocation2 + $0x40] sm:$0xff]
      %v1298 = vld [vmem:[#allocation2 + $0x48] sm:$0xff]
      %v1299 = vld [vmem:[#allocation2 + $0x50] sm:$0xff]
      %v1300 = vld [vmem:[#allocation2 + $0x58] sm:$0xff]
      %v1301 = vld [vmem:[#allocation2 + $0x60] sm:$0xff]
      %v1302 = vld [vmem:[#allocation2 + $0x68] sm:$0xff]
      %v1303 = vld [vmem:[#allocation2 + $0x70] sm:$0xff]
      %v1304 = vld [vmem:[#allocation2 + $0x78] sm:$0xff]
      %v1305 = vld [vmem:[#allocation2 + $0x80] sm:$0xff]
      %v1306 = vld [vmem:[#allocation2 + $0x88] sm:$0xff]
      %v1307 = vld [vmem:[#allocation2 + $0x90] sm:$0xff]
      %v1308 = vld [vmem:[#allocation2 + $0x98] sm:$0xff]
      %v1309 = vld [vmem:[#allocation2 + $0xa0] sm:$0xff]
      %v1310 = vld [vmem:[#allocation2 + $0xa8] sm:$0xff]
      %v1311 = vld [vmem:[#allocation2 + $0xb0] sm:$0xff]
      %v1312 = vld [vmem:[#allocation2 + $0xb8] sm:$0xff]
      %v1313 = vld [vmem:[#allocation2 + $0xc0] sm:$0xff]
      %v1314 = vld [vmem:[#allocation2 + $0xc8] sm:$0xff]
      %1335 = vrot.lane.b32.xlu0 %v1289, 127
      %v1336 = vpop.permute.xlu0 %1335
      %1337 = vrot.lane.b32.xlu0 %v1290, 127
      %v1338 = vpop.permute.xlu0 %1337
      %1339 = vrot.lane.b32.xlu0 %v1291, 127
      %v1340 = vpop.permute.xlu0 %1339
      %1341 = vrot.lane.b32.xlu0 %v1292, 127
      %v1342 = vpop.permute.xlu0 %1341
      %1343 = vrot.lane.b32.xlu0 %v1293, 127
      %v1344 = vpop.permute.xlu0 %1343
      %1345 = vrot.lane.b32.xlu0 %v1294, 127
      %v1346 = vpop.permute.xlu0 %1345
      %1347 = vrot.lane.b32.xlu0 %v1295, 127
      %v1348 = vpop.permute.xlu0 %1347
      %1349 = vrot.lane.b32.xlu0 %v1296, 127
      %v1350 = vpop.permute.xlu0 %1349
      %1351 = vrot.lane.b32.xlu0 %v1297, 127
      %v1352 = vpop.permute.xlu0 %1351
      %1353 = vrot.lane.b32.xlu0 %v1298, 127
      %v1354 = vpop.permute.xlu0 %1353
      %1355 = vrot.lane.b32.xlu0 %v1299, 127
      %v1356 = vpop.permute.xlu0 %1355
      %1357 = vrot.lane.b32.xlu0 %v1300, 127
      %v1358 = vpop.permute.xlu0 %1357
      %1359 = vrot.lane.b32.xlu0 %v1301, 127
      %v1360 = vpop.permute.xlu0 %1359
      %1361 = vrot.lane.b32.xlu0 %v1302, 127
      %v1362 = vpop.permute.xlu0 %1361
      %1363 = vrot.lane.b32.xlu0 %v1303, 127
      %v1364 = vpop.permute.xlu0 %1363
      %1365 = vrot.lane.b32.xlu0 %v1304, 127
      %v1366 = vpop.permute.xlu0 %1365
      %1367 = vrot.lane.b32.xlu0 %v1305, 127
      %v1368 = vpop.permute.xlu0 %1367
      %1369 = vrot.lane.b32.xlu0 %v1306, 127
      %v1370 = vpop.permute.xlu0 %1369
      %1371 = vrot.lane.b32.xlu0 %v1307, 127
      %v1372 = vpop.permute.xlu0 %1371
      %1373 = vrot.lane.b32.xlu0 %v1308, 127
      %v1374 = vpop.permute.xlu0 %1373
      %vm1375 = vcmask 1039360
      %v1376 = vsel %vm1375, %v1336, %v1338
      %v1377 = vsel %vm1375, %v1338, %v1340
      %v1378 = vsel %vm1375, %v1340, %v1342
      %v1379 = vsel %vm1375, %v1342, %v1344
      %v1380 = vsel %vm1375, %v1344, %v1346
      %v1381 = vsel %vm1375, %v1346, %v1348
      %v1382 = vsel %vm1375, %v1348, %v1350
      %v1383 = vsel %vm1375, %v1350, %v1352
      %v1384 = vsel %vm1375, %v1352, %v1354
      %v1385 = vsel %vm1375, %v1354, %v1356
      %v1386 = vsel %vm1375, %v1356, %v1358
      %v1387 = vsel %vm1375, %v1358, %v1360
      %v1388 = vsel %vm1375, %v1360, %v1362
      %v1389 = vsel %vm1375, %v1362, %v1364
      %v1390 = vsel %vm1375, %v1364, %v1366
      %v1391 = vsel %vm1375, %v1366, %v1368
      %v1392 = vsel %vm1375, %v1368, %v1370
      %v1393 = vsel %vm1375, %v1370, %v1372
      %v1394 = vsel %vm1375, %v1372, %v1374
      %1415 = vrot.lane.b32.xlu0 %v1289, 126
      %v1416 = vpop.permute.xlu0 %1415
      %1417 = vrot.lane.b32.xlu0 %v1290, 126
      %v1418 = vpop.permute.xlu0 %1417
      %1419 = vrot.lane.b32.xlu0 %v1291, 126
      %v1420 = vpop.permute.xlu0 %1419
      %1421 = vrot.lane.b32.xlu0 %v1292, 126
      %v1422 = vpop.permute.xlu0 %1421
      %1423 = vrot.lane.b32.xlu0 %v1293, 126
      %v1424 = vpop.permute.xlu0 %1423
      %1425 = vrot.lane.b32.xlu0 %v1294, 126
      %v1426 = vpop.permute.xlu0 %1425
      %1427 = vrot.lane.b32.xlu0 %v1295, 126
      %v1428 = vpop.permute.xlu0 %1427
      %1429 = vrot.lane.b32.xlu0 %v1296, 126
      %v1430 = vpop.permute.xlu0 %1429
      %1431 = vrot.lane.b32.xlu0 %v1297, 126
      %v1432 = vpop.permute.xlu0 %1431
      %1433 = vrot.lane.b32.xlu0 %v1298, 126
      %v1434 = vpop.permute.xlu0 %1433
      %1435 = vrot.lane.b32.xlu0 %v1299, 126
      %v1436 = vpop.permute.xlu0 %1435
      %1437 = vrot.lane.b32.xlu0 %v1300, 126
      %v1438 = vpop.permute.xlu0 %1437
      %1439 = vrot.lane.b32.xlu0 %v1301, 126
      %v1440 = vpop.permute.xlu0 %1439
      %1441 = vrot.lane.b32.xlu0 %v1302, 126
      %v1442 = vpop.permute.xlu0 %1441
      %1443 = vrot.lane.b32.xlu0 %v1303, 126
      %v1444 = vpop.permute.xlu0 %1443
      %1445 = vrot.lane.b32.xlu0 %v1304, 126
      %v1446 = vpop.permute.xlu0 %1445
      %1447 = vrot.lane.b32.xlu0 %v1305, 126
      %v1448 = vpop.permute.xlu0 %1447
      %1449 = vrot.lane.b32.xlu0 %v1306, 126
      %v1450 = vpop.permute.xlu0 %1449
      %1451 = vrot.lane.b32.xlu0 %v1307, 126
      %v1452 = vpop.permute.xlu0 %1451
      %1453 = vrot.lane.b32.xlu0 %v1308, 126
      %v1454 = vpop.permute.xlu0 %1453
      %vm1455 = vcmask 1031168
      %v1456 = vsel %vm1455, %v1416, %v1418
      %v1457 = vsel %vm1455, %v1418, %v1420
      %v1458 = vsel %vm1455, %v1420, %v1422
      %v1459 = vsel %vm1455, %v1422, %v1424
      %v1460 = vsel %vm1455, %v1424, %v1426
      %v1461 = vsel %vm1455, %v1426, %v1428
      %v1462 = vsel %vm1455, %v1428, %v1430
      %v1463 = vsel %vm1455, %v1430, %v1432
      %v1464 = vsel %vm1455, %v1432, %v1434
      %v1465 = vsel %vm1455, %v1434, %v1436
      %v1466 = vsel %vm1455, %v1436, %v1438
      %v1467 = vsel %vm1455, %v1438, %v1440
      %v1468 = vsel %vm1455, %v1440, %v1442
      %v1469 = vsel %vm1455, %v1442, %v1444
      %v1470 = vsel %vm1455, %v1444, %v1446
      %v1471 = vsel %vm1455, %v1446, %v1448
      %v1472 = vsel %vm1455, %v1448, %v1450
      %v1473 = vsel %vm1455, %v1450, %v1452
      %v1474 = vsel %vm1455, %v1452, %v1454
      %1496 = vrot.lane.b32.xlu0 %v1289, 110
      %v1497 = vpop.permute.xlu0 %1496
      %1498 = vrot.lane.b32.xlu0 %v1290, 110
      %v1499 = vpop.permute.xlu0 %1498
      %1500 = vrot.lane.b32.xlu0 %v1291, 110
      %v1501 = vpop.permute.xlu0 %1500
      %1502 = vrot.lane.b32.xlu0 %v1292, 110
      %v1503 = vpop.permute.xlu0 %1502
      %1504 = vrot.lane.b32.xlu0 %v1293, 110
      %v1505 = vpop.permute.xlu0 %1504
      %1506 = vrot.lane.b32.xlu0 %v1294, 110
      %v1507 = vpop.permute.xlu0 %1506
      %1508 = vrot.lane.b32.xlu0 %v1295, 110
      %v1509 = vpop.permute.xlu0 %1508
      %1510 = vrot.lane.b32.xlu0 %v1296, 110
      %v1511 = vpop.permute.xlu0 %1510
      %1512 = vrot.lane.b32.xlu0 %v1297, 110
      %v1513 = vpop.permute.xlu0 %1512
      %1514 = vrot.lane.b32.xlu0 %v1298, 110
      %v1515 = vpop.permute.xlu0 %1514
      %1516 = vrot.lane.b32.xlu0 %v1299, 110
      %v1517 = vpop.permute.xlu0 %1516
      %1518 = vrot.lane.b32.xlu0 %v1300, 110
      %v1519 = vpop.permute.xlu0 %1518
      %1520 = vrot.lane.b32.xlu0 %v1301, 110
      %v1521 = vpop.permute.xlu0 %1520
      %1522 = vrot.lane.b32.xlu0 %v1302, 110
      %v1523 = vpop.permute.xlu0 %1522
      %1524 = vrot.lane.b32.xlu0 %v1303, 110
      %v1525 = vpop.permute.xlu0 %1524
      %1526 = vrot.lane.b32.xlu0 %v1304, 110
      %v1527 = vpop.permute.xlu0 %1526
      %1528 = vrot.lane.b32.xlu0 %v1305, 110
      %v1529 = vpop.permute.xlu0 %1528
      %1530 = vrot.lane.b32.xlu0 %v1306, 110
      %v1531 = vpop.permute.xlu0 %1530
      %1532 = vrot.lane.b32.xlu0 %v1307, 110
      %v1533 = vpop.permute.xlu0 %1532
      %1534 = vrot.lane.b32.xlu0 %v1308, 110
      %v1535 = vpop.permute.xlu0 %1534
      %1536 = vrot.lane.b32.xlu0 %v1309, 110
      %v1537 = vpop.permute.xlu0 %1536
      %vm1538 = vcmask 900096
      %v1539 = vsel %vm1538, %v1497, %v1499
      %v1540 = vsel %vm1538, %v1499, %v1501
      %v1541 = vsel %vm1538, %v1501, %v1503
      %v1542 = vsel %vm1538, %v1503, %v1505
      %v1543 = vsel %vm1538, %v1505, %v1507
      %v1544 = vsel %vm1538, %v1507, %v1509
      %v1545 = vsel %vm1538, %v1509, %v1511
      %v1546 = vsel %vm1538, %v1511, %v1513
      %v1547 = vsel %vm1538, %v1513, %v1515
      %v1548 = vsel %vm1538, %v1515, %v1517
      %v1549 = vsel %vm1538, %v1517, %v1519
      %v1550 = vsel %vm1538, %v1519, %v1521
      %v1551 = vsel %vm1538, %v1521, %v1523
      %v1552 = vsel %vm1538, %v1523, %v1525
      %v1553 = vsel %vm1538, %v1525, %v1527
      %v1554 = vsel %vm1538, %v1527, %v1529
      %v1555 = vsel %vm1538, %v1529, %v1531
      %v1556 = vsel %vm1538, %v1531, %v1533
      %v1557 = vsel %vm1538, %v1533, %v1535
      %v1558 = vsel %vm1538, %v1535, %v1537
      %1579 = vrot.lane.b32.xlu0 %v1289, 109
      %v1580 = vpop.permute.xlu0 %1579
      %1581 = vrot.lane.b32.xlu0 %v1290, 109
      %v1582 = vpop.permute.xlu0 %1581
      %1583 = vrot.lane.b32.xlu0 %v1291, 109
      %v1584 = vpop.permute.xlu0 %1583
      %1585 = vrot.lane.b32.xlu0 %v1292, 109
      %v1586 = vpop.permute.xlu0 %1585
      %1587 = vrot.lane.b32.xlu0 %v1293, 109
      %v1588 = vpop.permute.xlu0 %1587
      %1589 = vrot.lane.b32.xlu0 %v1294, 109
      %v1590 = vpop.permute.xlu0 %1589
      %1591 = vrot.lane.b32.xlu0 %v1295, 109
      %v1592 = vpop.permute.xlu0 %1591
      %1593 = vrot.lane.b32.xlu0 %v1296, 109
      %v1594 = vpop.permute.xlu0 %1593
      %1595 = vrot.lane.b32.xlu0 %v1297, 109
      %v1596 = vpop.permute.xlu0 %1595
      %1597 = vrot.lane.b32.xlu0 %v1298, 109
      %v1598 = vpop.permute.xlu0 %1597
      %1599 = vrot.lane.b32.xlu0 %v1299, 109
      %v1600 = vpop.permute.xlu0 %1599
      %1601 = vrot.lane.b32.xlu0 %v1300, 109
      %v1602 = vpop.permute.xlu0 %1601
      %1603 = vrot.lane.b32.xlu0 %v1301, 109
      %v1604 = vpop.permute.xlu0 %1603
      %1605 = vrot.lane.b32.xlu0 %v1302, 109
      %v1606 = vpop.permute.xlu0 %1605
      %1607 = vrot.lane.b32.xlu0 %v1303, 109
      %v1608 = vpop.permute.xlu0 %1607
      %1609 = vrot.lane.b32.xlu0 %v1304, 109
      %v1610 = vpop.permute.xlu0 %1609
      %1611 = vrot.lane.b32.xlu0 %v1305, 109
      %v1612 = vpop.permute.xlu0 %1611
      %1613 = vrot.lane.b32.xlu0 %v1306, 109
      %v1614 = vpop.permute.xlu0 %1613
      %1615 = vrot.lane.b32.xlu0 %v1307, 109
      %v1616 = vpop.permute.xlu0 %1615
      %1617 = vrot.lane.b32.xlu0 %v1308, 109
      %v1618 = vpop.permute.xlu0 %1617
      %1619 = vrot.lane.b32.xlu0 %v1309, 109
      %v1620 = vpop.permute.xlu0 %1619
      %vm1621 = vcmask 891904
      %v1622 = vsel %vm1621, %v1580, %v1582
      %v1623 = vsel %vm1621, %v1582, %v1584
      %v1624 = vsel %vm1621, %v1584, %v1586
      %v1625 = vsel %vm1621, %v1586, %v1588
      %v1626 = vsel %vm1621, %v1588, %v1590
      %v1627 = vsel %vm1621, %v1590, %v1592
      %v1628 = vsel %vm1621, %v1592, %v1594
      %v1629 = vsel %vm1621, %v1594, %v1596
      %v1630 = vsel %vm1621, %v1596, %v1598
      %v1631 = vsel %vm1621, %v1598, %v1600
      %v1632 = vsel %vm1621, %v1600, %v1602
      %v1633 = vsel %vm1621, %v1602, %v1604
      %v1634 = vsel %vm1621, %v1604, %v1606
      %v1635 = vsel %vm1621, %v1606, %v1608
      %v1636 = vsel %vm1621, %v1608, %v1610
      %v1637 = vsel %vm1621, %v1610, %v1612
      %v1638 = vsel %vm1621, %v1612, %v1614
      %v1639 = vsel %vm1621, %v1614, %v1616
      %v1640 = vsel %vm1621, %v1616, %v1618
      %v1641 = vsel %vm1621, %v1618, %v1620
      %1662 = vrot.lane.b32.xlu0 %v1289, 108
      %v1663 = vpop.permute.xlu0 %1662
      %1664 = vrot.lane.b32.xlu0 %v1290, 108
      %v1665 = vpop.permute.xlu0 %1664
      %1666 = vrot.lane.b32.xlu0 %v1291, 108
      %v1667 = vpop.permute.xlu0 %1666
      %1668 = vrot.lane.b32.xlu0 %v1292, 108
      %v1669 = vpop.permute.xlu0 %1668
      %1670 = vrot.lane.b32.xlu0 %v1293, 108
      %v1671 = vpop.permute.xlu0 %1670
      %1672 = vrot.lane.b32.xlu0 %v1294, 108
      %v1673 = vpop.permute.xlu0 %1672
      %1674 = vrot.lane.b32.xlu0 %v1295, 108
      %v1675 = vpop.permute.xlu0 %1674
      %1676 = vrot.lane.b32.xlu0 %v1296, 108
      %v1677 = vpop.permute.xlu0 %1676
      %1678 = vrot.lane.b32.xlu0 %v1297, 108
      %v1679 = vpop.permute.xlu0 %1678
      %1680 = vrot.lane.b32.xlu0 %v1298, 108
      %v1681 = vpop.permute.xlu0 %1680
      %1682 = vrot.lane.b32.xlu0 %v1299, 108
      %v1683 = vpop.permute.xlu0 %1682
      %1684 = vrot.lane.b32.xlu0 %v1300, 108
      %v1685 = vpop.permute.xlu0 %1684
      %1686 = vrot.lane.b32.xlu0 %v1301, 108
      %v1687 = vpop.permute.xlu0 %1686
      %1688 = vrot.lane.b32.xlu0 %v1302, 108
      %v1689 = vpop.permute.xlu0 %1688
      %1690 = vrot.lane.b32.xlu0 %v1303, 108
      %v1691 = vpop.permute.xlu0 %1690
      %1692 = vrot.lane.b32.xlu0 %v1304, 108
      %v1693 = vpop.permute.xlu0 %1692
      %1694 = vrot.lane.b32.xlu0 %v1305, 108
      %v1695 = vpop.permute.xlu0 %1694
      %1696 = vrot.lane.b32.xlu0 %v1306, 108
      %v1697 = vpop.permute.xlu0 %1696
      %1698 = vrot.lane.b32.xlu0 %v1307, 108
      %v1699 = vpop.permute.xlu0 %1698
      %1700 = vrot.lane.b32.xlu0 %v1308, 108
      %v1701 = vpop.permute.xlu0 %1700
      %1702 = vrot.lane.b32.xlu0 %v1309, 108
      %v1703 = vpop.permute.xlu0 %1702
      %vm1704 = vcmask 883712
      %v1705 = vsel %vm1704, %v1663, %v1665
      %v1706 = vsel %vm1704, %v1665, %v1667
      %v1707 = vsel %vm1704, %v1667, %v1669
      %v1708 = vsel %vm1704, %v1669, %v1671
      %v1709 = vsel %vm1704, %v1671, %v1673
      %v1710 = vsel %vm1704, %v1673, %v1675
      %v1711 = vsel %vm1704, %v1675, %v1677
      %v1712 = vsel %vm1704, %v1677, %v1679
      %v1713 = vsel %vm1704, %v1679, %v1681
      %v1714 = vsel %vm1704, %v1681, %v1683
      %v1715 = vsel %vm1704, %v1683, %v1685
      %v1716 = vsel %vm1704, %v1685, %v1687
      %v1717 = vsel %vm1704, %v1687, %v1689
      %v1718 = vsel %vm1704, %v1689, %v1691
      %v1719 = vsel %vm1704, %v1691, %v1693
      %v1720 = vsel %vm1704, %v1693, %v1695
      %v1721 = vsel %vm1704, %v1695, %v1697
      %v1722 = vsel %vm1704, %v1697, %v1699
      %v1723 = vsel %vm1704, %v1699, %v1701
      %v1724 = vsel %vm1704, %v1701, %v1703
      %1745 = vrot.lane.b32.xlu0 %v1289, 92
      %v1746 = vpop.permute.xlu0 %1745
      %1747 = vrot.lane.b32.xlu0 %v1290, 92
      %v1748 = vpop.permute.xlu0 %1747
      %1749 = vrot.lane.b32.xlu0 %v1291, 92
      %v1750 = vpop.permute.xlu0 %1749
      %1751 = vrot.lane.b32.xlu0 %v1292, 92
      %v1752 = vpop.permute.xlu0 %1751
      %1753 = vrot.lane.b32.xlu0 %v1293, 92
      %v1754 = vpop.permute.xlu0 %1753
      %1755 = vrot.lane.b32.xlu0 %v1294, 92
      %v1756 = vpop.permute.xlu0 %1755
      %1757 = vrot.lane.b32.xlu0 %v1295, 92
      %v1758 = vpop.permute.xlu0 %1757
      %1759 = vrot.lane.b32.xlu0 %v1296, 92
      %v1760 = vpop.permute.xlu0 %1759
      %1761 = vrot.lane.b32.xlu0 %v1297, 92
      %v1762 = vpop.permute.xlu0 %1761
      %1763 = vrot.lane.b32.xlu0 %v1298, 92
      %v1764 = vpop.permute.xlu0 %1763
      %1765 = vrot.lane.b32.xlu0 %v1299, 92
      %v1766 = vpop.permute.xlu0 %1765
      %1767 = vrot.lane.b32.xlu0 %v1300, 92
      %v1768 = vpop.permute.xlu0 %1767
      %1769 = vrot.lane.b32.xlu0 %v1301, 92
      %v1770 = vpop.permute.xlu0 %1769
      %1771 = vrot.lane.b32.xlu0 %v1302, 92
      %v1772 = vpop.permute.xlu0 %1771
      %1773 = vrot.lane.b32.xlu0 %v1303, 92
      %v1774 = vpop.permute.xlu0 %1773
      %1775 = vrot.lane.b32.xlu0 %v1304, 92
      %v1776 = vpop.permute.xlu0 %1775
      %1777 = vrot.lane.b32.xlu0 %v1305, 92
      %v1778 = vpop.permute.xlu0 %1777
      %1779 = vrot.lane.b32.xlu0 %v1306, 92
      %v1780 = vpop.permute.xlu0 %1779
      %1781 = vrot.lane.b32.xlu0 %v1307, 92
      %v1782 = vpop.permute.xlu0 %1781
      %1783 = vrot.lane.b32.xlu0 %v1308, 92
      %v1784 = vpop.permute.xlu0 %1783
      %1785 = vrot.lane.b32.xlu0 %v1309, 92
      %v1786 = vpop.permute.xlu0 %1785
      %vm1787 = vcmask 752640
      %v1788 = vsel %vm1787, %v1746, %v1748
      %v1789 = vsel %vm1787, %v1748, %v1750
      %v1790 = vsel %vm1787, %v1750, %v1752
      %v1791 = vsel %vm1787, %v1752, %v1754
      %v1792 = vsel %vm1787, %v1754, %v1756
      %v1793 = vsel %vm1787, %v1756, %v1758
      %v1794 = vsel %vm1787, %v1758, %v1760
      %v1795 = vsel %vm1787, %v1760, %v1762
      %v1796 = vsel %vm1787, %v1762, %v1764
      %v1797 = vsel %vm1787, %v1764, %v1766
      %v1798 = vsel %vm1787, %v1766, %v1768
      %v1799 = vsel %vm1787, %v1768, %v1770
      %v1800 = vsel %vm1787, %v1770, %v1772
      %v1801 = vsel %vm1787, %v1772, %v1774
      %v1802 = vsel %vm1787, %v1774, %v1776
      %v1803 = vsel %vm1787, %v1776, %v1778
      %v1804 = vsel %vm1787, %v1778, %v1780
      %v1805 = vsel %vm1787, %v1780, %v1782
      %v1806 = vsel %vm1787, %v1782, %v1784
      %v1807 = vsel %vm1787, %v1784, %v1786
      %1828 = vrot.lane.b32.xlu0 %v1289, 91
      %v1829 = vpop.permute.xlu0 %1828
      %1830 = vrot.lane.b32.xlu0 %v1290, 91
      %v1831 = vpop.permute.xlu0 %1830
      %1832 = vrot.lane.b32.xlu0 %v1291, 91
      %v1833 = vpop.permute.xlu0 %1832
      %1834 = vrot.lane.b32.xlu0 %v1292, 91
      %v1835 = vpop.permute.xlu0 %1834
      %1836 = vrot.lane.b32.xlu0 %v1293, 91
      %v1837 = vpop.permute.xlu0 %1836
      %1838 = vrot.lane.b32.xlu0 %v1294, 91
      %v1839 = vpop.permute.xlu0 %1838
      %1840 = vrot.lane.b32.xlu0 %v1295, 91
      %v1841 = vpop.permute.xlu0 %1840
      %1842 = vrot.lane.b32.xlu0 %v1296, 91
      %v1843 = vpop.permute.xlu0 %1842
      %1844 = vrot.lane.b32.xlu0 %v1297, 91
      %v1845 = vpop.permute.xlu0 %1844
      %1846 = vrot.lane.b32.xlu0 %v1298, 91
      %v1847 = vpop.permute.xlu0 %1846
      %1848 = vrot.lane.b32.xlu0 %v1299, 91
      %v1849 = vpop.permute.xlu0 %1848
      %1850 = vrot.lane.b32.xlu0 %v1300, 91
      %v1851 = vpop.permute.xlu0 %1850
      %1852 = vrot.lane.b32.xlu0 %v1301, 91
      %v1853 = vpop.permute.xlu0 %1852
      %1854 = vrot.lane.b32.xlu0 %v1302, 91
      %v1855 = vpop.permute.xlu0 %1854
      %1856 = vrot.lane.b32.xlu0 %v1303, 91
      %v1857 = vpop.permute.xlu0 %1856
      %1858 = vrot.lane.b32.xlu0 %v1304, 91
      %v1859 = vpop.permute.xlu0 %1858
      %1860 = vrot.lane.b32.xlu0 %v1305, 91
      %v1861 = vpop.permute.xlu0 %1860
      %1862 = vrot.lane.b32.xlu0 %v1306, 91
      %v1863 = vpop.permute.xlu0 %1862
      %1864 = vrot.lane.b32.xlu0 %v1307, 91
      %v1865 = vpop.permute.xlu0 %1864
      %1866 = vrot.lane.b32.xlu0 %v1308, 91
      %v1867 = vpop.permute.xlu0 %1866
      %1868 = vrot.lane.b32.xlu0 %v1309, 91
      %v1869 = vpop.permute.xlu0 %1868
      %vm1870 = vcmask 744448
      %v1871 = vsel %vm1870, %v1829, %v1831
      %v1872 = vsel %vm1870, %v1831, %v1833
      %v1873 = vsel %vm1870, %v1833, %v1835
      %v1874 = vsel %vm1870, %v1835, %v1837
      %v1875 = vsel %vm1870, %v1837, %v1839
      %v1876 = vsel %vm1870, %v1839, %v1841
      %v1877 = vsel %vm1870, %v1841, %v1843
      %v1878 = vsel %vm1870, %v1843, %v1845
      %v1879 = vsel %vm1870, %v1845, %v1847
      %v1880 = vsel %vm1870, %v1847, %v1849
      %v1881 = vsel %vm1870, %v1849, %v1851
      %v1882 = vsel %vm1870, %v1851, %v1853
      %v1883 = vsel %vm1870, %v1853, %v1855
      %v1884 = vsel %vm1870, %v1855, %v1857
      %v1885 = vsel %vm1870, %v1857, %v1859
      %v1886 = vsel %vm1870, %v1859, %v1861
      %v1887 = vsel %vm1870, %v1861, %v1863
      %v1888 = vsel %vm1870, %v1863, %v1865
      %v1889 = vsel %vm1870, %v1865, %v1867
      %v1890 = vsel %vm1870, %v1867, %v1869
      %1911 = vrot.lane.b32.xlu0 %v1289, 90
      %v1912 = vpop.permute.xlu0 %1911
      %1913 = vrot.lane.b32.xlu0 %v1290, 90
      %v1914 = vpop.permute.xlu0 %1913
      %1915 = vrot.lane.b32.xlu0 %v1291, 90
      %v1916 = vpop.permute.xlu0 %1915
      %1917 = vrot.lane.b32.xlu0 %v1292, 90
      %v1918 = vpop.permute.xlu0 %1917
      %1919 = vrot.lane.b32.xlu0 %v1293, 90
      %v1920 = vpop.permute.xlu0 %1919
      %1921 = vrot.lane.b32.xlu0 %v1294, 90
      %v1922 = vpop.permute.xlu0 %1921
      %1923 = vrot.lane.b32.xlu0 %v1295, 90
      %v1924 = vpop.permute.xlu0 %1923
      %1925 = vrot.lane.b32.xlu0 %v1296, 90
      %v1926 = vpop.permute.xlu0 %1925
      %1927 = vrot.lane.b32.xlu0 %v1297, 90
      %v1928 = vpop.permute.xlu0 %1927
      %1929 = vrot.lane.b32.xlu0 %v1298, 90
      %v1930 = vpop.permute.xlu0 %1929
      %1931 = vrot.lane.b32.xlu0 %v1299, 90
      %v1932 = vpop.permute.xlu0 %1931
      %1933 = vrot.lane.b32.xlu0 %v1300, 90
      %v1934 = vpop.permute.xlu0 %1933
      %1935 = vrot.lane.b32.xlu0 %v1301, 90
      %v1936 = vpop.permute.xlu0 %1935
      %1937 = vrot.lane.b32.xlu0 %v1302, 90
      %v1938 = vpop.permute.xlu0 %1937
      %1939 = vrot.lane.b32.xlu0 %v1303, 90
      %v1940 = vpop.permute.xlu0 %1939
      %1941 = vrot.lane.b32.xlu0 %v1304, 90
      %v1942 = vpop.permute.xlu0 %1941
      %1943 = vrot.lane.b32.xlu0 %v1305, 90
      %v1944 = vpop.permute.xlu0 %1943
      %1945 = vrot.lane.b32.xlu0 %v1306, 90
      %v1946 = vpop.permute.xlu0 %1945
      %1947 = vrot.lane.b32.xlu0 %v1307, 90
      %v1948 = vpop.permute.xlu0 %1947
      %1949 = vrot.lane.b32.xlu0 %v1308, 90
      %v1950 = vpop.permute.xlu0 %1949
      %1951 = vrot.lane.b32.xlu0 %v1309, 90
      %v1952 = vpop.permute.xlu0 %1951
      %vm1953 = vcmask 736256
      %v1954 = vsel %vm1953, %v1912, %v1914
      %v1955 = vsel %vm1953, %v1914, %v1916
      %v1956 = vsel %vm1953, %v1916, %v1918
      %v1957 = vsel %vm1953, %v1918, %v1920
      %v1958 = vsel %vm1953, %v1920, %v1922
      %v1959 = vsel %vm1953, %v1922, %v1924
      %v1960 = vsel %vm1953, %v1924, %v1926
      %v1961 = vsel %vm1953, %v1926, %v1928
      %v1962 = vsel %vm1953, %v1928, %v1930
      %v1963 = vsel %vm1953, %v1930, %v1932
      %v1964 = vsel %vm1953, %v1932, %v1934
      %v1965 = vsel %vm1953, %v1934, %v1936
      %v1966 = vsel %vm1953, %v1936, %v1938
      %v1967 = vsel %vm1953, %v1938, %v1940
      %v1968 = vsel %vm1953, %v1940, %v1942
      %v1969 = vsel %vm1953, %v1942, %v1944
      %v1970 = vsel %vm1953, %v1944, %v1946
      %v1971 = vsel %vm1953, %v1946, %v1948
      %v1972 = vsel %vm1953, %v1948, %v1950
      %v1973 = vsel %vm1953, %v1950, %v1952
      %1996 = vrot.lane.b32.xlu0 %v1291, 60
      %v1997 = vpop.permute.xlu0 %1996
      %1998 = vrot.lane.b32.xlu0 %v1292, 60
      %v1999 = vpop.permute.xlu0 %1998
      %2000 = vrot.lane.b32.xlu0 %v1293, 60
      %v2001 = vpop.permute.xlu0 %2000
      %2002 = vrot.lane.b32.xlu0 %v1294, 60
      %v2003 = vpop.permute.xlu0 %2002
      %2004 = vrot.lane.b32.xlu0 %v1295, 60
      %v2005 = vpop.permute.xlu0 %2004
      %2006 = vrot.lane.b32.xlu0 %v1296, 60
      %v2007 = vpop.permute.xlu0 %2006
      %2008 = vrot.lane.b32.xlu0 %v1297, 60
      %v2009 = vpop.permute.xlu0 %2008
      %2010 = vrot.lane.b32.xlu0 %v1298, 60
      %v2011 = vpop.permute.xlu0 %2010
      %2012 = vrot.lane.b32.xlu0 %v1299, 60
      %v2013 = vpop.permute.xlu0 %2012
      %2014 = vrot.lane.b32.xlu0 %v1300, 60
      %v2015 = vpop.permute.xlu0 %2014
      %2016 = vrot.lane.b32.xlu0 %v1301, 60
      %v2017 = vpop.permute.xlu0 %2016
      %2018 = vrot.lane.b32.xlu0 %v1302, 60
      %v2019 = vpop.permute.xlu0 %2018
      %2020 = vrot.lane.b32.xlu0 %v1303, 60
      %v2021 = vpop.permute.xlu0 %2020
      %2022 = vrot.lane.b32.xlu0 %v1304, 60
      %v2023 = vpop.permute.xlu0 %2022
      %2024 = vrot.lane.b32.xlu0 %v1305, 60
      %v2025 = vpop.permute.xlu0 %2024
      %2026 = vrot.lane.b32.xlu0 %v1306, 60
      %v2027 = vpop.permute.xlu0 %2026
      %2028 = vrot.lane.b32.xlu0 %v1307, 60
      %v2029 = vpop.permute.xlu0 %2028
      %2030 = vrot.lane.b32.xlu0 %v1308, 60
      %v2031 = vpop.permute.xlu0 %2030
      %2032 = vrot.lane.b32.xlu0 %v1309, 60
      %v2033 = vpop.permute.xlu0 %2032
      %2034 = vrot.lane.b32.xlu0 %v1310, 60
      %v2035 = vpop.permute.xlu0 %2034
      %2036 = vrot.lane.b32.xlu0 %v1311, 60
      %v2037 = vpop.permute.xlu0 %2036
      %vm2038 = vcmask 490496
      %v2039 = vsel %vm2038, %v1997, %v1999
      %v2040 = vsel %vm2038, %v1999, %v2001
      %v2041 = vsel %vm2038, %v2001, %v2003
      %v2042 = vsel %vm2038, %v2003, %v2005
      %v2043 = vsel %vm2038, %v2005, %v2007
      %v2044 = vsel %vm2038, %v2007, %v2009
      %v2045 = vsel %vm2038, %v2009, %v2011
      %v2046 = vsel %vm2038, %v2011, %v2013
      %v2047 = vsel %vm2038, %v2013, %v2015
      %v2048 = vsel %vm2038, %v2015, %v2017
      %v2049 = vsel %vm2038, %v2017, %v2019
      %v2050 = vsel %vm2038, %v2019, %v2021
      %v2051 = vsel %vm2038, %v2021, %v2023
      %v2052 = vsel %vm2038, %v2023, %v2025
      %v2053 = vsel %vm2038, %v2025, %v2027
      %v2054 = vsel %vm2038, %v2027, %v2029
      %v2055 = vsel %vm2038, %v2029, %v2031
      %v2056 = vsel %vm2038, %v2031, %v2033
      %v2057 = vsel %vm2038, %v2033, %v2035
      %v2058 = vsel %vm2038, %v2035, %v2037
      %2079 = vrot.lane.b32.xlu0 %v1291, 59
      %v2080 = vpop.permute.xlu0 %2079
      %2081 = vrot.lane.b32.xlu0 %v1292, 59
      %v2082 = vpop.permute.xlu0 %2081
      %2083 = vrot.lane.b32.xlu0 %v1293, 59
      %v2084 = vpop.permute.xlu0 %2083
      %2085 = vrot.lane.b32.xlu0 %v1294, 59
      %v2086 = vpop.permute.xlu0 %2085
      %2087 = vrot.lane.b32.xlu0 %v1295, 59
      %v2088 = vpop.permute.xlu0 %2087
      %2089 = vrot.lane.b32.xlu0 %v1296, 59
      %v2090 = vpop.permute.xlu0 %2089
      %2091 = vrot.lane.b32.xlu0 %v1297, 59
      %v2092 = vpop.permute.xlu0 %2091
      %2093 = vrot.lane.b32.xlu0 %v1298, 59
      %v2094 = vpop.permute.xlu0 %2093
      %2095 = vrot.lane.b32.xlu0 %v1299, 59
      %v2096 = vpop.permute.xlu0 %2095
      %2097 = vrot.lane.b32.xlu0 %v1300, 59
      %v2098 = vpop.permute.xlu0 %2097
      %2099 = vrot.lane.b32.xlu0 %v1301, 59
      %v2100 = vpop.permute.xlu0 %2099
      %2101 = vrot.lane.b32.xlu0 %v1302, 59
      %v2102 = vpop.permute.xlu0 %2101
      %2103 = vrot.lane.b32.xlu0 %v1303, 59
      %v2104 = vpop.permute.xlu0 %2103
      %2105 = vrot.lane.b32.xlu0 %v1304, 59
      %v2106 = vpop.permute.xlu0 %2105
      %2107 = vrot.lane.b32.xlu0 %v1305, 59
      %v2108 = vpop.permute.xlu0 %2107
      %2109 = vrot.lane.b32.xlu0 %v1306, 59
      %v2110 = vpop.permute.xlu0 %2109
      %2111 = vrot.lane.b32.xlu0 %v1307, 59
      %v2112 = vpop.permute.xlu0 %2111
      %2113 = vrot.lane.b32.xlu0 %v1308, 59
      %v2114 = vpop.permute.xlu0 %2113
      %2115 = vrot.lane.b32.xlu0 %v1309, 59
      %v2116 = vpop.permute.xlu0 %2115
      %2117 = vrot.lane.b32.xlu0 %v1310, 59
      %v2118 = vpop.permute.xlu0 %2117
      %2119 = vrot.lane.b32.xlu0 %v1311, 59
      %v2120 = vpop.permute.xlu0 %2119
      %vm2121 = vcmask 482304
      %v2122 = vsel %vm2121, %v2080, %v2082
      %v2123 = vsel %vm2121, %v2082, %v2084
      %v2124 = vsel %vm2121, %v2084, %v2086
      %v2125 = vsel %vm2121, %v2086, %v2088
      %v2126 = vsel %vm2121, %v2088, %v2090
      %v2127 = vsel %vm2121, %v2090, %v2092
      %v2128 = vsel %vm2121, %v2092, %v2094
      %v2129 = vsel %vm2121, %v2094, %v2096
      %v2130 = vsel %vm2121, %v2096, %v2098
      %v2131 = vsel %vm2121, %v2098, %v2100
      %v2132 = vsel %vm2121, %v2100, %v2102
      %v2133 = vsel %vm2121, %v2102, %v2104
      %v2134 = vsel %vm2121, %v2104, %v2106
      %v2135 = vsel %vm2121, %v2106, %v2108
      %v2136 = vsel %vm2121, %v2108, %v2110
      %v2137 = vsel %vm2121, %v2110, %v2112
      %v2138 = vsel %vm2121, %v2112, %v2114
      %v2139 = vsel %vm2121, %v2114, %v2116
      %v2140 = vsel %vm2121, %v2116, %v2118
      %v2141 = vsel %vm2121, %v2118, %v2120
      %2162 = vrot.lane.b32.xlu0 %v1291, 58
      %v2163 = vpop.permute.xlu0 %2162
      %2164 = vrot.lane.b32.xlu0 %v1292, 58
      %v2165 = vpop.permute.xlu0 %2164
      %2166 = vrot.lane.b32.xlu0 %v1293, 58
      %v2167 = vpop.permute.xlu0 %2166
      %2168 = vrot.lane.b32.xlu0 %v1294, 58
      %v2169 = vpop.permute.xlu0 %2168
      %2170 = vrot.lane.b32.xlu0 %v1295, 58
      %v2171 = vpop.permute.xlu0 %2170
      %2172 = vrot.lane.b32.xlu0 %v1296, 58
      %v2173 = vpop.permute.xlu0 %2172
      %2174 = vrot.lane.b32.xlu0 %v1297, 58
      %v2175 = vpop.permute.xlu0 %2174
      %2176 = vrot.lane.b32.xlu0 %v1298, 58
      %v2177 = vpop.permute.xlu0 %2176
      %2178 = vrot.lane.b32.xlu0 %v1299, 58
      %v2179 = vpop.permute.xlu0 %2178
      %2180 = vrot.lane.b32.xlu0 %v1300, 58
      %v2181 = vpop.permute.xlu0 %2180
      %2182 = vrot.lane.b32.xlu0 %v1301, 58
      %v2183 = vpop.permute.xlu0 %2182
      %2184 = vrot.lane.b32.xlu0 %v1302, 58
      %v2185 = vpop.permute.xlu0 %2184
      %2186 = vrot.lane.b32.xlu0 %v1303, 58
      %v2187 = vpop.permute.xlu0 %2186
      %2188 = vrot.lane.b32.xlu0 %v1304, 58
      %v2189 = vpop.permute.xlu0 %2188
      %2190 = vrot.lane.b32.xlu0 %v1305, 58
      %v2191 = vpop.permute.xlu0 %2190
      %2192 = vrot.lane.b32.xlu0 %v1306, 58
      %v2193 = vpop.permute.xlu0 %2192
      %2194 = vrot.lane.b32.xlu0 %v1307, 58
      %v2195 = vpop.permute.xlu0 %2194
      %2196 = vrot.lane.b32.xlu0 %v1308, 58
      %v2197 = vpop.permute.xlu0 %2196
      %2198 = vrot.lane.b32.xlu0 %v1309, 58
      %v2199 = vpop.permute.xlu0 %2198
      %2200 = vrot.lane.b32.xlu0 %v1310, 58
      %v2201 = vpop.permute.xlu0 %2200
      %2202 = vrot.lane.b32.xlu0 %v1311, 58
      %v2203 = vpop.permute.xlu0 %2202
      %vm2204 = vcmask 474112
      %v2205 = vsel %vm2204, %v2163, %v2165
      %v2206 = vsel %vm2204, %v2165, %v2167
      %v2207 = vsel %vm2204, %v2167, %v2169
      %v2208 = vsel %vm2204, %v2169, %v2171
      %v2209 = vsel %vm2204, %v2171, %v2173
      %v2210 = vsel %vm2204, %v2173, %v2175
      %v2211 = vsel %vm2204, %v2175, %v2177
      %v2212 = vsel %vm2204, %v2177, %v2179
      %v2213 = vsel %vm2204, %v2179, %v2181
      %v2214 = vsel %vm2204, %v2181, %v2183
      %v2215 = vsel %vm2204, %v2183, %v2185
      %v2216 = vsel %vm2204, %v2185, %v2187
      %v2217 = vsel %vm2204, %v2187, %v2189
      %v2218 = vsel %vm2204, %v2189, %v2191
      %v2219 = vsel %vm2204, %v2191, %v2193
      %v2220 = vsel %vm2204, %v2193, %v2195
      %v2221 = vsel %vm2204, %v2195, %v2197
      %v2222 = vsel %vm2204, %v2197, %v2199
      %v2223 = vsel %vm2204, %v2199, %v2201
      %v2224 = vsel %vm2204, %v2201, %v2203
      %2245 = vrot.lane.b32.xlu0 %v1291, 42
      %v2246 = vpop.permute.xlu0 %2245
      %2247 = vrot.lane.b32.xlu0 %v1292, 42
      %v2248 = vpop.permute.xlu0 %2247
      %2249 = vrot.lane.b32.xlu0 %v1293, 42
      %v2250 = vpop.permute.xlu0 %2249
      %2251 = vrot.lane.b32.xlu0 %v1294, 42
      %v2252 = vpop.permute.xlu0 %2251
      %2253 = vrot.lane.b32.xlu0 %v1295, 42
      %v2254 = vpop.permute.xlu0 %2253
      %2255 = vrot.lane.b32.xlu0 %v1296, 42
      %v2256 = vpop.permute.xlu0 %2255
      %2257 = vrot.lane.b32.xlu0 %v1297, 42
      %v2258 = vpop.permute.xlu0 %2257
      %2259 = vrot.lane.b32.xlu0 %v1298, 42
      %v2260 = vpop.permute.xlu0 %2259
      %2261 = vrot.lane.b32.xlu0 %v1299, 42
      %v2262 = vpop.permute.xlu0 %2261
      %2263 = vrot.lane.b32.xlu0 %v1300, 42
      %v2264 = vpop.permute.xlu0 %2263
      %2265 = vrot.lane.b32.xlu0 %v1301, 42
      %v2266 = vpop.permute.xlu0 %2265
      %2267 = vrot.lane.b32.xlu0 %v1302, 42
      %v2268 = vpop.permute.xlu0 %2267
      %2269 = vrot.lane.b32.xlu0 %v1303, 42
      %v2270 = vpop.permute.xlu0 %2269
      %2271 = vrot.lane.b32.xlu0 %v1304, 42
      %v2272 = vpop.permute.xlu0 %2271
      %2273 = vrot.lane.b32.xlu0 %v1305, 42
      %v2274 = vpop.permute.xlu0 %2273
      %2275 = vrot.lane.b32.xlu0 %v1306, 42
      %v2276 = vpop.permute.xlu0 %2275
      %2277 = vrot.lane.b32.xlu0 %v1307, 42
      %v2278 = vpop.permute.xlu0 %2277
      %2279 = vrot.lane.b32.xlu0 %v1308, 42
      %v2280 = vpop.permute.xlu0 %2279
      %2281 = vrot.lane.b32.xlu0 %v1309, 42
      %v2282 = vpop.permute.xlu0 %2281
      %2283 = vrot.lane.b32.xlu0 %v1310, 42
      %v2284 = vpop.permute.xlu0 %2283
      %2285 = vrot.lane.b32.xlu0 %v1311, 42
      %v2286 = vpop.permute.xlu0 %2285
      %vm2287 = vcmask 343040
      %v2288 = vsel %vm2287, %v2246, %v2248
      %v2289 = vsel %vm2287, %v2248, %v2250
      %v2290 = vsel %vm2287, %v2250, %v2252
      %v2291 = vsel %vm2287, %v2252, %v2254
      %v2292 = vsel %vm2287, %v2254, %v2256
      %v2293 = vsel %vm2287, %v2256, %v2258
      %v2294 = vsel %vm2287, %v2258, %v2260
      %v2295 = vsel %vm2287, %v2260, %v2262
      %v2296 = vsel %vm2287, %v2262, %v2264
      %v2297 = vsel %vm2287, %v2264, %v2266
      %v2298 = vsel %vm2287, %v2266, %v2268
      %v2299 = vsel %vm2287, %v2268, %v2270
      %v2300 = vsel %vm2287, %v2270, %v2272
      %v2301 = vsel %vm2287, %v2272, %v2274
      %v2302 = vsel %vm2287, %v2274, %v2276
      %v2303 = vsel %vm2287, %v2276, %v2278
      %v2304 = vsel %vm2287, %v2278, %v2280
      %v2305 = vsel %vm2287, %v2280, %v2282
      %v2306 = vsel %vm2287, %v2282, %v2284
      %v2307 = vsel %vm2287, %v2284, %v2286
      %2328 = vrot.lane.b32.xlu0 %v1291, 41
      %v2329 = vpop.permute.xlu0 %2328
      %2330 = vrot.lane.b32.xlu0 %v1292, 41
      %v2331 = vpop.permute.xlu0 %2330
      %2332 = vrot.lane.b32.xlu0 %v1293, 41
      %v2333 = vpop.permute.xlu0 %2332
      %2334 = vrot.lane.b32.xlu0 %v1294, 41
      %v2335 = vpop.permute.xlu0 %2334
      %2336 = vrot.lane.b32.xlu0 %v1295, 41
      %v2337 = vpop.permute.xlu0 %2336
      %2338 = vrot.lane.b32.xlu0 %v1296, 41
      %v2339 = vpop.permute.xlu0 %2338
      %2340 = vrot.lane.b32.xlu0 %v1297, 41
      %v2341 = vpop.permute.xlu0 %2340
      %2342 = vrot.lane.b32.xlu0 %v1298, 41
      %v2343 = vpop.permute.xlu0 %2342
      %2344 = vrot.lane.b32.xlu0 %v1299, 41
      %v2345 = vpop.permute.xlu0 %2344
      %2346 = vrot.lane.b32.xlu0 %v1300, 41
      %v2347 = vpop.permute.xlu0 %2346
      %2348 = vrot.lane.b32.xlu0 %v1301, 41
      %v2349 = vpop.permute.xlu0 %2348
      %2350 = vrot.lane.b32.xlu0 %v1302, 41
      %v2351 = vpop.permute.xlu0 %2350
      %2352 = vrot.lane.b32.xlu0 %v1303, 41
      %v2353 = vpop.permute.xlu0 %2352
      %2354 = vrot.lane.b32.xlu0 %v1304, 41
      %v2355 = vpop.permute.xlu0 %2354
      %2356 = vrot.lane.b32.xlu0 %v1305, 41
      %v2357 = vpop.permute.xlu0 %2356
      %2358 = vrot.lane.b32.xlu0 %v1306, 41
      %v2359 = vpop.permute.xlu0 %2358
      %2360 = vrot.lane.b32.xlu0 %v1307, 41
      %v2361 = vpop.permute.xlu0 %2360
      %2362 = vrot.lane.b32.xlu0 %v1308, 41
      %v2363 = vpop.permute.xlu0 %2362
      %2364 = vrot.lane.b32.xlu0 %v1309, 41
      %v2365 = vpop.permute.xlu0 %2364
      %2366 = vrot.lane.b32.xlu0 %v1310, 41
      %v2367 = vpop.permute.xlu0 %2366
      %2368 = vrot.lane.b32.xlu0 %v1311, 41
      %v2369 = vpop.permute.xlu0 %2368
      %vm2370 = vcmask 334848
      %v2371 = vsel %vm2370, %v2329, %v2331
      %v2372 = vsel %vm2370, %v2331, %v2333
      %v2373 = vsel %vm2370, %v2333, %v2335
      %v2374 = vsel %vm2370, %v2335, %v2337
      %v2375 = vsel %vm2370, %v2337, %v2339
      %v2376 = vsel %vm2370, %v2339, %v2341
      %v2377 = vsel %vm2370, %v2341, %v2343
      %v2378 = vsel %vm2370, %v2343, %v2345
      %v2379 = vsel %vm2370, %v2345, %v2347
      %v2380 = vsel %vm2370, %v2347, %v2349
      %v2381 = vsel %vm2370, %v2349, %v2351
      %v2382 = vsel %vm2370, %v2351, %v2353
      %v2383 = vsel %vm2370, %v2353, %v2355
      %v2384 = vsel %vm2370, %v2355, %v2357
      %v2385 = vsel %vm2370, %v2357, %v2359
      %v2386 = vsel %vm2370, %v2359, %v2361
      %v2387 = vsel %vm2370, %v2361, %v2363
      %v2388 = vsel %vm2370, %v2363, %v2365
      %v2389 = vsel %vm2370, %v2365, %v2367
      %v2390 = vsel %vm2370, %v2367, %v2369
      %2411 = vrot.lane.b32.xlu0 %v1291, 40
      %v2412 = vpop.permute.xlu0 %2411
      %2413 = vrot.lane.b32.xlu0 %v1292, 40
      %v2414 = vpop.permute.xlu0 %2413
      %2415 = vrot.lane.b32.xlu0 %v1293, 40
      %v2416 = vpop.permute.xlu0 %2415
      %2417 = vrot.lane.b32.xlu0 %v1294, 40
      %v2418 = vpop.permute.xlu0 %2417
      %2419 = vrot.lane.b32.xlu0 %v1295, 40
      %v2420 = vpop.permute.xlu0 %2419
      %2421 = vrot.lane.b32.xlu0 %v1296, 40
      %v2422 = vpop.permute.xlu0 %2421
      %2423 = vrot.lane.b32.xlu0 %v1297, 40
      %v2424 = vpop.permute.xlu0 %2423
      %2425 = vrot.lane.b32.xlu0 %v1298, 40
      %v2426 = vpop.permute.xlu0 %2425
      %2427 = vrot.lane.b32.xlu0 %v1299, 40
      %v2428 = vpop.permute.xlu0 %2427
      %2429 = vrot.lane.b32.xlu0 %v1300, 40
      %v2430 = vpop.permute.xlu0 %2429
      %2431 = vrot.lane.b32.xlu0 %v1301, 40
      %v2432 = vpop.permute.xlu0 %2431
      %2433 = vrot.lane.b32.xlu0 %v1302, 40
      %v2434 = vpop.permute.xlu0 %2433
      %2435 = vrot.lane.b32.xlu0 %v1303, 40
      %v2436 = vpop.permute.xlu0 %2435
      %2437 = vrot.lane.b32.xlu0 %v1304, 40
      %v2438 = vpop.permute.xlu0 %2437
      %2439 = vrot.lane.b32.xlu0 %v1305, 40
      %v2440 = vpop.permute.xlu0 %2439
      %2441 = vrot.lane.b32.xlu0 %v1306, 40
      %v2442 = vpop.permute.xlu0 %2441
      %2443 = vrot.lane.b32.xlu0 %v1307, 40
      %v2444 = vpop.permute.xlu0 %2443
      %2445 = vrot.lane.b32.xlu0 %v1308, 40
      %v2446 = vpop.permute.xlu0 %2445
      %2447 = vrot.lane.b32.xlu0 %v1309, 40
      %v2448 = vpop.permute.xlu0 %2447
      %2449 = vrot.lane.b32.xlu0 %v1310, 40
      %v2450 = vpop.permute.xlu0 %2449
      %2451 = vrot.lane.b32.xlu0 %v1311, 40
      %v2452 = vpop.permute.xlu0 %2451
      %v2453 = vsel %vm1287, %v2412, %v2414
      %v2454 = vsel %vm1287, %v2414, %v2416
      %v2455 = vsel %vm1287, %v2416, %v2418
      %v2456 = vsel %vm1287, %v2418, %v2420
      %v2457 = vsel %vm1287, %v2420, %v2422
      %v2458 = vsel %vm1287, %v2422, %v2424
      %v2459 = vsel %vm1287, %v2424, %v2426
      %v2460 = vsel %vm1287, %v2426, %v2428
      %v2461 = vsel %vm1287, %v2428, %v2430
      %v2462 = vsel %vm1287, %v2430, %v2432
      %v2463 = vsel %vm1287, %v2432, %v2434
      %v2464 = vsel %vm1287, %v2434, %v2436
      %v2465 = vsel %vm1287, %v2436, %v2438
      %v2466 = vsel %vm1287, %v2438, %v2440
      %v2467 = vsel %vm1287, %v2440, %v2442
      %v2468 = vsel %vm1287, %v2442, %v2444
      %v2469 = vsel %vm1287, %v2444, %v2446
      %v2470 = vsel %vm1287, %v2446, %v2448
      %v2471 = vsel %vm1287, %v2448, %v2450
      %v2472 = vsel %vm1287, %v2450, %v2452
      %2493 = vrot.lane.b32.xlu0 %v1291, 24
      %v2494 = vpop.permute.xlu0 %2493
      %2495 = vrot.lane.b32.xlu0 %v1292, 24
      %v2496 = vpop.permute.xlu0 %2495
      %2497 = vrot.lane.b32.xlu0 %v1293, 24
      %v2498 = vpop.permute.xlu0 %2497
      %2499 = vrot.lane.b32.xlu0 %v1294, 24
      %v2500 = vpop.permute.xlu0 %2499
      %2501 = vrot.lane.b32.xlu0 %v1295, 24
      %v2502 = vpop.permute.xlu0 %2501
      %2503 = vrot.lane.b32.xlu0 %v1296, 24
      %v2504 = vpop.permute.xlu0 %2503
      %2505 = vrot.lane.b32.xlu0 %v1297, 24
      %v2506 = vpop.permute.xlu0 %2505
      %2507 = vrot.lane.b32.xlu0 %v1298, 24
      %v2508 = vpop.permute.xlu0 %2507
      %2509 = vrot.lane.b32.xlu0 %v1299, 24
      %v2510 = vpop.permute.xlu0 %2509
      %2511 = vrot.lane.b32.xlu0 %v1300, 24
      %v2512 = vpop.permute.xlu0 %2511
      %2513 = vrot.lane.b32.xlu0 %v1301, 24
      %v2514 = vpop.permute.xlu0 %2513
      %2515 = vrot.lane.b32.xlu0 %v1302, 24
      %v2516 = vpop.permute.xlu0 %2515
      %2517 = vrot.lane.b32.xlu0 %v1303, 24
      %v2518 = vpop.permute.xlu0 %2517
      %2519 = vrot.lane.b32.xlu0 %v1304, 24
      %v2520 = vpop.permute.xlu0 %2519
      %2521 = vrot.lane.b32.xlu0 %v1305, 24
      %v2522 = vpop.permute.xlu0 %2521
      %2523 = vrot.lane.b32.xlu0 %v1306, 24
      %v2524 = vpop.permute.xlu0 %2523
      %2525 = vrot.lane.b32.xlu0 %v1307, 24
      %v2526 = vpop.permute.xlu0 %2525
      %2527 = vrot.lane.b32.xlu0 %v1308, 24
      %v2528 = vpop.permute.xlu0 %2527
      %2529 = vrot.lane.b32.xlu0 %v1309, 24
      %v2530 = vpop.permute.xlu0 %2529
      %2531 = vrot.lane.b32.xlu0 %v1310, 24
      %v2532 = vpop.permute.xlu0 %2531
      %2533 = vrot.lane.b32.xlu0 %v1311, 24
      %v2534 = vpop.permute.xlu0 %2533
      %vm2535 = vcmask 195584
      %v2536 = vsel %vm2535, %v2494, %v2496
      %v2537 = vsel %vm2535, %v2496, %v2498
      %v2538 = vsel %vm2535, %v2498, %v2500
      %v2539 = vsel %vm2535, %v2500, %v2502
      %v2540 = vsel %vm2535, %v2502, %v2504
      %v2541 = vsel %vm2535, %v2504, %v2506
      %v2542 = vsel %vm2535, %v2506, %v2508
      %v2543 = vsel %vm2535, %v2508, %v2510
      %v2544 = vsel %vm2535, %v2510, %v2512
      %v2545 = vsel %vm2535, %v2512, %v2514
      %v2546 = vsel %vm2535, %v2514, %v2516
      %v2547 = vsel %vm2535, %v2516, %v2518
      %v2548 = vsel %vm2535, %v2518, %v2520
      %v2549 = vsel %vm2535, %v2520, %v2522
      %v2550 = vsel %vm2535, %v2522, %v2524
      %v2551 = vsel %vm2535, %v2524, %v2526
      %v2552 = vsel %vm2535, %v2526, %v2528
      %v2553 = vsel %vm2535, %v2528, %v2530
      %v2554 = vsel %vm2535, %v2530, %v2532
      %v2555 = vsel %vm2535, %v2532, %v2534
      %2576 = vrot.lane.b32.xlu0 %v1309, 127
      %v2577 = vpop.permute.xlu0 %2576
      %2578 = vrot.lane.b32.xlu0 %v1310, 127
      %v2579 = vpop.permute.xlu0 %2578
      %2580 = vrot.lane.b32.xlu0 %v1311, 127
      %v2581 = vpop.permute.xlu0 %2580
      %v2582 = vsel %vm1375, %v1374, %v2577
      %v2583 = vsel %vm1375, %v2577, %v2579
      %v2584 = vsel %vm1375, %v2579, %v2581
      %2588 = vrot.lane.b32.xlu0 %v1294, 97
      %v2589 = vpop.permute.xlu0 %2588
      %2590 = vrot.lane.b32.xlu0 %v1295, 97
      %v2591 = vpop.permute.xlu0 %2590
      %2592 = vrot.lane.b32.xlu0 %v1296, 97
      %v2593 = vpop.permute.xlu0 %2592
      %2594 = vrot.lane.b32.xlu0 %v1297, 97
      %v2595 = vpop.permute.xlu0 %2594
      %2596 = vrot.lane.b32.xlu0 %v1298, 97
      %v2597 = vpop.permute.xlu0 %2596
      %2598 = vrot.lane.b32.xlu0 %v1299, 97
      %v2599 = vpop.permute.xlu0 %2598
      %2600 = vrot.lane.b32.xlu0 %v1300, 97
      %v2601 = vpop.permute.xlu0 %2600
      %2602 = vrot.lane.b32.xlu0 %v1301, 97
      %v2603 = vpop.permute.xlu0 %2602
      %2604 = vrot.lane.b32.xlu0 %v1302, 97
      %v2605 = vpop.permute.xlu0 %2604
      %2606 = vrot.lane.b32.xlu0 %v1303, 97
      %v2607 = vpop.permute.xlu0 %2606
      %2608 = vrot.lane.b32.xlu0 %v1304, 97
      %v2609 = vpop.permute.xlu0 %2608
      %2610 = vrot.lane.b32.xlu0 %v1305, 97
      %v2611 = vpop.permute.xlu0 %2610
      %2612 = vrot.lane.b32.xlu0 %v1306, 97
      %v2613 = vpop.permute.xlu0 %2612
      %2614 = vrot.lane.b32.xlu0 %v1307, 97
      %v2615 = vpop.permute.xlu0 %2614
      %2616 = vrot.lane.b32.xlu0 %v1308, 97
      %v2617 = vpop.permute.xlu0 %2616
      %2618 = vrot.lane.b32.xlu0 %v1309, 97
      %v2619 = vpop.permute.xlu0 %2618
      %2620 = vrot.lane.b32.xlu0 %v1310, 97
      %v2621 = vpop.permute.xlu0 %2620
      %2622 = vrot.lane.b32.xlu0 %v1311, 97
      %v2623 = vpop.permute.xlu0 %2622
      %2624 = vrot.lane.b32.xlu0 %v1312, 97
      %v2625 = vpop.permute.xlu0 %2624
      %2626 = vrot.lane.b32.xlu0 %v1313, 97
      %v2627 = vpop.permute.xlu0 %2626
      %2628 = vrot.lane.b32.xlu0 %v1314, 97
      %v2629 = vpop.permute.xlu0 %2628
      %vm2630 = vcmask 793600
      %v2631 = vsel %vm2630, %v2589, %v2591
      %v2632 = vsel %vm2630, %v2591, %v2593
      %v2633 = vsel %vm2630, %v2593, %v2595
      %v2634 = vsel %vm2630, %v2595, %v2597
      %v2635 = vsel %vm2630, %v2597, %v2599
      %v2636 = vsel %vm2630, %v2599, %v2601
      %v2637 = vsel %vm2630, %v2601, %v2603
      %v2638 = vsel %vm2630, %v2603, %v2605
      %v2639 = vsel %vm2630, %v2605, %v2607
      %v2640 = vsel %vm2630, %v2607, %v2609
      %v2641 = vsel %vm2630, %v2609, %v2611
      %v2642 = vsel %vm2630, %v2611, %v2613
      %v2643 = vsel %vm2630, %v2613, %v2615
      %v2644 = vsel %vm2630, %v2615, %v2617
      %v2645 = vsel %vm2630, %v2617, %v2619
      %v2646 = vsel %vm2630, %v2619, %v2621
      %v2647 = vsel %vm2630, %v2621, %v2623
      %v2648 = vsel %vm2630, %v2623, %v2625
      %v2649 = vsel %vm2630, %v2625, %v2627
      %v2650 = vsel %vm2630, %v2627, %v2629
      %2651 = vrot.lane.b32.xlu0 %v1294, 96
      %v2652 = vpop.permute.xlu0 %2651
      %2653 = vrot.lane.b32.xlu0 %v1295, 96
      %v2654 = vpop.permute.xlu0 %2653
      %2655 = vrot.lane.b32.xlu0 %v1296, 96
      %v2656 = vpop.permute.xlu0 %2655
      %2657 = vrot.lane.b32.xlu0 %v1297, 96
      %v2658 = vpop.permute.xlu0 %2657
      %2659 = vrot.lane.b32.xlu0 %v1298, 96
      %v2660 = vpop.permute.xlu0 %2659
      %2661 = vrot.lane.b32.xlu0 %v1299, 96
      %v2662 = vpop.permute.xlu0 %2661
      %2663 = vrot.lane.b32.xlu0 %v1300, 96
      %v2664 = vpop.permute.xlu0 %2663
      %2665 = vrot.lane.b32.xlu0 %v1301, 96
      %v2666 = vpop.permute.xlu0 %2665
      %2667 = vrot.lane.b32.xlu0 %v1302, 96
      %v2668 = vpop.permute.xlu0 %2667
      %2669 = vrot.lane.b32.xlu0 %v1303, 96
      %v2670 = vpop.permute.xlu0 %2669
      %2671 = vrot.lane.b32.xlu0 %v1304, 96
      %v2672 = vpop.permute.xlu0 %2671
      %2673 = vrot.lane.b32.xlu0 %v1305, 96
      %v2674 = vpop.permute.xlu0 %2673
      %2675 = vrot.lane.b32.xlu0 %v1306, 96
      %v2676 = vpop.permute.xlu0 %2675
      %2677 = vrot.lane.b32.xlu0 %v1307, 96
      %v2678 = vpop.permute.xlu0 %2677
      %2679 = vrot.lane.b32.xlu0 %v1308, 96
      %v2680 = vpop.permute.xlu0 %2679
      %2681 = vrot.lane.b32.xlu0 %v1309, 96
      %v2682 = vpop.permute.xlu0 %2681
      %2683 = vrot.lane.b32.xlu0 %v1310, 96
      %v2684 = vpop.permute.xlu0 %2683
      %2685 = vrot.lane.b32.xlu0 %v1311, 96
      %v2686 = vpop.permute.xlu0 %2685
      %2687 = vrot.lane.b32.xlu0 %v1312, 96
      %v2688 = vpop.permute.xlu0 %2687
      %2689 = vrot.lane.b32.xlu0 %v1313, 96
      %v2690 = vpop.permute.xlu0 %2689
      %2691 = vrot.lane.b32.xlu0 %v1314, 96
      %v2692 = vpop.permute.xlu0 %2691
      %vm2693 = vcmask 785408
      %v2694 = vsel %vm2693, %v2652, %v2654
      %v2695 = vsel %vm2693, %v2654, %v2656
      %v2696 = vsel %vm2693, %v2656, %v2658
      %v2697 = vsel %vm2693, %v2658, %v2660
      %v2698 = vsel %vm2693, %v2660, %v2662
      %v2699 = vsel %vm2693, %v2662, %v2664
      %v2700 = vsel %vm2693, %v2664, %v2666
      %v2701 = vsel %vm2693, %v2666, %v2668
      %v2702 = vsel %vm2693, %v2668, %v2670
      %v2703 = vsel %vm2693, %v2670, %v2672
      %v2704 = vsel %vm2693, %v2672, %v2674
      %v2705 = vsel %vm2693, %v2674, %v2676
      %v2706 = vsel %vm2693, %v2676, %v2678
      %v2707 = vsel %vm2693, %v2678, %v2680
      %v2708 = vsel %vm2693, %v2680, %v2682
      %v2709 = vsel %vm2693, %v2682, %v2684
      %v2710 = vsel %vm2693, %v2684, %v2686
      %v2711 = vsel %vm2693, %v2686, %v2688
      %v2712 = vsel %vm2693, %v2688, %v2690
      %v2713 = vsel %vm2693, %v2690, %v2692
      %2714 = vrot.lane.b32.xlu0 %v1294, 95
      %v2715 = vpop.permute.xlu0 %2714
      %2716 = vrot.lane.b32.xlu0 %v1295, 95
      %v2717 = vpop.permute.xlu0 %2716
      %2718 = vrot.lane.b32.xlu0 %v1296, 95
      %v2719 = vpop.permute.xlu0 %2718
      %2720 = vrot.lane.b32.xlu0 %v1297, 95
      %v2721 = vpop.permute.xlu0 %2720
      %2722 = vrot.lane.b32.xlu0 %v1298, 95
      %v2723 = vpop.permute.xlu0 %2722
      %2724 = vrot.lane.b32.xlu0 %v1299, 95
      %v2725 = vpop.permute.xlu0 %2724
      %2726 = vrot.lane.b32.xlu0 %v1300, 95
      %v2727 = vpop.permute.xlu0 %2726
      %2728 = vrot.lane.b32.xlu0 %v1301, 95
      %v2729 = vpop.permute.xlu0 %2728
      %2730 = vrot.lane.b32.xlu0 %v1302, 95
      %v2731 = vpop.permute.xlu0 %2730
      %2732 = vrot.lane.b32.xlu0 %v1303, 95
      %v2733 = vpop.permute.xlu0 %2732
      %2734 = vrot.lane.b32.xlu0 %v1304, 95
      %v2735 = vpop.permute.xlu0 %2734
      %2736 = vrot.lane.b32.xlu0 %v1305, 95
      %v2737 = vpop.permute.xlu0 %2736
      %2738 = vrot.lane.b32.xlu0 %v1306, 95
      %v2739 = vpop.permute.xlu0 %2738
      %2740 = vrot.lane.b32.xlu0 %v1307, 95
      %v2741 = vpop.permute.xlu0 %2740
      %2742 = vrot.lane.b32.xlu0 %v1308, 95
      %v2743 = vpop.permute.xlu0 %2742
      %2744 = vrot.lane.b32.xlu0 %v1309, 95
      %v2745 = vpop.permute.xlu0 %2744
      %2746 = vrot.lane.b32.xlu0 %v1310, 95
      %v2747 = vpop.permute.xlu0 %2746
      %2748 = vrot.lane.b32.xlu0 %v1311, 95
      %v2749 = vpop.permute.xlu0 %2748
      %2750 = vrot.lane.b32.xlu0 %v1312, 95
      %v2751 = vpop.permute.xlu0 %2750
      %2752 = vrot.lane.b32.xlu0 %v1313, 95
      %v2753 = vpop.permute.xlu0 %2752
      %2754 = vrot.lane.b32.xlu0 %v1314, 95
      %v2755 = vpop.permute.xlu0 %2754
      %vm2756 = vcmask 777216
      %v2757 = vsel %vm2756, %v2715, %v2717
      %v2758 = vsel %vm2756, %v2717, %v2719
      %v2759 = vsel %vm2756, %v2719, %v2721
      %v2760 = vsel %vm2756, %v2721, %v2723
      %v2761 = vsel %vm2756, %v2723, %v2725
      %v2762 = vsel %vm2756, %v2725, %v2727
      %v2763 = vsel %vm2756, %v2727, %v2729
      %v2764 = vsel %vm2756, %v2729, %v2731
      %v2765 = vsel %vm2756, %v2731, %v2733
      %v2766 = vsel %vm2756, %v2733, %v2735
      %v2767 = vsel %vm2756, %v2735, %v2737
      %v2768 = vsel %vm2756, %v2737, %v2739
      %v2769 = vsel %vm2756, %v2739, %v2741
      %v2770 = vsel %vm2756, %v2741, %v2743
      %v2771 = vsel %vm2756, %v2743, %v2745
      %v2772 = vsel %vm2756, %v2745, %v2747
      %v2773 = vsel %vm2756, %v2747, %v2749
      %v2774 = vsel %vm2756, %v2749, %v2751
      %v2775 = vsel %vm2756, %v2751, %v2753
      %v2776 = vsel %vm2756, %v2753, %v2755
      %2777 = vrot.lane.b32.xlu0 %v1294, 79
      %v2778 = vpop.permute.xlu0 %2777
      %2779 = vrot.lane.b32.xlu0 %v1295, 79
      %v2780 = vpop.permute.xlu0 %2779
      %2781 = vrot.lane.b32.xlu0 %v1296, 79
      %v2782 = vpop.permute.xlu0 %2781
      %2783 = vrot.lane.b32.xlu0 %v1297, 79
      %v2784 = vpop.permute.xlu0 %2783
      %2785 = vrot.lane.b32.xlu0 %v1298, 79
      %v2786 = vpop.permute.xlu0 %2785
      %2787 = vrot.lane.b32.xlu0 %v1299, 79
      %v2788 = vpop.permute.xlu0 %2787
      %2789 = vrot.lane.b32.xlu0 %v1300, 79
      %v2790 = vpop.permute.xlu0 %2789
      %2791 = vrot.lane.b32.xlu0 %v1301, 79
      %v2792 = vpop.permute.xlu0 %2791
      %2793 = vrot.lane.b32.xlu0 %v1302, 79
      %v2794 = vpop.permute.xlu0 %2793
      %2795 = vrot.lane.b32.xlu0 %v1303, 79
      %v2796 = vpop.permute.xlu0 %2795
      %2797 = vrot.lane.b32.xlu0 %v1304, 79
      %v2798 = vpop.permute.xlu0 %2797
      %2799 = vrot.lane.b32.xlu0 %v1305, 79
      %v2800 = vpop.permute.xlu0 %2799
      %2801 = vrot.lane.b32.xlu0 %v1306, 79
      %v2802 = vpop.permute.xlu0 %2801
      %2803 = vrot.lane.b32.xlu0 %v1307, 79
      %v2804 = vpop.permute.xlu0 %2803
      %2805 = vrot.lane.b32.xlu0 %v1308, 79
      %v2806 = vpop.permute.xlu0 %2805
      %2807 = vrot.lane.b32.xlu0 %v1309, 79
      %v2808 = vpop.permute.xlu0 %2807
      %2809 = vrot.lane.b32.xlu0 %v1310, 79
      %v2810 = vpop.permute.xlu0 %2809
      %2811 = vrot.lane.b32.xlu0 %v1311, 79
      %v2812 = vpop.permute.xlu0 %2811
      %2813 = vrot.lane.b32.xlu0 %v1312, 79
      %v2814 = vpop.permute.xlu0 %2813
      %2815 = vrot.lane.b32.xlu0 %v1313, 79
      %v2816 = vpop.permute.xlu0 %2815
      %2817 = vrot.lane.b32.xlu0 %v1314, 79
      %v2818 = vpop.permute.xlu0 %2817
      %vm2819 = vcmask 646144
      %v2820 = vsel %vm2819, %v2778, %v2780
      %v2821 = vsel %vm2819, %v2780, %v2782
      %v2822 = vsel %vm2819, %v2782, %v2784
      %v2823 = vsel %vm2819, %v2784, %v2786
      %v2824 = vsel %vm2819, %v2786, %v2788
      %v2825 = vsel %vm2819, %v2788, %v2790
      %v2826 = vsel %vm2819, %v2790, %v2792
      %v2827 = vsel %vm2819, %v2792, %v2794
      %v2828 = vsel %vm2819, %v2794, %v2796
      %v2829 = vsel %vm2819, %v2796, %v2798
      %v2830 = vsel %vm2819, %v2798, %v2800
      %v2831 = vsel %vm2819, %v2800, %v2802
      %v2832 = vsel %vm2819, %v2802, %v2804
      %v2833 = vsel %vm2819, %v2804, %v2806
      %v2834 = vsel %vm2819, %v2806, %v2808
      %v2835 = vsel %vm2819, %v2808, %v2810
      %v2836 = vsel %vm2819, %v2810, %v2812
      %v2837 = vsel %vm2819, %v2812, %v2814
      %v2838 = vsel %vm2819, %v2814, %v2816
      %v2839 = vsel %vm2819, %v2816, %v2818
      %2840 = vrot.lane.b32.xlu0 %v1294, 78
      %v2841 = vpop.permute.xlu0 %2840
      %2842 = vrot.lane.b32.xlu0 %v1295, 78
      %v2843 = vpop.permute.xlu0 %2842
      %2844 = vrot.lane.b32.xlu0 %v1296, 78
      %v2845 = vpop.permute.xlu0 %2844
      %2846 = vrot.lane.b32.xlu0 %v1297, 78
      %v2847 = vpop.permute.xlu0 %2846
      %2848 = vrot.lane.b32.xlu0 %v1298, 78
      %v2849 = vpop.permute.xlu0 %2848
      %2850 = vrot.lane.b32.xlu0 %v1299, 78
      %v2851 = vpop.permute.xlu0 %2850
      %2852 = vrot.lane.b32.xlu0 %v1300, 78
      %v2853 = vpop.permute.xlu0 %2852
      %2854 = vrot.lane.b32.xlu0 %v1301, 78
      %v2855 = vpop.permute.xlu0 %2854
      %2856 = vrot.lane.b32.xlu0 %v1302, 78
      %v2857 = vpop.permute.xlu0 %2856
      %2858 = vrot.lane.b32.xlu0 %v1303, 78
      %v2859 = vpop.permute.xlu0 %2858
      %2860 = vrot.lane.b32.xlu0 %v1304, 78
      %v2861 = vpop.permute.xlu0 %2860
      %2862 = vrot.lane.b32.xlu0 %v1305, 78
      %v2863 = vpop.permute.xlu0 %2862
      %2864 = vrot.lane.b32.xlu0 %v1306, 78
      %v2865 = vpop.permute.xlu0 %2864
      %2866 = vrot.lane.b32.xlu0 %v1307, 78
      %v2867 = vpop.permute.xlu0 %2866
      %2868 = vrot.lane.b32.xlu0 %v1308, 78
      %v2869 = vpop.permute.xlu0 %2868
      %2870 = vrot.lane.b32.xlu0 %v1309, 78
      %v2871 = vpop.permute.xlu0 %2870
      %2872 = vrot.lane.b32.xlu0 %v1310, 78
      %v2873 = vpop.permute.xlu0 %2872
      %2874 = vrot.lane.b32.xlu0 %v1311, 78
      %v2875 = vpop.permute.xlu0 %2874
      %2876 = vrot.lane.b32.xlu0 %v1312, 78
      %v2877 = vpop.permute.xlu0 %2876
      %2878 = vrot.lane.b32.xlu0 %v1313, 78
      %v2879 = vpop.permute.xlu0 %2878
      %2880 = vrot.lane.b32.xlu0 %v1314, 78
      %v2881 = vpop.permute.xlu0 %2880
      %vm2882 = vcmask 637952
      %v2883 = vsel %vm2882, %v2841, %v2843
      %v2884 = vsel %vm2882, %v2843, %v2845
      %v2885 = vsel %vm2882, %v2845, %v2847
      %v2886 = vsel %vm2882, %v2847, %v2849
      %v2887 = vsel %vm2882, %v2849, %v2851
      %v2888 = vsel %vm2882, %v2851, %v2853
      %v2889 = vsel %vm2882, %v2853, %v2855
      %v2890 = vsel %vm2882, %v2855, %v2857
      %v2891 = vsel %vm2882, %v2857, %v2859
      %v2892 = vsel %vm2882, %v2859, %v2861
      %v2893 = vsel %vm2882, %v2861, %v2863
      %v2894 = vsel %vm2882, %v2863, %v2865
      %v2895 = vsel %vm2882, %v2865, %v2867
      %v2896 = vsel %vm2882, %v2867, %v2869
      %v2897 = vsel %vm2882, %v2869, %v2871
      %v2898 = vsel %vm2882, %v2871, %v2873
      %v2899 = vsel %vm2882, %v2873, %v2875
      %v2900 = vsel %vm2882, %v2875, %v2877
      %v2901 = vsel %vm2882, %v2877, %v2879
      %v2902 = vsel %vm2882, %v2879, %v2881
      %2903 = vrot.lane.b32.xlu0 %v1294, 77
      %v2904 = vpop.permute.xlu0 %2903
      %2905 = vrot.lane.b32.xlu0 %v1295, 77
      %v2906 = vpop.permute.xlu0 %2905
      %2907 = vrot.lane.b32.xlu0 %v1296, 77
      %v2908 = vpop.permute.xlu0 %2907
      %2909 = vrot.lane.b32.xlu0 %v1297, 77
      %v2910 = vpop.permute.xlu0 %2909
      %2911 = vrot.lane.b32.xlu0 %v1298, 77
      %v2912 = vpop.permute.xlu0 %2911
      %2913 = vrot.lane.b32.xlu0 %v1299, 77
      %v2914 = vpop.permute.xlu0 %2913
      %2915 = vrot.lane.b32.xlu0 %v1300, 77
      %v2916 = vpop.permute.xlu0 %2915
      %2917 = vrot.lane.b32.xlu0 %v1301, 77
      %v2918 = vpop.permute.xlu0 %2917
      %2919 = vrot.lane.b32.xlu0 %v1302, 77
      %v2920 = vpop.permute.xlu0 %2919
      %2921 = vrot.lane.b32.xlu0 %v1303, 77
      %v2922 = vpop.permute.xlu0 %2921
      %2923 = vrot.lane.b32.xlu0 %v1304, 77
      %v2924 = vpop.permute.xlu0 %2923
      %2925 = vrot.lane.b32.xlu0 %v1305, 77
      %v2926 = vpop.permute.xlu0 %2925
      %2927 = vrot.lane.b32.xlu0 %v1306, 77
      %v2928 = vpop.permute.xlu0 %2927
      %2929 = vrot.lane.b32.xlu0 %v1307, 77
      %v2930 = vpop.permute.xlu0 %2929
      %2931 = vrot.lane.b32.xlu0 %v1308, 77
      %v2932 = vpop.permute.xlu0 %2931
      %2933 = vrot.lane.b32.xlu0 %v1309, 77
      %v2934 = vpop.permute.xlu0 %2933
      %2935 = vrot.lane.b32.xlu0 %v1310, 77
      %v2936 = vpop.permute.xlu0 %2935
      %2937 = vrot.lane.b32.xlu0 %v1311, 77
      %v2938 = vpop.permute.xlu0 %2937
      %2939 = vrot.lane.b32.xlu0 %v1312, 77
      %v2940 = vpop.permute.xlu0 %2939
      %2941 = vrot.lane.b32.xlu0 %v1313, 77
      %v2942 = vpop.permute.xlu0 %2941
      %2943 = vrot.lane.b32.xlu0 %v1314, 77
      %v2944 = vpop.permute.xlu0 %2943
      %vm2945 = vcmask 629760
      %v2946 = vsel %vm2945, %v2904, %v2906
      %v2947 = vsel %vm2945, %v2906, %v2908
      %v2948 = vsel %vm2945, %v2908, %v2910
      %v2949 = vsel %vm2945, %v2910, %v2912
      %v2950 = vsel %vm2945, %v2912, %v2914
      %v2951 = vsel %vm2945, %v2914, %v2916
      %v2952 = vsel %vm2945, %v2916, %v2918
      %v2953 = vsel %vm2945, %v2918, %v2920
      %v2954 = vsel %vm2945, %v2920, %v2922
      %v2955 = vsel %vm2945, %v2922, %v2924
      %v2956 = vsel %vm2945, %v2924, %v2926
      %v2957 = vsel %vm2945, %v2926, %v2928
      %v2958 = vsel %vm2945, %v2928, %v2930
      %v2959 = vsel %vm2945, %v2930, %v2932
      %v2960 = vsel %vm2945, %v2932, %v2934
      %v2961 = vsel %vm2945, %v2934, %v2936
      %v2962 = vsel %vm2945, %v2936, %v2938
      %v2963 = vsel %vm2945, %v2938, %v2940
      %v2964 = vsel %vm2945, %v2940, %v2942
      %v2965 = vsel %vm2945, %v2942, %v2944
      %2966 = vrot.lane.b32.xlu0 %v1294, 61
      %v2967 = vpop.permute.xlu0 %2966
      %2968 = vrot.lane.b32.xlu0 %v1295, 61
      %v2969 = vpop.permute.xlu0 %2968
      %2970 = vrot.lane.b32.xlu0 %v1296, 61
      %v2971 = vpop.permute.xlu0 %2970
      %2972 = vrot.lane.b32.xlu0 %v1297, 61
      %v2973 = vpop.permute.xlu0 %2972
      %2974 = vrot.lane.b32.xlu0 %v1298, 61
      %v2975 = vpop.permute.xlu0 %2974
      %2976 = vrot.lane.b32.xlu0 %v1299, 61
      %v2977 = vpop.permute.xlu0 %2976
      %2978 = vrot.lane.b32.xlu0 %v1300, 61
      %v2979 = vpop.permute.xlu0 %2978
      %2980 = vrot.lane.b32.xlu0 %v1301, 61
      %v2981 = vpop.permute.xlu0 %2980
      %2982 = vrot.lane.b32.xlu0 %v1302, 61
      %v2983 = vpop.permute.xlu0 %2982
      %2984 = vrot.lane.b32.xlu0 %v1303, 61
      %v2985 = vpop.permute.xlu0 %2984
      %2986 = vrot.lane.b32.xlu0 %v1304, 61
      %v2987 = vpop.permute.xlu0 %2986
      %2988 = vrot.lane.b32.xlu0 %v1305, 61
      %v2989 = vpop.permute.xlu0 %2988
      %2990 = vrot.lane.b32.xlu0 %v1306, 61
      %v2991 = vpop.permute.xlu0 %2990
      %2992 = vrot.lane.b32.xlu0 %v1307, 61
      %v2993 = vpop.permute.xlu0 %2992
      %2994 = vrot.lane.b32.xlu0 %v1308, 61
      %v2995 = vpop.permute.xlu0 %2994
      %2996 = vrot.lane.b32.xlu0 %v1309, 61
      %v2997 = vpop.permute.xlu0 %2996
      %2998 = vrot.lane.b32.xlu0 %v1310, 61
      %v2999 = vpop.permute.xlu0 %2998
      %3000 = vrot.lane.b32.xlu0 %v1311, 61
      %v3001 = vpop.permute.xlu0 %3000
      %3002 = vrot.lane.b32.xlu0 %v1312, 61
      %v3003 = vpop.permute.xlu0 %3002
      %3004 = vrot.lane.b32.xlu0 %v1313, 61
      %v3005 = vpop.permute.xlu0 %3004
      %3006 = vrot.lane.b32.xlu0 %v1314, 61
      %v3007 = vpop.permute.xlu0 %3006
      %vm3008 = vcmask 498688
      %v3009 = vsel %vm3008, %v2967, %v2969
      %v3010 = vsel %vm3008, %v2969, %v2971
      %v3011 = vsel %vm3008, %v2971, %v2973
      %v3012 = vsel %vm3008, %v2973, %v2975
      %v3013 = vsel %vm3008, %v2975, %v2977
      %v3014 = vsel %vm3008, %v2977, %v2979
      %v3015 = vsel %vm3008, %v2979, %v2981
      %v3016 = vsel %vm3008, %v2981, %v2983
      %v3017 = vsel %vm3008, %v2983, %v2985
      %v3018 = vsel %vm3008, %v2985, %v2987
      %v3019 = vsel %vm3008, %v2987, %v2989
      %v3020 = vsel %vm3008, %v2989, %v2991
      %v3021 = vsel %vm3008, %v2991, %v2993
      %v3022 = vsel %vm3008, %v2993, %v2995
      %v3023 = vsel %vm3008, %v2995, %v2997
      %v3024 = vsel %vm3008, %v2997, %v2999
      %v3025 = vsel %vm3008, %v2999, %v3001
      %v3026 = vsel %vm3008, %v3001, %v3003
      %v3027 = vsel %vm3008, %v3003, %v3005
      %v3028 = vsel %vm3008, %v3005, %v3007
      %3029 = vrot.lane.b32.xlu0 %v1312, 60
      %v3030 = vpop.permute.xlu0 %3029
      %3031 = vrot.lane.b32.xlu0 %v1313, 60
      %v3032 = vpop.permute.xlu0 %3031
      %3033 = vrot.lane.b32.xlu0 %v1314, 60
      %v3034 = vpop.permute.xlu0 %3033
      %v3035 = vsel %vm2038, %v2037, %v3030
      %v3036 = vsel %vm2038, %v3030, %v3032
      %v3037 = vsel %vm2038, %v3032, %v3034
      %3038 = vrot.lane.b32.xlu0 %v1312, 59
      %v3039 = vpop.permute.xlu0 %3038
      %3040 = vrot.lane.b32.xlu0 %v1313, 59
      %v3041 = vpop.permute.xlu0 %3040
      %3042 = vrot.lane.b32.xlu0 %v1314, 59
      %v3043 = vpop.permute.xlu0 %3042
      %v3044 = vsel %vm2121, %v2120, %v3039
      %v3045 = vsel %vm2121, %v3039, %v3041
      %v3046 = vsel %vm2121, %v3041, %v3043
      %3047 = vrot.lane.b32.xlu0 %v1291, 23
      %v3048 = vpop.permute.xlu0 %3047
      %3049 = vrot.lane.b32.xlu0 %v1292, 23
      %v3050 = vpop.permute.xlu0 %3049
      %3051 = vrot.lane.b32.xlu0 %v1293, 23
      %v3052 = vpop.permute.xlu0 %3051
      %3053 = vrot.lane.b32.xlu0 %v1294, 23
      %v3054 = vpop.permute.xlu0 %3053
      %3055 = vrot.lane.b32.xlu0 %v1295, 23
      %v3056 = vpop.permute.xlu0 %3055
      %3057 = vrot.lane.b32.xlu0 %v1296, 23
      %v3058 = vpop.permute.xlu0 %3057
      %3059 = vrot.lane.b32.xlu0 %v1297, 23
      %v3060 = vpop.permute.xlu0 %3059
      %3061 = vrot.lane.b32.xlu0 %v1298, 23
      %v3062 = vpop.permute.xlu0 %3061
      %3063 = vrot.lane.b32.xlu0 %v1299, 23
      %v3064 = vpop.permute.xlu0 %3063
      %3065 = vrot.lane.b32.xlu0 %v1300, 23
      %v3066 = vpop.permute.xlu0 %3065
      %3067 = vrot.lane.b32.xlu0 %v1301, 23
      %v3068 = vpop.permute.xlu0 %3067
      %3069 = vrot.lane.b32.xlu0 %v1302, 23
      %v3070 = vpop.permute.xlu0 %3069
      %3071 = vrot.lane.b32.xlu0 %v1303, 23
      %v3072 = vpop.permute.xlu0 %3071
      %3073 = vrot.lane.b32.xlu0 %v1304, 23
      %v3074 = vpop.permute.xlu0 %3073
      %3075 = vrot.lane.b32.xlu0 %v1305, 23
      %v3076 = vpop.permute.xlu0 %3075
      %3077 = vrot.lane.b32.xlu0 %v1306, 23
      %v3078 = vpop.permute.xlu0 %3077
      %3079 = vrot.lane.b32.xlu0 %v1307, 23
      %v3080 = vpop.permute.xlu0 %3079
      %3081 = vrot.lane.b32.xlu0 %v1308, 23
      %v3082 = vpop.permute.xlu0 %3081
      %3083 = vrot.lane.b32.xlu0 %v1309, 23
      %v3084 = vpop.permute.xlu0 %3083
      %3085 = vrot.lane.b32.xlu0 %v1310, 23
      %v3086 = vpop.permute.xlu0 %3085
      %3087 = vrot.lane.b32.xlu0 %v1311, 23
      %v3088 = vpop.permute.xlu0 %3087
      %3089 = vrot.lane.b32.xlu0 %v1378, 23
      %v3090 = vpop.permute.xlu0 %3089
      %3091 = vrot.lane.b32.xlu0 %v1379, 23
      %v3092 = vpop.permute.xlu0 %3091
      %3093 = vrot.lane.b32.xlu0 %v1380, 23
      %v3094 = vpop.permute.xlu0 %3093
      %3095 = vrot.lane.b32.xlu0 %v1381, 23
      %v3096 = vpop.permute.xlu0 %3095
      %3097 = vrot.lane.b32.xlu0 %v1382, 23
      %v3098 = vpop.permute.xlu0 %3097
      %3099 = vrot.lane.b32.xlu0 %v1383, 23
      %v3100 = vpop.permute.xlu0 %3099
      %3101 = vrot.lane.b32.xlu0 %v1384, 23
      %v3102 = vpop.permute.xlu0 %3101
      %3103 = vrot.lane.b32.xlu0 %v1385, 23
      %v3104 = vpop.permute.xlu0 %3103
      %3105 = vrot.lane.b32.xlu0 %v1386, 23
      %v3106 = vpop.permute.xlu0 %3105
      %3107 = vrot.lane.b32.xlu0 %v1387, 23
      %v3108 = vpop.permute.xlu0 %3107
      %3109 = vrot.lane.b32.xlu0 %v1388, 23
      %v3110 = vpop.permute.xlu0 %3109
      %3111 = vrot.lane.b32.xlu0 %v1389, 23
      %v3112 = vpop.permute.xlu0 %3111
      %3113 = vrot.lane.b32.xlu0 %v1390, 23
      %v3114 = vpop.permute.xlu0 %3113
      %3115 = vrot.lane.b32.xlu0 %v1391, 23
      %v3116 = vpop.permute.xlu0 %3115
      %3117 = vrot.lane.b32.xlu0 %v1392, 23
      %v3118 = vpop.permute.xlu0 %3117
      %3119 = vrot.lane.b32.xlu0 %v1393, 23
      %v3120 = vpop.permute.xlu0 %3119
      %3121 = vrot.lane.b32.xlu0 %v1394, 23
      %v3122 = vpop.permute.xlu0 %3121
      %3123 = vrot.lane.b32.xlu0 %v2582, 23
      %v3124 = vpop.permute.xlu0 %3123
      %3125 = vrot.lane.b32.xlu0 %v2583, 23
      %v3126 = vpop.permute.xlu0 %3125
      %3127 = vrot.lane.b32.xlu0 %v2584, 23
      %v3128 = vpop.permute.xlu0 %3127
      %3129 = vrot.lane.b32.xlu0 %v2581, 23
      %v3130 = vpop.permute.xlu0 %3129
      %3131 = vrot.lane.b32.xlu0 %v2589, 23
      %v3132 = vpop.permute.xlu0 %3131
      %3133 = vrot.lane.b32.xlu0 %v2631, 23
      %v3134 = vpop.permute.xlu0 %3133
      %3135 = vrot.lane.b32.xlu0 %v2632, 23
      %v3136 = vpop.permute.xlu0 %3135
      %3137 = vrot.lane.b32.xlu0 %v2633, 23
      %v3138 = vpop.permute.xlu0 %3137
      %3139 = vrot.lane.b32.xlu0 %v2634, 23
      %v3140 = vpop.permute.xlu0 %3139
      %3141 = vrot.lane.b32.xlu0 %v2635, 23
      %v3142 = vpop.permute.xlu0 %3141
      %3143 = vrot.lane.b32.xlu0 %v2636, 23
      %v3144 = vpop.permute.xlu0 %3143
      %3145 = vrot.lane.b32.xlu0 %v2637, 23
      %v3146 = vpop.permute.xlu0 %3145
      %3147 = vrot.lane.b32.xlu0 %v2638, 23
      %v3148 = vpop.permute.xlu0 %3147
      %3149 = vrot.lane.b32.xlu0 %v2639, 23
      %v3150 = vpop.permute.xlu0 %3149
      %3151 = vrot.lane.b32.xlu0 %v2640, 23
      %v3152 = vpop.permute.xlu0 %3151
      %3153 = vrot.lane.b32.xlu0 %v2641, 23
      %v3154 = vpop.permute.xlu0 %3153
      %3155 = vrot.lane.b32.xlu0 %v2642, 23
      %v3156 = vpop.permute.xlu0 %3155
      %3157 = vrot.lane.b32.xlu0 %v2643, 23
      %v3158 = vpop.permute.xlu0 %3157
      %3159 = vrot.lane.b32.xlu0 %v2644, 23
      %v3160 = vpop.permute.xlu0 %3159
      %3161 = vrot.lane.b32.xlu0 %v2645, 23
      %v3162 = vpop.permute.xlu0 %3161
      %3163 = vrot.lane.b32.xlu0 %v2646, 23
      %v3164 = vpop.permute.xlu0 %3163
      %3165 = vrot.lane.b32.xlu0 %v2647, 23
      %v3166 = vpop.permute.xlu0 %3165
      %3167 = vrot.lane.b32.xlu0 %v2648, 23
      %v3168 = vpop.permute.xlu0 %3167
      %3169 = vrot.lane.b32.xlu0 %v2649, 23
      %v3170 = vpop.permute.xlu0 %3169
      %3171 = vrot.lane.b32.xlu0 %v2650, 23
      %v3172 = vpop.permute.xlu0 %3171
      %3173 = vrot.lane.b32.xlu0 %v2652, 23
      %v3174 = vpop.permute.xlu0 %3173
      %3175 = vrot.lane.b32.xlu0 %v2694, 23
      %v3176 = vpop.permute.xlu0 %3175
      %3177 = vrot.lane.b32.xlu0 %v2695, 23
      %v3178 = vpop.permute.xlu0 %3177
      %3179 = vrot.lane.b32.xlu0 %v2696, 23
      %v3180 = vpop.permute.xlu0 %3179
      %3181 = vrot.lane.b32.xlu0 %v2697, 23
      %v3182 = vpop.permute.xlu0 %3181
      %3183 = vrot.lane.b32.xlu0 %v2698, 23
      %v3184 = vpop.permute.xlu0 %3183
      %3185 = vrot.lane.b32.xlu0 %v2699, 23
      %v3186 = vpop.permute.xlu0 %3185
      %3187 = vrot.lane.b32.xlu0 %v2700, 23
      %v3188 = vpop.permute.xlu0 %3187
      %3189 = vrot.lane.b32.xlu0 %v2701, 23
      %v3190 = vpop.permute.xlu0 %3189
      %3191 = vrot.lane.b32.xlu0 %v2702, 23
      %v3192 = vpop.permute.xlu0 %3191
      %3193 = vrot.lane.b32.xlu0 %v2703, 23
      %v3194 = vpop.permute.xlu0 %3193
      %3195 = vrot.lane.b32.xlu0 %v2704, 23
      %v3196 = vpop.permute.xlu0 %3195
      %3197 = vrot.lane.b32.xlu0 %v2705, 23
      %v3198 = vpop.permute.xlu0 %3197
      %3199 = vrot.lane.b32.xlu0 %v2706, 23
      %v3200 = vpop.permute.xlu0 %3199
      %3201 = vrot.lane.b32.xlu0 %v2707, 23
      %v3202 = vpop.permute.xlu0 %3201
      %3203 = vrot.lane.b32.xlu0 %v2708, 23
      %v3204 = vpop.permute.xlu0 %3203
      %3205 = vrot.lane.b32.xlu0 %v2709, 23
      %v3206 = vpop.permute.xlu0 %3205
      %3207 = vrot.lane.b32.xlu0 %v2710, 23
      %v3208 = vpop.permute.xlu0 %3207
      %3209 = vrot.lane.b32.xlu0 %v2711, 23
      %v3210 = vpop.permute.xlu0 %3209
      %3211 = vrot.lane.b32.xlu0 %v2712, 23
      %v3212 = vpop.permute.xlu0 %3211
      %3213 = vrot.lane.b32.xlu0 %v2713, 23
      %v3214 = vpop.permute.xlu0 %3213
      %3215 = vrot.lane.b32.xlu0 %v2715, 23
      %v3216 = vpop.permute.xlu0 %3215
      %3217 = vrot.lane.b32.xlu0 %v2757, 23
      %v3218 = vpop.permute.xlu0 %3217
      %3219 = vrot.lane.b32.xlu0 %v2758, 23
      %v3220 = vpop.permute.xlu0 %3219
      %3221 = vrot.lane.b32.xlu0 %v2759, 23
      %v3222 = vpop.permute.xlu0 %3221
      %3223 = vrot.lane.b32.xlu0 %v2760, 23
      %v3224 = vpop.permute.xlu0 %3223
      %3225 = vrot.lane.b32.xlu0 %v2761, 23
      %v3226 = vpop.permute.xlu0 %3225
      %3227 = vrot.lane.b32.xlu0 %v2762, 23
      %v3228 = vpop.permute.xlu0 %3227
      %3229 = vrot.lane.b32.xlu0 %v2763, 23
      %v3230 = vpop.permute.xlu0 %3229
      %3231 = vrot.lane.b32.xlu0 %v2764, 23
      %v3232 = vpop.permute.xlu0 %3231
      %3233 = vrot.lane.b32.xlu0 %v2765, 23
      %v3234 = vpop.permute.xlu0 %3233
      %3235 = vrot.lane.b32.xlu0 %v2766, 23
      %v3236 = vpop.permute.xlu0 %3235
      %3237 = vrot.lane.b32.xlu0 %v2767, 23
      %v3238 = vpop.permute.xlu0 %3237
      %3239 = vrot.lane.b32.xlu0 %v2768, 23
      %v3240 = vpop.permute.xlu0 %3239
      %3241 = vrot.lane.b32.xlu0 %v2769, 23
      %v3242 = vpop.permute.xlu0 %3241
      %3243 = vrot.lane.b32.xlu0 %v2770, 23
      %v3244 = vpop.permute.xlu0 %3243
      %3245 = vrot.lane.b32.xlu0 %v2771, 23
      %v3246 = vpop.permute.xlu0 %3245
      %3247 = vrot.lane.b32.xlu0 %v2772, 23
      %v3248 = vpop.permute.xlu0 %3247
      %3249 = vrot.lane.b32.xlu0 %v2773, 23
      %v3250 = vpop.permute.xlu0 %3249
      %3251 = vrot.lane.b32.xlu0 %v2774, 23
      %v3252 = vpop.permute.xlu0 %3251
      %3253 = vrot.lane.b32.xlu0 %v2775, 23
      %v3254 = vpop.permute.xlu0 %3253
      %3255 = vrot.lane.b32.xlu0 %v2776, 23
      %v3256 = vpop.permute.xlu0 %3255
      %3257 = vrot.lane.b32.xlu0 %v2778, 23
      %v3258 = vpop.permute.xlu0 %3257
      %3259 = vrot.lane.b32.xlu0 %v2820, 23
      %v3260 = vpop.permute.xlu0 %3259
      %3261 = vrot.lane.b32.xlu0 %v2821, 23
      %v3262 = vpop.permute.xlu0 %3261
      %3263 = vrot.lane.b32.xlu0 %v2822, 23
      %v3264 = vpop.permute.xlu0 %3263
      %3265 = vrot.lane.b32.xlu0 %v2823, 23
      %v3266 = vpop.permute.xlu0 %3265
      %3267 = vrot.lane.b32.xlu0 %v2824, 23
      %v3268 = vpop.permute.xlu0 %3267
      %3269 = vrot.lane.b32.xlu0 %v2825, 23
      %v3270 = vpop.permute.xlu0 %3269
      %3271 = vrot.lane.b32.xlu0 %v2826, 23
      %v3272 = vpop.permute.xlu0 %3271
      %3273 = vrot.lane.b32.xlu0 %v2827, 23
      %v3274 = vpop.permute.xlu0 %3273
      %3275 = vrot.lane.b32.xlu0 %v2828, 23
      %v3276 = vpop.permute.xlu0 %3275
      %3277 = vrot.lane.b32.xlu0 %v2829, 23
      %v3278 = vpop.permute.xlu0 %3277
      %3279 = vrot.lane.b32.xlu0 %v2830, 23
      %v3280 = vpop.permute.xlu0 %3279
      %3281 = vrot.lane.b32.xlu0 %v2831, 23
      %v3282 = vpop.permute.xlu0 %3281
      %3283 = vrot.lane.b32.xlu0 %v2832, 23
      %v3284 = vpop.permute.xlu0 %3283
      %3285 = vrot.lane.b32.xlu0 %v2833, 23
      %v3286 = vpop.permute.xlu0 %3285
      %3287 = vrot.lane.b32.xlu0 %v2834, 23
      %v3288 = vpop.permute.xlu0 %3287
      %3289 = vrot.lane.b32.xlu0 %v2835, 23
      %v3290 = vpop.permute.xlu0 %3289
      %3291 = vrot.lane.b32.xlu0 %v2836, 23
      %v3292 = vpop.permute.xlu0 %3291
      %3293 = vrot.lane.b32.xlu0 %v2837, 23
      %v3294 = vpop.permute.xlu0 %3293
      %3295 = vrot.lane.b32.xlu0 %v2838, 23
      %v3296 = vpop.permute.xlu0 %3295
      %3297 = vrot.lane.b32.xlu0 %v2839, 23
      %v3298 = vpop.permute.xlu0 %3297
      %3299 = vrot.lane.b32.xlu0 %v2841, 23
      %v3300 = vpop.permute.xlu0 %3299
      %3301 = vrot.lane.b32.xlu0 %v2883, 23
      %v3302 = vpop.permute.xlu0 %3301
      %3303 = vrot.lane.b32.xlu0 %v2884, 23
      %v3304 = vpop.permute.xlu0 %3303
      %3305 = vrot.lane.b32.xlu0 %v2885, 23
      %v3306 = vpop.permute.xlu0 %3305
      %3307 = vrot.lane.b32.xlu0 %v2886, 23
      %v3308 = vpop.permute.xlu0 %3307
      %3309 = vrot.lane.b32.xlu0 %v2887, 23
      %v3310 = vpop.permute.xlu0 %3309
      %3311 = vrot.lane.b32.xlu0 %v2888, 23
      %v3312 = vpop.permute.xlu0 %3311
      %3313 = vrot.lane.b32.xlu0 %v2889, 23
      %v3314 = vpop.permute.xlu0 %3313
      %3315 = vrot.lane.b32.xlu0 %v2890, 23
      %v3316 = vpop.permute.xlu0 %3315
      %3317 = vrot.lane.b32.xlu0 %v2891, 23
      %v3318 = vpop.permute.xlu0 %3317
      %3319 = vrot.lane.b32.xlu0 %v2892, 23
      %v3320 = vpop.permute.xlu0 %3319
      %3321 = vrot.lane.b32.xlu0 %v2893, 23
      %v3322 = vpop.permute.xlu0 %3321
      %3323 = vrot.lane.b32.xlu0 %v2894, 23
      %v3324 = vpop.permute.xlu0 %3323
      %3325 = vrot.lane.b32.xlu0 %v2895, 23
      %v3326 = vpop.permute.xlu0 %3325
      %3327 = vrot.lane.b32.xlu0 %v2896, 23
      %v3328 = vpop.permute.xlu0 %3327
      %3329 = vrot.lane.b32.xlu0 %v2897, 23
      %v3330 = vpop.permute.xlu0 %3329
      %3331 = vrot.lane.b32.xlu0 %v2898, 23
      %v3332 = vpop.permute.xlu0 %3331
      %3333 = vrot.lane.b32.xlu0 %v2899, 23
      %v3334 = vpop.permute.xlu0 %3333
      %3335 = vrot.lane.b32.xlu0 %v2900, 23
      %v3336 = vpop.permute.xlu0 %3335
      %3337 = vrot.lane.b32.xlu0 %v2901, 23
      %v3338 = vpop.permute.xlu0 %3337
      %3339 = vrot.lane.b32.xlu0 %v2902, 23
      %v3340 = vpop.permute.xlu0 %3339
      %3341 = vrot.lane.b32.xlu0 %v2904, 23
      %v3342 = vpop.permute.xlu0 %3341
      %3343 = vrot.lane.b32.xlu0 %v2946, 23
      %v3344 = vpop.permute.xlu0 %3343
      %3345 = vrot.lane.b32.xlu0 %v2947, 23
      %v3346 = vpop.permute.xlu0 %3345
      %3347 = vrot.lane.b32.xlu0 %v2948, 23
      %v3348 = vpop.permute.xlu0 %3347
      %3349 = vrot.lane.b32.xlu0 %v2949, 23
      %v3350 = vpop.permute.xlu0 %3349
      %3351 = vrot.lane.b32.xlu0 %v2950, 23
      %v3352 = vpop.permute.xlu0 %3351
      %3353 = vrot.lane.b32.xlu0 %v2951, 23
      %v3354 = vpop.permute.xlu0 %3353
      %3355 = vrot.lane.b32.xlu0 %v2952, 23
      %v3356 = vpop.permute.xlu0 %3355
      %3357 = vrot.lane.b32.xlu0 %v2953, 23
      %v3358 = vpop.permute.xlu0 %3357
      %3359 = vrot.lane.b32.xlu0 %v2954, 23
      %v3360 = vpop.permute.xlu0 %3359
      %3361 = vrot.lane.b32.xlu0 %v2955, 23
      %v3362 = vpop.permute.xlu0 %3361
      %3363 = vrot.lane.b32.xlu0 %v2956, 23
      %v3364 = vpop.permute.xlu0 %3363
      %3365 = vrot.lane.b32.xlu0 %v2957, 23
      %v3366 = vpop.permute.xlu0 %3365
      %3367 = vrot.lane.b32.xlu0 %v2958, 23
      %v3368 = vpop.permute.xlu0 %3367
      %3369 = vrot.lane.b32.xlu0 %v2959, 23
      %v3370 = vpop.permute.xlu0 %3369
      %3371 = vrot.lane.b32.xlu0 %v2960, 23
      %v3372 = vpop.permute.xlu0 %3371
      %3373 = vrot.lane.b32.xlu0 %v2961, 23
      %v3374 = vpop.permute.xlu0 %3373
      %3375 = vrot.lane.b32.xlu0 %v2962, 23
      %v3376 = vpop.permute.xlu0 %3375
      %3377 = vrot.lane.b32.xlu0 %v2963, 23
      %v3378 = vpop.permute.xlu0 %3377
      %3379 = vrot.lane.b32.xlu0 %v2964, 23
      %v3380 = vpop.permute.xlu0 %3379
      %3381 = vrot.lane.b32.xlu0 %v2965, 23
      %v3382 = vpop.permute.xlu0 %3381
      %3383 = vrot.lane.b32.xlu0 %v2967, 23
      %v3384 = vpop.permute.xlu0 %3383
      %3385 = vrot.lane.b32.xlu0 %v3009, 23
      %v3386 = vpop.permute.xlu0 %3385
      %3387 = vrot.lane.b32.xlu0 %v3010, 23
      %v3388 = vpop.permute.xlu0 %3387
      %3389 = vrot.lane.b32.xlu0 %v3011, 23
      %v3390 = vpop.permute.xlu0 %3389
      %3391 = vrot.lane.b32.xlu0 %v3012, 23
      %v3392 = vpop.permute.xlu0 %3391
      %3393 = vrot.lane.b32.xlu0 %v3013, 23
      %v3394 = vpop.permute.xlu0 %3393
      %3395 = vrot.lane.b32.xlu0 %v3014, 23
      %v3396 = vpop.permute.xlu0 %3395
      %3397 = vrot.lane.b32.xlu0 %v3015, 23
      %v3398 = vpop.permute.xlu0 %3397
      %3399 = vrot.lane.b32.xlu0 %v3016, 23
      %v3400 = vpop.permute.xlu0 %3399
      %3401 = vrot.lane.b32.xlu0 %v3017, 23
      %v3402 = vpop.permute.xlu0 %3401
      %3403 = vrot.lane.b32.xlu0 %v3018, 23
      %v3404 = vpop.permute.xlu0 %3403
      %3405 = vrot.lane.b32.xlu0 %v3019, 23
      %v3406 = vpop.permute.xlu0 %3405
      %3407 = vrot.lane.b32.xlu0 %v3020, 23
      %v3408 = vpop.permute.xlu0 %3407
      %3409 = vrot.lane.b32.xlu0 %v3021, 23
      %v3410 = vpop.permute.xlu0 %3409
      %3411 = vrot.lane.b32.xlu0 %v3022, 23
      %v3412 = vpop.permute.xlu0 %3411
      %3413 = vrot.lane.b32.xlu0 %v3023, 23
      %v3414 = vpop.permute.xlu0 %3413
      %3415 = vrot.lane.b32.xlu0 %v3024, 23
      %v3416 = vpop.permute.xlu0 %3415
      %3417 = vrot.lane.b32.xlu0 %v3025, 23
      %v3418 = vpop.permute.xlu0 %3417
      %3419 = vrot.lane.b32.xlu0 %v3026, 23
      %v3420 = vpop.permute.xlu0 %3419
      %3421 = vrot.lane.b32.xlu0 %v3027, 23
      %v3422 = vpop.permute.xlu0 %3421
      %3423 = vrot.lane.b32.xlu0 %v3028, 23
      %v3424 = vpop.permute.xlu0 %3423
      %3425 = vrot.lane.b32.xlu0 %v2003, 23
      %v3426 = vpop.permute.xlu0 %3425
      %3427 = vrot.lane.b32.xlu0 %v2042, 23
      %v3428 = vpop.permute.xlu0 %3427
      %3429 = vrot.lane.b32.xlu0 %v2043, 23
      %v3430 = vpop.permute.xlu0 %3429
      %3431 = vrot.lane.b32.xlu0 %v2044, 23
      %v3432 = vpop.permute.xlu0 %3431
      %3433 = vrot.lane.b32.xlu0 %v2045, 23
      %v3434 = vpop.permute.xlu0 %3433
      %3435 = vrot.lane.b32.xlu0 %v2046, 23
      %v3436 = vpop.permute.xlu0 %3435
      %3437 = vrot.lane.b32.xlu0 %v2047, 23
      %v3438 = vpop.permute.xlu0 %3437
      %3439 = vrot.lane.b32.xlu0 %v2048, 23
      %v3440 = vpop.permute.xlu0 %3439
      %3441 = vrot.lane.b32.xlu0 %v2049, 23
      %v3442 = vpop.permute.xlu0 %3441
      %3443 = vrot.lane.b32.xlu0 %v2050, 23
      %v3444 = vpop.permute.xlu0 %3443
      %3445 = vrot.lane.b32.xlu0 %v2051, 23
      %v3446 = vpop.permute.xlu0 %3445
      %3447 = vrot.lane.b32.xlu0 %v2052, 23
      %v3448 = vpop.permute.xlu0 %3447
      %3449 = vrot.lane.b32.xlu0 %v2053, 23
      %v3450 = vpop.permute.xlu0 %3449
      %3451 = vrot.lane.b32.xlu0 %v2054, 23
      %v3452 = vpop.permute.xlu0 %3451
      %3453 = vrot.lane.b32.xlu0 %v2055, 23
      %v3454 = vpop.permute.xlu0 %3453
      %3455 = vrot.lane.b32.xlu0 %v2056, 23
      %v3456 = vpop.permute.xlu0 %3455
      %3457 = vrot.lane.b32.xlu0 %v2057, 23
      %v3458 = vpop.permute.xlu0 %3457
      %3459 = vrot.lane.b32.xlu0 %v2058, 23
      %v3460 = vpop.permute.xlu0 %3459
      %3461 = vrot.lane.b32.xlu0 %v3035, 23
      %v3462 = vpop.permute.xlu0 %3461
      %3463 = vrot.lane.b32.xlu0 %v3036, 23
      %v3464 = vpop.permute.xlu0 %3463
      %3465 = vrot.lane.b32.xlu0 %v3037, 23
      %v3466 = vpop.permute.xlu0 %3465
      %3467 = vrot.lane.b32.xlu0 %v2086, 23
      %v3468 = vpop.permute.xlu0 %3467
      %3469 = vrot.lane.b32.xlu0 %v2125, 23
      %v3470 = vpop.permute.xlu0 %3469
      %3471 = vrot.lane.b32.xlu0 %v2126, 23
      %v3472 = vpop.permute.xlu0 %3471
      %3473 = vrot.lane.b32.xlu0 %v2127, 23
      %v3474 = vpop.permute.xlu0 %3473
      %3475 = vrot.lane.b32.xlu0 %v2128, 23
      %v3476 = vpop.permute.xlu0 %3475
      %3477 = vrot.lane.b32.xlu0 %v2129, 23
      %v3478 = vpop.permute.xlu0 %3477
      %3479 = vrot.lane.b32.xlu0 %v2130, 23
      %v3480 = vpop.permute.xlu0 %3479
      %3481 = vrot.lane.b32.xlu0 %v2131, 23
      %v3482 = vpop.permute.xlu0 %3481
      %3483 = vrot.lane.b32.xlu0 %v2132, 23
      %v3484 = vpop.permute.xlu0 %3483
      %3485 = vrot.lane.b32.xlu0 %v2133, 23
      %v3486 = vpop.permute.xlu0 %3485
      %3487 = vrot.lane.b32.xlu0 %v2134, 23
      %v3488 = vpop.permute.xlu0 %3487
      %3489 = vrot.lane.b32.xlu0 %v2135, 23
      %v3490 = vpop.permute.xlu0 %3489
      %3491 = vrot.lane.b32.xlu0 %v2136, 23
      %v3492 = vpop.permute.xlu0 %3491
      %3493 = vrot.lane.b32.xlu0 %v2137, 23
      %v3494 = vpop.permute.xlu0 %3493
      %3495 = vrot.lane.b32.xlu0 %v2138, 23
      %v3496 = vpop.permute.xlu0 %3495
      %3497 = vrot.lane.b32.xlu0 %v2139, 23
      %v3498 = vpop.permute.xlu0 %3497
      %3499 = vrot.lane.b32.xlu0 %v2140, 23
      %v3500 = vpop.permute.xlu0 %3499
      %3501 = vrot.lane.b32.xlu0 %v2141, 23
      %v3502 = vpop.permute.xlu0 %3501
      %3503 = vrot.lane.b32.xlu0 %v3044, 23
      %v3504 = vpop.permute.xlu0 %3503
      %3505 = vrot.lane.b32.xlu0 %v3045, 23
      %v3506 = vpop.permute.xlu0 %3505
      %3507 = vrot.lane.b32.xlu0 %v3046, 23
      %v3508 = vpop.permute.xlu0 %3507
      %vm3509 = vcmask 187392
      %v3510 = vsel %vm3509, %v3048, %v3050
      %v3511 = vsel %vm3509, %v3050, %v3052
      %v3512 = vsel %vm3509, %v3052, %v3054
      %v3513 = vsel %vm3509, %v3054, %v3056
      %v3514 = vsel %vm3509, %v3056, %v3058
      %v3515 = vsel %vm3509, %v3058, %v3060
      %v3516 = vsel %vm3509, %v3060, %v3062
      %v3517 = vsel %vm3509, %v3062, %v3064
      %v3518 = vsel %vm3509, %v3064, %v3066
      %v3519 = vsel %vm3509, %v3066, %v3068
      %v3520 = vsel %vm3509, %v3068, %v3070
      %v3521 = vsel %vm3509, %v3070, %v3072
      %v3522 = vsel %vm3509, %v3072, %v3074
      %v3523 = vsel %vm3509, %v3074, %v3076
      %v3524 = vsel %vm3509, %v3076, %v3078
      %v3525 = vsel %vm3509, %v3078, %v3080
      %v3526 = vsel %vm3509, %v3080, %v3082
      %v3527 = vsel %vm3509, %v3082, %v3084
      %v3528 = vsel %vm3509, %v3084, %v3086
      %v3529 = vsel %vm3509, %v3086, %v3088
      %v3530 = vsel %vm3509, %v3090, %v3092
      %v3531 = vsel %vm3509, %v3092, %v3094
      %v3532 = vsel %vm3509, %v3094, %v3096
      %v3533 = vsel %vm3509, %v3096, %v3098
      %v3534 = vsel %vm3509, %v3098, %v3100
      %v3535 = vsel %vm3509, %v3100, %v3102
      %v3536 = vsel %vm3509, %v3102, %v3104
      %v3537 = vsel %vm3509, %v3104, %v3106
      %v3538 = vsel %vm3509, %v3106, %v3108
      %v3539 = vsel %vm3509, %v3108, %v3110
      %v3540 = vsel %vm3509, %v3110, %v3112
      %v3541 = vsel %vm3509, %v3112, %v3114
      %v3542 = vsel %vm3509, %v3114, %v3116
      %v3543 = vsel %vm3509, %v3116, %v3118
      %v3544 = vsel %vm3509, %v3118, %v3120
      %v3545 = vsel %vm3509, %v3120, %v3122
      %v3546 = vsel %vm3509, %v3122, %v3124
      %v3547 = vsel %vm3509, %v3124, %v3126
      %v3548 = vsel %vm3509, %v3126, %v3128
      %v3549 = vsel %vm3509, %v3128, %v3130
      %v3550 = vsel %vm3509, %v3132, %v3134
      %v3551 = vsel %vm3509, %v3134, %v3136
      %v3552 = vsel %vm3509, %v3136, %v3138
      %v3553 = vsel %vm3509, %v3138, %v3140
      %v3554 = vsel %vm3509, %v3140, %v3142
      %v3555 = vsel %vm3509, %v3142, %v3144
      %v3556 = vsel %vm3509, %v3144, %v3146
      %v3557 = vsel %vm3509, %v3146, %v3148
      %v3558 = vsel %vm3509, %v3148, %v3150
      %v3559 = vsel %vm3509, %v3150, %v3152
      %v3560 = vsel %vm3509, %v3152, %v3154
      %v3561 = vsel %vm3509, %v3154, %v3156
      %v3562 = vsel %vm3509, %v3156, %v3158
      %v3563 = vsel %vm3509, %v3158, %v3160
      %v3564 = vsel %vm3509, %v3160, %v3162
      %v3565 = vsel %vm3509, %v3162, %v3164
      %v3566 = vsel %vm3509, %v3164, %v3166
      %v3567 = vsel %vm3509, %v3166, %v3168
      %v3568 = vsel %vm3509, %v3168, %v3170
      %v3569 = vsel %vm3509, %v3170, %v3172
      %v3570 = vsel %vm3509, %v3174, %v3176
      %v3571 = vsel %vm3509, %v3176, %v3178
      %v3572 = vsel %vm3509, %v3178, %v3180
      %v3573 = vsel %vm3509, %v3180, %v3182
      %v3574 = vsel %vm3509, %v3182, %v3184
      %v3575 = vsel %vm3509, %v3184, %v3186
      %v3576 = vsel %vm3509, %v3186, %v3188
      %v3577 = vsel %vm3509, %v3188, %v3190
      %v3578 = vsel %vm3509, %v3190, %v3192
      %v3579 = vsel %vm3509, %v3192, %v3194
      %v3580 = vsel %vm3509, %v3194, %v3196
      %v3581 = vsel %vm3509, %v3196, %v3198
      %v3582 = vsel %vm3509, %v3198, %v3200
      %v3583 = vsel %vm3509, %v3200, %v3202
      %v3584 = vsel %vm3509, %v3202, %v3204
      %v3585 = vsel %vm3509, %v3204, %v3206
      %v3586 = vsel %vm3509, %v3206, %v3208
      %v3587 = vsel %vm3509, %v3208, %v3210
      %v3588 = vsel %vm3509, %v3210, %v3212
      %v3589 = vsel %vm3509, %v3212, %v3214
      %v3590 = vsel %vm3509, %v3216, %v3218
      %v3591 = vsel %vm3509, %v3218, %v3220
      %v3592 = vsel %vm3509, %v3220, %v3222
      %v3593 = vsel %vm3509, %v3222, %v3224
      %v3594 = vsel %vm3509, %v3224, %v3226
      %v3595 = vsel %vm3509, %v3226, %v3228
      %v3596 = vsel %vm3509, %v3228, %v3230
      %v3597 = vsel %vm3509, %v3230, %v3232
      %v3598 = vsel %vm3509, %v3232, %v3234
      %v3599 = vsel %vm3509, %v3234, %v3236
      %v3600 = vsel %vm3509, %v3236, %v3238
      %v3601 = vsel %vm3509, %v3238, %v3240
      %v3602 = vsel %vm3509, %v3240, %v3242
      %v3603 = vsel %vm3509, %v3242, %v3244
      %v3604 = vsel %vm3509, %v3244, %v3246
      %v3605 = vsel %vm3509, %v3246, %v3248
      %v3606 = vsel %vm3509, %v3248, %v3250
      %v3607 = vsel %vm3509, %v3250, %v3252
      %v3608 = vsel %vm3509, %v3252, %v3254
      %v3609 = vsel %vm3509, %v3254, %v3256
      %v3610 = vsel %vm3509, %v3258, %v3260
      %v3611 = vsel %vm3509, %v3260, %v3262
      %v3612 = vsel %vm3509, %v3262, %v3264
      %v3613 = vsel %vm3509, %v3264, %v3266
      %v3614 = vsel %vm3509, %v3266, %v3268
      %v3615 = vsel %vm3509, %v3268, %v3270
      %v3616 = vsel %vm3509, %v3270, %v3272
      %v3617 = vsel %vm3509, %v3272, %v3274
      %v3618 = vsel %vm3509, %v3274, %v3276
      %v3619 = vsel %vm3509, %v3276, %v3278
      %v3620 = vsel %vm3509, %v3278, %v3280
      %v3621 = vsel %vm3509, %v3280, %v3282
      %v3622 = vsel %vm3509, %v3282, %v3284
      %v3623 = vsel %vm3509, %v3284, %v3286
      %v3624 = vsel %vm3509, %v3286, %v3288
      %v3625 = vsel %vm3509, %v3288, %v3290
      %v3626 = vsel %vm3509, %v3290, %v3292
      %v3627 = vsel %vm3509, %v3292, %v3294
      %v3628 = vsel %vm3509, %v3294, %v3296
      %v3629 = vsel %vm3509, %v3296, %v3298
      %v3630 = vsel %vm3509, %v3300, %v3302
      %v3631 = vsel %vm3509, %v3302, %v3304
      %v3632 = vsel %vm3509, %v3304, %v3306
      %v3633 = vsel %vm3509, %v3306, %v3308
      %v3634 = vsel %vm3509, %v3308, %v3310
      %v3635 = vsel %vm3509, %v3310, %v3312
      %v3636 = vsel %vm3509, %v3312, %v3314
      %v3637 = vsel %vm3509, %v3314, %v3316
      %v3638 = vsel %vm3509, %v3316, %v3318
      %v3639 = vsel %vm3509, %v3318, %v3320
      %v3640 = vsel %vm3509, %v3320, %v3322
      %v3641 = vsel %vm3509, %v3322, %v3324
      %v3642 = vsel %vm3509, %v3324, %v3326
      %v3643 = vsel %vm3509, %v3326, %v3328
      %v3644 = vsel %vm3509, %v3328, %v3330
      %v3645 = vsel %vm3509, %v3330, %v3332
      %v3646 = vsel %vm3509, %v3332, %v3334
      %v3647 = vsel %vm3509, %v3334, %v3336
      %v3648 = vsel %vm3509, %v3336, %v3338
      %v3649 = vsel %vm3509, %v3338, %v3340
      %v3650 = vsel %vm3509, %v3342, %v3344
      %v3651 = vsel %vm3509, %v3344, %v3346
      %v3652 = vsel %vm3509, %v3346, %v3348
      %v3653 = vsel %vm3509, %v3348, %v3350
      %v3654 = vsel %vm3509, %v3350, %v3352
      %v3655 = vsel %vm3509, %v3352, %v3354
      %v3656 = vsel %vm3509, %v3354, %v3356
      %v3657 = vsel %vm3509, %v3356, %v3358
      %v3658 = vsel %vm3509, %v3358, %v3360
      %v3659 = vsel %vm3509, %v3360, %v3362
      %v3660 = vsel %vm3509, %v3362, %v3364
      %v3661 = vsel %vm3509, %v3364, %v3366
      %v3662 = vsel %vm3509, %v3366, %v3368
      %v3663 = vsel %vm3509, %v3368, %v3370
      %v3664 = vsel %vm3509, %v3370, %v3372
      %v3665 = vsel %vm3509, %v3372, %v3374
      %v3666 = vsel %vm3509, %v3374, %v3376
      %v3667 = vsel %vm3509, %v3376, %v3378
      %v3668 = vsel %vm3509, %v3378, %v3380
      %v3669 = vsel %vm3509, %v3380, %v3382
      %v3670 = vsel %vm3509, %v3384, %v3386
      %v3671 = vsel %vm3509, %v3386, %v3388
      %v3672 = vsel %vm3509, %v3388, %v3390
      %v3673 = vsel %vm3509, %v3390, %v3392
      %v3674 = vsel %vm3509, %v3392, %v3394
      %v3675 = vsel %vm3509, %v3394, %v3396
      %v3676 = vsel %vm3509, %v3396, %v3398
      %v3677 = vsel %vm3509, %v3398, %v3400
      %v3678 = vsel %vm3509, %v3400, %v3402
      %v3679 = vsel %vm3509, %v3402, %v3404
      %v3680 = vsel %vm3509, %v3404, %v3406
      %v3681 = vsel %vm3509, %v3406, %v3408
      %v3682 = vsel %vm3509, %v3408, %v3410
      %v3683 = vsel %vm3509, %v3410, %v3412
      %v3684 = vsel %vm3509, %v3412, %v3414
      %v3685 = vsel %vm3509, %v3414, %v3416
      %v3686 = vsel %vm3509, %v3416, %v3418
      %v3687 = vsel %vm3509, %v3418, %v3420
      %v3688 = vsel %vm3509, %v3420, %v3422
      %v3689 = vsel %vm3509, %v3422, %v3424
      %v3690 = vsel %vm3509, %v3426, %v3428
      %v3691 = vsel %vm3509, %v3428, %v3430
      %v3692 = vsel %vm3509, %v3430, %v3432
      %v3693 = vsel %vm3509, %v3432, %v3434
      %v3694 = vsel %vm3509, %v3434, %v3436
      %v3695 = vsel %vm3509, %v3436, %v3438
      %v3696 = vsel %vm3509, %v3438, %v3440
      %v3697 = vsel %vm3509, %v3440, %v3442
      %v3698 = vsel %vm3509, %v3442, %v3444
      %v3699 = vsel %vm3509, %v3444, %v3446
      %v3700 = vsel %vm3509, %v3446, %v3448
      %v3701 = vsel %vm3509, %v3448, %v3450
      %v3702 = vsel %vm3509, %v3450, %v3452
      %v3703 = vsel %vm3509, %v3452, %v3454
      %v3704 = vsel %vm3509, %v3454, %v3456
      %v3705 = vsel %vm3509, %v3456, %v3458
      %v3706 = vsel %vm3509, %v3458, %v3460
      %v3707 = vsel %vm3509, %v3460, %v3462
      %v3708 = vsel %vm3509, %v3462, %v3464
      %v3709 = vsel %vm3509, %v3464, %v3466
      %v3710 = vsel %vm3509, %v3468, %v3470
      %v3711 = vsel %vm3509, %v3470, %v3472
      %v3712 = vsel %vm3509, %v3472, %v3474
      %v3713 = vsel %vm3509, %v3474, %v3476
      %v3714 = vsel %vm3509, %v3476, %v3478
      %v3715 = vsel %vm3509, %v3478, %v3480
      %v3716 = vsel %vm3509, %v3480, %v3482
      %v3717 = vsel %vm3509, %v3482, %v3484
      %v3718 = vsel %vm3509, %v3484, %v3486
      %v3719 = vsel %vm3509, %v3486, %v3488
      %v3720 = vsel %vm3509, %v3488, %v3490
      %v3721 = vsel %vm3509, %v3490, %v3492
      %v3722 = vsel %vm3509, %v3492, %v3494
      %v3723 = vsel %vm3509, %v3494, %v3496
      %v3724 = vsel %vm3509, %v3496, %v3498
      %v3725 = vsel %vm3509, %v3498, %v3500
      %v3726 = vsel %vm3509, %v3500, %v3502
      %v3727 = vsel %vm3509, %v3502, %v3504
      %v3728 = vsel %vm3509, %v3504, %v3506
      %v3729 = vsel %vm3509, %v3506, %v3508
      %v3950 = vld [vmem:[%s5] sm:$0xff]
      %v3951 = vld [vmem:[%s5 + $0x8] sm:$0xff]
      %v3952 = vpack.c.bf16 %v3950, %v3950
      %v3953 = vpack.c.bf16 %v3951, %v3951
      %v3954 = vpack.c.bf16 %v1376, %v1289
      %v3955 = vpack.c.bf16 %v1377, %v1290
      %v3956 = vpack.c.bf16 %v1378, %v1291
      %v3957 = vpack.c.bf16 %v1379, %v1292
      %v3958 = vpack.c.bf16 %v1380, %v1293
      %v3959 = vpack.c.bf16 %v1381, %v1294
      %v3960 = vpack.c.bf16 %v1382, %v1295
      %v3961 = vpack.c.bf16 %v1383, %v1296
      %v3962 = vpack.c.bf16 %v1384, %v1297
      %v3963 = vpack.c.bf16 %v1385, %v1298
      %v3964 = vpack.c.bf16 %v1386, %v1299
      %v3965 = vpack.c.bf16 %v1387, %v1300
      %v3966 = vpack.c.bf16 %v1388, %v1301
      %v3967 = vpack.c.bf16 %v1389, %v1302
      %v3968 = vpack.c.bf16 %v1390, %v1303
      %v3969 = vpack.c.bf16 %v1391, %v1304
      %v3970 = vpack.c.bf16 %v1392, %v1305
      %v3971 = vpack.c.bf16 %v1393, %v1306
      %v3972 = vpack.c.bf16 %v1394, %v1307
      %v3973 = vpack.c.bf16 %v1374, %v1308
      %v3974 = vpack.c.bf16 %v1539, %v1456
      %v3975 = vpack.c.bf16 %v1540, %v1457
      %v3976 = vpack.c.bf16 %v1541, %v1458
      %v3977 = vpack.c.bf16 %v1542, %v1459
      %v3978 = vpack.c.bf16 %v1543, %v1460
      %v3979 = vpack.c.bf16 %v1544, %v1461
      %v3980 = vpack.c.bf16 %v1545, %v1462
      %v3981 = vpack.c.bf16 %v1546, %v1463
      %v3982 = vpack.c.bf16 %v1547, %v1464
      %v3983 = vpack.c.bf16 %v1548, %v1465
      %v3984 = vpack.c.bf16 %v1549, %v1466
      %v3985 = vpack.c.bf16 %v1550, %v1467
      %v3986 = vpack.c.bf16 %v1551, %v1468
      %v3987 = vpack.c.bf16 %v1552, %v1469
      %v3988 = vpack.c.bf16 %v1553, %v1470
      %v3989 = vpack.c.bf16 %v1554, %v1471
      %v3990 = vpack.c.bf16 %v1555, %v1472
      %v3991 = vpack.c.bf16 %v1556, %v1473
      %v3992 = vpack.c.bf16 %v1557, %v1474
      %v3993 = vpack.c.bf16 %v1558, %v1454
      %v3994 = vpack.c.bf16 %v1705, %v1622
      %v3995 = vpack.c.bf16 %v1706, %v1623
      %v3996 = vpack.c.bf16 %v1707, %v1624
      %v3997 = vpack.c.bf16 %v1708, %v1625
      %v3998 = vpack.c.bf16 %v1709, %v1626
      %v3999 = vpack.c.bf16 %v1710, %v1627
      %v4000 = vpack.c.bf16 %v1711, %v1628
      %v4001 = vpack.c.bf16 %v1712, %v1629
      %v4002 = vpack.c.bf16 %v1713, %v1630
      %v4003 = vpack.c.bf16 %v1714, %v1631
      %v4004 = vpack.c.bf16 %v1715, %v1632
      %v4005 = vpack.c.bf16 %v1716, %v1633
      %v4006 = vpack.c.bf16 %v1717, %v1634
      %v4007 = vpack.c.bf16 %v1718, %v1635
      %v4008 = vpack.c.bf16 %v1719, %v1636
      %v4009 = vpack.c.bf16 %v1720, %v1637
      %v4010 = vpack.c.bf16 %v1721, %v1638
      %v4011 = vpack.c.bf16 %v1722, %v1639
      %v4012 = vpack.c.bf16 %v1723, %v1640
      %v4013 = vpack.c.bf16 %v1724, %v1641
      %v4014 = vpack.c.bf16 %v1871, %v1788
      %v4015 = vpack.c.bf16 %v1872, %v1789
      %v4016 = vpack.c.bf16 %v1873, %v1790
      %v4017 = vpack.c.bf16 %v1874, %v1791
      %v4018 = vpack.c.bf16 %v1875, %v1792
      %v4019 = vpack.c.bf16 %v1876, %v1793
      %v4020 = vpack.c.bf16 %v1877, %v1794
      %v4021 = vpack.c.bf16 %v1878, %v1795
      %v4022 = vpack.c.bf16 %v1879, %v1796
      %v4023 = vpack.c.bf16 %v1880, %v1797
      %v4024 = vpack.c.bf16 %v1881, %v1798
      %v4025 = vpack.c.bf16 %v1882, %v1799
      %v4026 = vpack.c.bf16 %v1883, %v1800
      %v4027 = vpack.c.bf16 %v1884, %v1801
      %v4028 = vpack.c.bf16 %v1885, %v1802
      %v4029 = vpack.c.bf16 %v1886, %v1803
      %v4030 = vpack.c.bf16 %v1887, %v1804
      %v4031 = vpack.c.bf16 %v1888, %v1805
      %v4032 = vpack.c.bf16 %v1889, %v1806
      %v4033 = vpack.c.bf16 %v1890, %v1807
      %v4034 = vpack.c.bf16 %v2039, %v1954
      %v4035 = vpack.c.bf16 %v2040, %v1955
      %v4036 = vpack.c.bf16 %v2041, %v1956
      %v4037 = vpack.c.bf16 %v2042, %v1957
      %v4038 = vpack.c.bf16 %v2043, %v1958
      %v4039 = vpack.c.bf16 %v2044, %v1959
      %v4040 = vpack.c.bf16 %v2045, %v1960
      %v4041 = vpack.c.bf16 %v2046, %v1961
      %v4042 = vpack.c.bf16 %v2047, %v1962
      %v4043 = vpack.c.bf16 %v2048, %v1963
      %v4044 = vpack.c.bf16 %v2049, %v1964
      %v4045 = vpack.c.bf16 %v2050, %v1965
      %v4046 = vpack.c.bf16 %v2051, %v1966
      %v4047 = vpack.c.bf16 %v2052, %v1967
      %v4048 = vpack.c.bf16 %v2053, %v1968
      %v4049 = vpack.c.bf16 %v2054, %v1969
      %v4050 = vpack.c.bf16 %v2055, %v1970
      %v4051 = vpack.c.bf16 %v2056, %v1971
      %v4052 = vpack.c.bf16 %v2057, %v1972
      %v4053 = vpack.c.bf16 %v2058, %v1973
      %v4054 = vpack.c.bf16 %v2205, %v2122
      %v4055 = vpack.c.bf16 %v2206, %v2123
      %v4056 = vpack.c.bf16 %v2207, %v2124
      %v4057 = vpack.c.bf16 %v2208, %v2125
      %v4058 = vpack.c.bf16 %v2209, %v2126
      %v4059 = vpack.c.bf16 %v2210, %v2127
      %v4060 = vpack.c.bf16 %v2211, %v2128
      %v4061 = vpack.c.bf16 %v2212, %v2129
      %v4062 = vpack.c.bf16 %v2213, %v2130
      %v4063 = vpack.c.bf16 %v2214, %v2131
      %v4064 = vpack.c.bf16 %v2215, %v2132
      %v4065 = vpack.c.bf16 %v2216, %v2133
      %v4066 = vpack.c.bf16 %v2217, %v2134
      %v4067 = vpack.c.bf16 %v2218, %v2135
      %v4068 = vpack.c.bf16 %v2219, %v2136
      %v4069 = vpack.c.bf16 %v2220, %v2137
      %v4070 = vpack.c.bf16 %v2221, %v2138
      %v4071 = vpack.c.bf16 %v2222, %v2139
      %v4072 = vpack.c.bf16 %v2223, %v2140
      %v4073 = vpack.c.bf16 %v2224, %v2141
      %v4074 = vpack.c.bf16 %v2371, %v2288
      %v4075 = vpack.c.bf16 %v2372, %v2289
      %v4076 = vpack.c.bf16 %v2373, %v2290
      %v4077 = vpack.c.bf16 %v2374, %v2291
      %v4078 = vpack.c.bf16 %v2375, %v2292
      %v4079 = vpack.c.bf16 %v2376, %v2293
      %v4080 = vpack.c.bf16 %v2377, %v2294
      %v4081 = vpack.c.bf16 %v2378, %v2295
      %v4082 = vpack.c.bf16 %v2379, %v2296
      %v4083 = vpack.c.bf16 %v2380, %v2297
      %v4084 = vpack.c.bf16 %v2381, %v2298
      %v4085 = vpack.c.bf16 %v2382, %v2299
      %v4086 = vpack.c.bf16 %v2383, %v2300
      %v4087 = vpack.c.bf16 %v2384, %v2301
      %v4088 = vpack.c.bf16 %v2385, %v2302
      %v4089 = vpack.c.bf16 %v2386, %v2303
      %v4090 = vpack.c.bf16 %v2387, %v2304
      %v4091 = vpack.c.bf16 %v2388, %v2305
      %v4092 = vpack.c.bf16 %v2389, %v2306
      %v4093 = vpack.c.bf16 %v2390, %v2307
      %v4094 = vpack.c.bf16 %v2536, %v2453
      %v4095 = vpack.c.bf16 %v2537, %v2454
      %v4096 = vpack.c.bf16 %v2538, %v2455
      %v4097 = vpack.c.bf16 %v2539, %v2456
      %v4098 = vpack.c.bf16 %v2540, %v2457
      %v4099 = vpack.c.bf16 %v2541, %v2458
      %v4100 = vpack.c.bf16 %v2542, %v2459
      %v4101 = vpack.c.bf16 %v2543, %v2460
      %v4102 = vpack.c.bf16 %v2544, %v2461
      %v4103 = vpack.c.bf16 %v2545, %v2462
      %v4104 = vpack.c.bf16 %v2546, %v2463
      %v4105 = vpack.c.bf16 %v2547, %v2464
      %v4106 = vpack.c.bf16 %v2548, %v2465
      %v4107 = vpack.c.bf16 %v2549, %v2466
      %v4108 = vpack.c.bf16 %v2550, %v2467
      %v4109 = vpack.c.bf16 %v2551, %v2468
      %v4110 = vpack.c.bf16 %v2552, %v2469
      %v4111 = vpack.c.bf16 %v2553, %v2470
      %v4112 = vpack.c.bf16 %v2554, %v2471
      %v4113 = vpack.c.bf16 %v2555, %v2472
      %v4114 = vpack.c.bf16 %v3530, %v3510
      %v4115 = vpack.c.bf16 %v3531, %v3511
      %v4116 = vpack.c.bf16 %v3532, %v3512
      %v4117 = vpack.c.bf16 %v3533, %v3513
      %v4118 = vpack.c.bf16 %v3534, %v3514
      %v4119 = vpack.c.bf16 %v3535, %v3515
      %v4120 = vpack.c.bf16 %v3536, %v3516
      %v4121 = vpack.c.bf16 %v3537, %v3517
      %v4122 = vpack.c.bf16 %v3538, %v3518
      %v4123 = vpack.c.bf16 %v3539, %v3519
      %v4124 = vpack.c.bf16 %v3540, %v3520
      %v4125 = vpack.c.bf16 %v3541, %v3521
      %v4126 = vpack.c.bf16 %v3542, %v3522
      %v4127 = vpack.c.bf16 %v3543, %v3523
      %v4128 = vpack.c.bf16 %v3544, %v3524
      %v4129 = vpack.c.bf16 %v3545, %v3525
      %v4130 = vpack.c.bf16 %v3546, %v3526
      %v4131 = vpack.c.bf16 %v3547, %v3527
      %v4132 = vpack.c.bf16 %v3548, %v3528
      %v4133 = vpack.c.bf16 %v3549, %v3529
      %v4134 = vpack.c.bf16 %v3570, %v3550
      %v4135 = vpack.c.bf16 %v3571, %v3551
      %v4136 = vpack.c.bf16 %v3572, %v3552
      %v4137 = vpack.c.bf16 %v3573, %v3553
      %v4138 = vpack.c.bf16 %v3574, %v3554
      %v4139 = vpack.c.bf16 %v3575, %v3555
      %v4140 = vpack.c.bf16 %v3576, %v3556
      %v4141 = vpack.c.bf16 %v3577, %v3557
      %v4142 = vpack.c.bf16 %v3578, %v3558
      %v4143 = vpack.c.bf16 %v3579, %v3559
      %v4144 = vpack.c.bf16 %v3580, %v3560
      %v4145 = vpack.c.bf16 %v3581, %v3561
      %v4146 = vpack.c.bf16 %v3582, %v3562
      %v4147 = vpack.c.bf16 %v3583, %v3563
      %v4148 = vpack.c.bf16 %v3584, %v3564
      %v4149 = vpack.c.bf16 %v3585, %v3565
      %v4150 = vpack.c.bf16 %v3586, %v3566
      %v4151 = vpack.c.bf16 %v3587, %v3567
      %v4152 = vpack.c.bf16 %v3588, %v3568
      %v4153 = vpack.c.bf16 %v3589, %v3569
      %v4154 = vpack.c.bf16 %v3610, %v3590
      %v4155 = vpack.c.bf16 %v3611, %v3591
      %v4156 = vpack.c.bf16 %v3612, %v3592
      %v4157 = vpack.c.bf16 %v3613, %v3593
      %v4158 = vpack.c.bf16 %v3614, %v3594
      %v4159 = vpack.c.bf16 %v3615, %v3595
      %v4160 = vpack.c.bf16 %v3616, %v3596
      %v4161 = vpack.c.bf16 %v3617, %v3597
      %v4162 = vpack.c.bf16 %v3618, %v3598
      %v4163 = vpack.c.bf16 %v3619, %v3599
      %v4164 = vpack.c.bf16 %v3620, %v3600
      %v4165 = vpack.c.bf16 %v3621, %v3601
      %v4166 = vpack.c.bf16 %v3622, %v3602
      %v4167 = vpack.c.bf16 %v3623, %v3603
      %v4168 = vpack.c.bf16 %v3624, %v3604
      %v4169 = vpack.c.bf16 %v3625, %v3605
      %v4170 = vpack.c.bf16 %v3626, %v3606
      %v4171 = vpack.c.bf16 %v3627, %v3607
      %v4172 = vpack.c.bf16 %v3628, %v3608
      %v4173 = vpack.c.bf16 %v3629, %v3609
      %v4174 = vpack.c.bf16 %v3650, %v3630
      %v4175 = vpack.c.bf16 %v3651, %v3631
      %v4176 = vpack.c.bf16 %v3652, %v3632
      %v4177 = vpack.c.bf16 %v3653, %v3633
      %v4178 = vpack.c.bf16 %v3654, %v3634
      %v4179 = vpack.c.bf16 %v3655, %v3635
      %v4180 = vpack.c.bf16 %v3656, %v3636
      %v4181 = vpack.c.bf16 %v3657, %v3637
      %v4182 = vpack.c.bf16 %v3658, %v3638
      %v4183 = vpack.c.bf16 %v3659, %v3639
      %v4184 = vpack.c.bf16 %v3660, %v3640
      %v4185 = vpack.c.bf16 %v3661, %v3641
      %v4186 = vpack.c.bf16 %v3662, %v3642
      %v4187 = vpack.c.bf16 %v3663, %v3643
      %v4188 = vpack.c.bf16 %v3664, %v3644
      %v4189 = vpack.c.bf16 %v3665, %v3645
      %v4190 = vpack.c.bf16 %v3666, %v3646
      %v4191 = vpack.c.bf16 %v3667, %v3647
      %v4192 = vpack.c.bf16 %v3668, %v3648
      %v4193 = vpack.c.bf16 %v3669, %v3649
      %v4194 = vpack.c.bf16 %v3690, %v3670
      %v4195 = vpack.c.bf16 %v3691, %v3671
      %v4196 = vpack.c.bf16 %v3692, %v3672
      %v4197 = vpack.c.bf16 %v3693, %v3673
      %v4198 = vpack.c.bf16 %v3694, %v3674
      %v4199 = vpack.c.bf16 %v3695, %v3675
      %v4200 = vpack.c.bf16 %v3696, %v3676
      %v4201 = vpack.c.bf16 %v3697, %v3677
      %v4202 = vpack.c.bf16 %v3698, %v3678
      %v4203 = vpack.c.bf16 %v3699, %v3679
      %v4204 = vpack.c.bf16 %v3700, %v3680
      %v4205 = vpack.c.bf16 %v3701, %v3681
      %v4206 = vpack.c.bf16 %v3702, %v3682
      %v4207 = vpack.c.bf16 %v3703, %v3683
      %v4208 = vpack.c.bf16 %v3704, %v3684
      %v4209 = vpack.c.bf16 %v3705, %v3685
      %v4210 = vpack.c.bf16 %v3706, %v3686
      %v4211 = vpack.c.bf16 %v3707, %v3687
      %v4212 = vpack.c.bf16 %v3708, %v3688
      %v4213 = vpack.c.bf16 %v3709, %v3689
      %v4214 = vpack.c.bf16 %v3710, %v3710
      %v4215 = vpack.c.bf16 %v3711, %v3711
      %v4216 = vpack.c.bf16 %v3712, %v3712
      %v4217 = vpack.c.bf16 %v3713, %v3713
      %v4218 = vpack.c.bf16 %v3714, %v3714
      %v4219 = vpack.c.bf16 %v3715, %v3715
      %v4220 = vpack.c.bf16 %v3716, %v3716
      %v4221 = vpack.c.bf16 %v3717, %v3717
      %v4222 = vpack.c.bf16 %v3718, %v3718
      %v4223 = vpack.c.bf16 %v3719, %v3719
      %v4224 = vpack.c.bf16 %v3720, %v3720
      %v4225 = vpack.c.bf16 %v3721, %v3721
      %v4226 = vpack.c.bf16 %v3722, %v3722
      %v4227 = vpack.c.bf16 %v3723, %v3723
      %v4228 = vpack.c.bf16 %v3724, %v3724
      %v4229 = vpack.c.bf16 %v3725, %v3725
      %v4230 = vpack.c.bf16 %v3726, %v3726
      %v4231 = vpack.c.bf16 %v3727, %v3727
      %v4232 = vpack.c.bf16 %v3728, %v3728
      %v4233 = vpack.c.bf16 %v3729, %v3729
      %v4234 = vld [vmem:[%s6] sm:$0xff]
      %4236 = vset.pattern.permute.xlu0 0
      %4237 = vperm.xlu0 %4236, %v4234
      %v4238 = vpop.permute.xlu0 %4237
      %vm4240 = vcmask 719872
      %v4242 = vsel %vm4240, %v3953, 0
      %v4245 = vsel %vm358, %v4214, 0
      %v4248 = vsel %vm358, %v4215, 0
      %v4251 = vsel %vm358, %v4216, 0
      %v4254 = vsel %vm358, %v4217, 0
      %v4257 = vsel %vm358, %v4218, 0
      %v4260 = vsel %vm358, %v4219, 0
      %v4263 = vsel %vm358, %v4220, 0
      %v4266 = vsel %vm358, %v4221, 0
      %v4269 = vsel %vm358, %v4222, 0
      %v4272 = vsel %vm358, %v4223, 0
      %v4275 = vsel %vm358, %v4224, 0
      %v4278 = vsel %vm358, %v4225, 0
      %v4281 = vsel %vm358, %v4226, 0
      %v4284 = vsel %vm358, %v4227, 0
      %v4287 = vsel %vm358, %v4228, 0
      %v4290 = vsel %vm358, %v4229, 0
      %v4293 = vsel %vm358, %v4230, 0
      %v4296 = vsel %vm358, %v4231, 0
      %v4299 = vsel %vm358, %v4232, 0
      %v4302 = vsel %vm358, %v4233, 0
      %4304 = vmatprep.subr.bf16.mxu0 %v3955
      %4305 = vmatpush1.bf16.msra.mxu0 %v3954
      %4306 = vmatprep.subr.bf16.mxu0 %v3975
      %4307 = vmatpush1.bf16.msra.mxu0 %v3974
      %4308 = vmatprep.subr.bf16.mxu0 %v3995
      %4309 = vmatpush1.bf16.msra.mxu0 %v3994
      %4310 = vmatprep.subr.bf16.mxu0 %v4015
      %4311 = vmatpush1.bf16.msra.mxu0 %v4014
      %4312 = vmatprep.subr.bf16.mxu0 %v4035
      %4313 = vmatpush1.bf16.msra.mxu0 %v4034
      %4314 = vmatprep.subr.bf16.mxu0 %v4055
      %4315 = vmatpush1.bf16.msra.mxu0 %v4054
      %4316 = vmatprep.subr.bf16.mxu0 %v4075
      %4317 = vmatpush1.bf16.msra.mxu0 %v4074
      %4318 = vmatprep.subr.bf16.mxu0 %v4095
      %4319 = vmatpush1.bf16.msra.mxu0 %v4094
      %4320 = vmatprep.subr.bf16.mxu0 %v4115
      %4321 = vmatpush1.bf16.msra.mxu0 %v4114
      %4322 = vmatprep.subr.bf16.mxu0 %v4135
      %4323 = vmatpush1.bf16.msra.mxu0 %v4134
      %4324 = vmatprep.subr.bf16.mxu0 %v4155
      %4325 = vmatpush1.bf16.msra.mxu0 %v4154
      %4326 = vmatprep.subr.bf16.mxu0 %v4175
      %4327 = vmatpush1.bf16.msra.mxu0 %v4174
      %4328 = vmatprep.subr.bf16.mxu0 %v4195
      %4329 = vmatpush1.bf16.msra.mxu0 %v4194
      %4330 = vmatprep.subr.bf16.mxu0 %v4248
      %4331 = vmatpush1.bf16.msra.mxu0 %v4245
      %4332 = vmatprep.subr.bf16.mxu0 0
      %4333 = vmatpush1.bf16.msra.mxu0 0
      %4334 = vmatprep.subr.bf16.mxu0 0
      %4335 = vmatpush1.bf16.msra.mxu0 0
      %4336 = vmatprep.mubr.bf16.mxu0 %v4242
      %4337 = vmatmul.mubr.bf16.gmra.mrb[0].mxu0 %v3952
      %v4338 = vpop.f32.mrb[0].mxu0
      %v4339 = vadd.f32 %v4238, %v4338
      %v4340 = vpop.f32.mrb[0].mxu0
      %v4341 = vadd.f32 %v4238, %v4340
      %v4342 = vpop.f32.mrb[0].mxu0
      %v4343 = vpop.f32.mrb[0].mxu0
      %4344 = vdwg.mxu0
      %4345 = vmatprep.subr.bf16.mxu0 %v3957
      %4346 = vmatpush1.bf16.msra.mxu0 %v3956
      %4347 = vmatprep.subr.bf16.mxu0 %v3977
      %4348 = vmatpush1.bf16.msra.mxu0 %v3976
      %4349 = vmatprep.subr.bf16.mxu0 %v3997
      %4350 = vmatpush1.bf16.msra.mxu0 %v3996
      %4351 = vmatprep.subr.bf16.mxu0 %v4017
      %4352 = vmatpush1.bf16.msra.mxu0 %v4016
      %4353 = vmatprep.subr.bf16.mxu0 %v4037
      %4354 = vmatpush1.bf16.msra.mxu0 %v4036
      %4355 = vmatprep.subr.bf16.mxu0 %v4057
      %4356 = vmatpush1.bf16.msra.mxu0 %v4056
      %4357 = vmatprep.subr.bf16.mxu0 %v4077
      %4358 = vmatpush1.bf16.msra.mxu0 %v4076
      %4359 = vmatprep.subr.bf16.mxu0 %v4097
      %4360 = vmatpush1.bf16.msra.mxu0 %v4096
      %4361 = vmatprep.subr.bf16.mxu0 %v4117
      %4362 = vmatpush1.bf16.msra.mxu0 %v4116
      %4363 = vmatprep.subr.bf16.mxu0 %v4137
      %4364 = vmatpush1.bf16.msra.mxu0 %v4136
      %4365 = vmatprep.subr.bf16.mxu0 %v4157
      %4366 = vmatpush1.bf16.msra.mxu0 %v4156
      %4367 = vmatprep.subr.bf16.mxu0 %v4177
      %4368 = vmatpush1.bf16.msra.mxu0 %v4176
      %4369 = vmatprep.subr.bf16.mxu0 %v4197
      %4370 = vmatpush1.bf16.msra.mxu0 %v4196
      %4371 = vmatprep.subr.bf16.mxu0 %v4254
      %4372 = vmatpush1.bf16.msra.mxu0 %v4251
      %4373 = vmatprep.subr.bf16.mxu0 0
      %4374 = vmatpush1.bf16.msra.mxu0 0
      %4375 = vmatprep.subr.bf16.mxu0 0
      %4376 = vmatpush1.bf16.msra.mxu0 0
      %4377 = vmatprep.mubr.bf16.mxu0 %v4242
      %4378 = vmatmul.mubr.bf16.gmra.mrb[0].mxu0 %v3952
      %v4379 = vpop.f32.mrb[0].mxu0
      %v4380 = vadd.f32 %v4238, %v4379
      %v4381 = vpop.f32.mrb[0].mxu0
      %v4382 = vadd.f32 %v4238, %v4381
      %v4383 = vpop.f32.mrb[0].mxu0
      %v4384 = vpop.f32.mrb[0].mxu0
      %4385 = vdwg.mxu0
      %4386 = vmatprep.subr.bf16.mxu0 %v3959
      %4387 = vmatpush1.bf16.msra.mxu0 %v3958
      %4388 = vmatprep.subr.bf16.mxu0 %v3979
      %4389 = vmatpush1.bf16.msra.mxu0 %v3978
      %4390 = vmatprep.subr.bf16.mxu0 %v3999
      %4391 = vmatpush1.bf16.msra.mxu0 %v3998
      %4392 = vmatprep.subr.bf16.mxu0 %v4019
      %4393 = vmatpush1.bf16.msra.mxu0 %v4018
      %4394 = vmatprep.subr.bf16.mxu0 %v4039
      %4395 = vmatpush1.bf16.msra.mxu0 %v4038
      %4396 = vmatprep.subr.bf16.mxu0 %v4059
      %4397 = vmatpush1.bf16.msra.mxu0 %v4058
      %4398 = vmatprep.subr.bf16.mxu0 %v4079
      %4399 = vmatpush1.bf16.msra.mxu0 %v4078
      %4400 = vmatprep.subr.bf16.mxu0 %v4099
      %4401 = vmatpush1.bf16.msra.mxu0 %v4098
      %4402 = vmatprep.subr.bf16.mxu0 %v4119
      %4403 = vmatpush1.bf16.msra.mxu0 %v4118
      %4404 = vmatprep.subr.bf16.mxu0 %v4139
      %4405 = vmatpush1.bf16.msra.mxu0 %v4138
      %4406 = vmatprep.subr.bf16.mxu0 %v4159
      %4407 = vmatpush1.bf16.msra.mxu0 %v4158
      %4408 = vmatprep.subr.bf16.mxu0 %v4179
      %4409 = vmatpush1.bf16.msra.mxu0 %v4178
      %4410 = vmatprep.subr.bf16.mxu0 %v4199
      %4411 = vmatpush1.bf16.msra.mxu0 %v4198
      %4412 = vmatprep.subr.bf16.mxu0 %v4260
      %4413 = vmatpush1.bf16.msra.mxu0 %v4257
      %4414 = vmatprep.subr.bf16.mxu0 0
      %4415 = vmatpush1.bf16.msra.mxu0 0
      %4416 = vmatprep.subr.bf16.mxu0 0
      %4417 = vmatpush1.bf16.msra.mxu0 0
      %4418 = vmatprep.mubr.bf16.mxu0 %v4242
      %4419 = vmatmul.mubr.bf16.gmra.mrb[0].mxu0 %v3952
      %v4420 = vpop.f32.mrb[0].mxu0
      %v4421 = vadd.f32 %v4238, %v4420
      %v4422 = vpop.f32.mrb[0].mxu0
      %v4423 = vadd.f32 %v4238, %v4422
      %v4424 = vpop.f32.mrb[0].mxu0
      %v4425 = vpop.f32.mrb[0].mxu0
      %4426 = vdwg.mxu0
      %4427 = vmatprep.subr.bf16.mxu0 %v3961
      %4428 = vmatpush1.bf16.msra.mxu0 %v3960
      %4429 = vmatprep.subr.bf16.mxu0 %v3981
      %4430 = vmatpush1.bf16.msra.mxu0 %v3980
      %4431 = vmatprep.subr.bf16.mxu0 %v4001
      %4432 = vmatpush1.bf16.msra.mxu0 %v4000
      %4433 = vmatprep.subr.bf16.mxu0 %v4021
      %4434 = vmatpush1.bf16.msra.mxu0 %v4020
      %4435 = vmatprep.subr.bf16.mxu0 %v4041
      %4436 = vmatpush1.bf16.msra.mxu0 %v4040
      %4437 = vmatprep.subr.bf16.mxu0 %v4061
      %4438 = vmatpush1.bf16.msra.mxu0 %v4060
      %4439 = vmatprep.subr.bf16.mxu0 %v4081
      %4440 = vmatpush1.bf16.msra.mxu0 %v4080
      %4441 = vmatprep.subr.bf16.mxu0 %v4101
      %4442 = vmatpush1.bf16.msra.mxu0 %v4100
      %4443 = vmatprep.subr.bf16.mxu0 %v4121
      %4444 = vmatpush1.bf16.msra.mxu0 %v4120
      %4445 = vmatprep.subr.bf16.mxu0 %v4141
      %4446 = vmatpush1.bf16.msra.mxu0 %v4140
      %4447 = vmatprep.subr.bf16.mxu0 %v4161
      %4448 = vmatpush1.bf16.msra.mxu0 %v4160
      %4449 = vmatprep.subr.bf16.mxu0 %v4181
      %4450 = vmatpush1.bf16.msra.mxu0 %v4180
      %4451 = vmatprep.subr.bf16.mxu0 %v4201
      %4452 = vmatpush1.bf16.msra.mxu0 %v4200
      %4453 = vmatprep.subr.bf16.mxu0 %v4266
      %4454 = vmatpush1.bf16.msra.mxu0 %v4263
      %4455 = vmatprep.subr.bf16.mxu0 0
      %4456 = vmatpush1.bf16.msra.mxu0 0
      %4457 = vmatprep.subr.bf16.mxu0 0
      %4458 = vmatpush1.bf16.msra.mxu0 0
      %4459 = vmatprep.mubr.bf16.mxu0 %v4242
      %4460 = vmatmul.mubr.bf16.gmra.mrb[0].mxu0 %v3952
      %v4461 = vpop.f32.mrb[0].mxu0
      %v4462 = vadd.f32 %v4238, %v4461
      %v4463 = vpop.f32.mrb[0].mxu0
      %v4464 = vadd.f32 %v4238, %v4463
      %v4465 = vpop.f32.mrb[0].mxu0
      %v4466 = vpop.f32.mrb[0].mxu0
      %4467 = vdwg.mxu0
      %4468 = vmatprep.subr.bf16.mxu0 %v3963
      %4469 = vmatpush1.bf16.msra.mxu0 %v3962
      %4470 = vmatprep.subr.bf16.mxu0 %v3983
      %4471 = vmatpush1.bf16.msra.mxu0 %v3982
      %4472 = vmatprep.subr.bf16.mxu0 %v4003
      %4473 = vmatpush1.bf16.msra.mxu0 %v4002
      %4474 = vmatprep.subr.bf16.mxu0 %v4023
      %4475 = vmatpush1.bf16.msra.mxu0 %v4022
      %4476 = vmatprep.subr.bf16.mxu0 %v4043
      %4477 = vmatpush1.bf16.msra.mxu0 %v4042
      %4478 = vmatprep.subr.bf16.mxu0 %v4063
      %4479 = vmatpush1.bf16.msra.mxu0 %v4062
      %4480 = vmatprep.subr.bf16.mxu0 %v4083
      %4481 = vmatpush1.bf16.msra.mxu0 %v4082
      %4482 = vmatprep.subr.bf16.mxu0 %v4103
      %4483 = vmatpush1.bf16.msra.mxu0 %v4102
      %4484 = vmatprep.subr.bf16.mxu0 %v4123
      %4485 = vmatpush1.bf16.msra.mxu0 %v4122
      %4486 = vmatprep.subr.bf16.mxu0 %v4143
      %4487 = vmatpush1.bf16.msra.mxu0 %v4142
      %4488 = vmatprep.subr.bf16.mxu0 %v4163
      %4489 = vmatpush1.bf16.msra.mxu0 %v4162
      %4490 = vmatprep.subr.bf16.mxu0 %v4183
      %4491 = vmatpush1.bf16.msra.mxu0 %v4182
      %4492 = vmatprep.subr.bf16.mxu0 %v4203
      %4493 = vmatpush1.bf16.msra.mxu0 %v4202
      %4494 = vmatprep.subr.bf16.mxu0 %v4272
      %4495 = vmatpush1.bf16.msra.mxu0 %v4269
      %4496 = vmatprep.subr.bf16.mxu0 0
      %4497 = vmatpush1.bf16.msra.mxu0 0
      %4498 = vmatprep.subr.bf16.mxu0 0
      %4499 = vmatpush1.bf16.msra.mxu0 0
      %4500 = vmatprep.mubr.bf16.mxu0 %v4242
      %4501 = vmatmul.mubr.bf16.gmra.mrb[0].mxu0 %v3952
      %v4502 = vpop.f32.mrb[0].mxu0
      %v4503 = vadd.f32 %v4238, %v4502
      %v4504 = vpop.f32.mrb[0].mxu0
      %v4505 = vadd.f32 %v4238, %v4504
      %v4506 = vpop.f32.mrb[0].mxu0
      %v4507 = vpop.f32.mrb[0].mxu0
      %4508 = vdwg.mxu0
      %4509 = vmatprep.subr.bf16.mxu0 %v3965
      %4510 = vmatpush1.bf16.msra.mxu0 %v3964
      %4511 = vmatprep.subr.bf16.mxu0 %v3985
      %4512 = vmatpush1.bf16.msra.mxu0 %v3984
      %4513 = vmatprep.subr.bf16.mxu0 %v4005
      %4514 = vmatpush1.bf16.msra.mxu0 %v4004
      %4515 = vmatprep.subr.bf16.mxu0 %v4025
      %4516 = vmatpush1.bf16.msra.mxu0 %v4024
      %4517 = vmatprep.subr.bf16.mxu0 %v4045
      %4518 = vmatpush1.bf16.msra.mxu0 %v4044
      %4519 = vmatprep.subr.bf16.mxu0 %v4065
      %4520 = vmatpush1.bf16.msra.mxu0 %v4064
      %4521 = vmatprep.subr.bf16.mxu0 %v4085
      %4522 = vmatpush1.bf16.msra.mxu0 %v4084
      %4523 = vmatprep.subr.bf16.mxu0 %v4105
      %4524 = vmatpush1.bf16.msra.mxu0 %v4104
      %4525 = vmatprep.subr.bf16.mxu0 %v4125
      %4526 = vmatpush1.bf16.msra.mxu0 %v4124
      %4527 = vmatprep.subr.bf16.mxu0 %v4145
      %4528 = vmatpush1.bf16.msra.mxu0 %v4144
      %4529 = vmatprep.subr.bf16.mxu0 %v4165
      %4530 = vmatpush1.bf16.msra.mxu0 %v4164
      %4531 = vmatprep.subr.bf16.mxu0 %v4185
      %4532 = vmatpush1.bf16.msra.mxu0 %v4184
      %4533 = vmatprep.subr.bf16.mxu0 %v4205
      %4534 = vmatpush1.bf16.msra.mxu0 %v4204
      %4535 = vmatprep.subr.bf16.mxu0 %v4278
      %4536 = vmatpush1.bf16.msra.mxu0 %v4275
      %4537 = vmatprep.subr.bf16.mxu0 0
      %4538 = vmatpush1.bf16.msra.mxu0 0
      %4539 = vmatprep.subr.bf16.mxu0 0
      %4540 = vmatpush1.bf16.msra.mxu0 0
      %4541 = vmatprep.mubr.bf16.mxu0 %v4242
      %4542 = vmatmul.mubr.bf16.gmra.mrb[0].mxu0 %v3952
      %v4543 = vpop.f32.mrb[0].mxu0
      %v4544 = vadd.f32 %v4238, %v4543
      %v4545 = vpop.f32.mrb[0].mxu0
      %v4546 = vadd.f32 %v4238, %v4545
      %v4547 = vpop.f32.mrb[0].mxu0
      %v4548 = vpop.f32.mrb[0].mxu0
      %4549 = vdwg.mxu0
      %4550 = vmatprep.subr.bf16.mxu0 %v3967
      %4551 = vmatpush1.bf16.msra.mxu0 %v3966
      %4552 = vmatprep.subr.bf16.mxu0 %v3987
      %4553 = vmatpush1.bf16.msra.mxu0 %v3986
      %4554 = vmatprep.subr.bf16.mxu0 %v4007
      %4555 = vmatpush1.bf16.msra.mxu0 %v4006
      %4556 = vmatprep.subr.bf16.mxu0 %v4027
      %4557 = vmatpush1.bf16.msra.mxu0 %v4026
      %4558 = vmatprep.subr.bf16.mxu0 %v4047
      %4559 = vmatpush1.bf16.msra.mxu0 %v4046
      %4560 = vmatprep.subr.bf16.mxu0 %v4067
      %4561 = vmatpush1.bf16.msra.mxu0 %v4066
      %4562 = vmatprep.subr.bf16.mxu0 %v4087
      %4563 = vmatpush1.bf16.msra.mxu0 %v4086
      %4564 = vmatprep.subr.bf16.mxu0 %v4107
      %4565 = vmatpush1.bf16.msra.mxu0 %v4106
      %4566 = vmatprep.subr.bf16.mxu0 %v4127
      %4567 = vmatpush1.bf16.msra.mxu0 %v4126
      %4568 = vmatprep.subr.bf16.mxu0 %v4147
      %4569 = vmatpush1.bf16.msra.mxu0 %v4146
      %4570 = vmatprep.subr.bf16.mxu0 %v4167
      %4571 = vmatpush1.bf16.msra.mxu0 %v4166
      %4572 = vmatprep.subr.bf16.mxu0 %v4187
      %4573 = vmatpush1.bf16.msra.mxu0 %v4186
      %4574 = vmatprep.subr.bf16.mxu0 %v4207
      %4575 = vmatpush1.bf16.msra.mxu0 %v4206
      %4576 = vmatprep.subr.bf16.mxu0 %v4284
      %4577 = vmatpush1.bf16.msra.mxu0 %v4281
      %4578 = vmatprep.subr.bf16.mxu0 0
      %4579 = vmatpush1.bf16.msra.mxu0 0
      %4580 = vmatprep.subr.bf16.mxu0 0
      %4581 = vmatpush1.bf16.msra.mxu0 0
      %4582 = vmatprep.mubr.bf16.mxu0 %v4242
      %4583 = vmatmul.mubr.bf16.gmra.mrb[0].mxu0 %v3952
      %v4584 = vpop.f32.mrb[0].mxu0
      %v4585 = vadd.f32 %v4238, %v4584
      %v4586 = vpop.f32.mrb[0].mxu0
      %v4587 = vadd.f32 %v4238, %v4586
      %v4588 = vpop.f32.mrb[0].mxu0
      %v4589 = vpop.f32.mrb[0].mxu0
      %4590 = vdwg.mxu0
      %4591 = vmatprep.subr.bf16.mxu0 %v3969
      %4592 = vmatpush1.bf16.msra.mxu0 %v3968
      %4593 = vmatprep.subr.bf16.mxu0 %v3989
      %4594 = vmatpush1.bf16.msra.mxu0 %v3988
      %4595 = vmatprep.subr.bf16.mxu0 %v4009
      %4596 = vmatpush1.bf16.msra.mxu0 %v4008
      %4597 = vmatprep.subr.bf16.mxu0 %v4029
      %4598 = vmatpush1.bf16.msra.mxu0 %v4028
      %4599 = vmatprep.subr.bf16.mxu0 %v4049
      %4600 = vmatpush1.bf16.msra.mxu0 %v4048
      %4601 = vmatprep.subr.bf16.mxu0 %v4069
      %4602 = vmatpush1.bf16.msra.mxu0 %v4068
      %4603 = vmatprep.subr.bf16.mxu0 %v4089
      %4604 = vmatpush1.bf16.msra.mxu0 %v4088
      %4605 = vmatprep.subr.bf16.mxu0 %v4109
      %4606 = vmatpush1.bf16.msra.mxu0 %v4108
      %4607 = vmatprep.subr.bf16.mxu0 %v4129
      %4608 = vmatpush1.bf16.msra.mxu0 %v4128
      %4609 = vmatprep.subr.bf16.mxu0 %v4149
      %4610 = vmatpush1.bf16.msra.mxu0 %v4148
      %4611 = vmatprep.subr.bf16.mxu0 %v4169
      %4612 = vmatpush1.bf16.msra.mxu0 %v4168
      %4613 = vmatprep.subr.bf16.mxu0 %v4189
      %4614 = vmatpush1.bf16.msra.mxu0 %v4188
      %4615 = vmatprep.subr.bf16.mxu0 %v4209
      %4616 = vmatpush1.bf16.msra.mxu0 %v4208
      %4617 = vmatprep.subr.bf16.mxu0 %v4290
      %4618 = vmatpush1.bf16.msra.mxu0 %v4287
      %4619 = vmatprep.subr.bf16.mxu0 0
      %4620 = vmatpush1.bf16.msra.mxu0 0
      %4621 = vmatprep.subr.bf16.mxu0 0
      %4622 = vmatpush1.bf16.msra.mxu0 0
      %4623 = vmatprep.mubr.bf16.mxu0 %v4242
      %4624 = vmatmul.mubr.bf16.gmra.mrb[0].mxu0 %v3952
      %v4625 = vpop.f32.mrb[0].mxu0
      %v4626 = vadd.f32 %v4238, %v4625
      %v4627 = vpop.f32.mrb[0].mxu0
      %v4628 = vadd.f32 %v4238, %v4627
      %v4629 = vpop.f32.mrb[0].mxu0
      %v4630 = vpop.f32.mrb[0].mxu0
      %4631 = vdwg.mxu0
      %4632 = vmatprep.subr.bf16.mxu0 %v3971
      %4633 = vmatpush1.bf16.msra.mxu0 %v3970
      %4634 = vmatprep.subr.bf16.mxu0 %v3991
      %4635 = vmatpush1.bf16.msra.mxu0 %v3990
      %4636 = vmatprep.subr.bf16.mxu0 %v4011
      %4637 = vmatpush1.bf16.msra.mxu0 %v4010
      %4638 = vmatprep.subr.bf16.mxu0 %v4031
      %4639 = vmatpush1.bf16.msra.mxu0 %v4030
      %4640 = vmatprep.subr.bf16.mxu0 %v4051
      %4641 = vmatpush1.bf16.msra.mxu0 %v4050
      %4642 = vmatprep.subr.bf16.mxu0 %v4071
      %4643 = vmatpush1.bf16.msra.mxu0 %v4070
      %4644 = vmatprep.subr.bf16.mxu0 %v4091
      %4645 = vmatpush1.bf16.msra.mxu0 %v4090
      %4646 = vmatprep.subr.bf16.mxu0 %v4111
      %4647 = vmatpush1.bf16.msra.mxu0 %v4110
      %4648 = vmatprep.subr.bf16.mxu0 %v4131
      %4649 = vmatpush1.bf16.msra.mxu0 %v4130
      %4650 = vmatprep.subr.bf16.mxu0 %v4151
      %4651 = vmatpush1.bf16.msra.mxu0 %v4150
      %4652 = vmatprep.subr.bf16.mxu0 %v4171
      %4653 = vmatpush1.bf16.msra.mxu0 %v4170
      %4654 = vmatprep.subr.bf16.mxu0 %v4191
      %4655 = vmatpush1.bf16.msra.mxu0 %v4190
      %4656 = vmatprep.subr.bf16.mxu0 %v4211
      %4657 = vmatpush1.bf16.msra.mxu0 %v4210
      %4658 = vmatprep.subr.bf16.mxu0 %v4296
      %4659 = vmatpush1.bf16.msra.mxu0 %v4293
      %4660 = vmatprep.subr.bf16.mxu0 0
      %4661 = vmatpush1.bf16.msra.mxu0 0
      %4662 = vmatprep.subr.bf16.mxu0 0
      %4663 = vmatpush1.bf16.msra.mxu0 0
      %4664 = vmatprep.mubr.bf16.mxu0 %v4242
      %4665 = vmatmul.mubr.bf16.gmra.mrb[0].mxu0 %v3952
      %v4666 = vpop.f32.mrb[0].mxu0
      %v4667 = vadd.f32 %v4238, %v4666
      %v4668 = vpop.f32.mrb[0].mxu0
      %v4669 = vadd.f32 %v4238, %v4668
      %v4670 = vpop.f32.mrb[0].mxu0
      %v4671 = vpop.f32.mrb[0].mxu0
      %4672 = vdwg.mxu0
      %4673 = vmatprep.subr.bf16.mxu0 %v3973
      %4674 = vmatpush1.bf16.msra.mxu0 %v3972
      %4675 = vmatprep.subr.bf16.mxu0 %v3993
      %4676 = vmatpush1.bf16.msra.mxu0 %v3992
      %4677 = vmatprep.subr.bf16.mxu0 %v4013
      %4678 = vmatpush1.bf16.msra.mxu0 %v4012
      %4679 = vmatprep.subr.bf16.mxu0 %v4033
      %4680 = vmatpush1.bf16.msra.mxu0 %v4032
      %4681 = vmatprep.subr.bf16.mxu0 %v4053
      %4682 = vmatpush1.bf16.msra.mxu0 %v4052
      %4683 = vmatprep.subr.bf16.mxu0 %v4073
      %4684 = vmatpush1.bf16.msra.mxu0 %v4072
      %4685 = vmatprep.subr.bf16.mxu0 %v4093
      %4686 = vmatpush1.bf16.msra.mxu0 %v4092
      %4687 = vmatprep.subr.bf16.mxu0 %v4113
      %4688 = vmatpush1.bf16.msra.mxu0 %v4112
      %4689 = vmatprep.subr.bf16.mxu0 %v4133
      %4690 = vmatpush1.bf16.msra.mxu0 %v4132
      %4691 = vmatprep.subr.bf16.mxu0 %v4153
      %4692 = vmatpush1.bf16.msra.mxu0 %v4152
      %4693 = vmatprep.subr.bf16.mxu0 %v4173
      %4694 = vmatpush1.bf16.msra.mxu0 %v4172
      %4695 = vmatprep.subr.bf16.mxu0 %v4193
      %4696 = vmatpush1.bf16.msra.mxu0 %v4192
      %4697 = vmatprep.subr.bf16.mxu0 %v4213
      %4698 = vmatpush1.bf16.msra.mxu0 %v4212
      %4699 = vmatprep.subr.bf16.mxu0 %v4302
      %4700 = vmatpush1.bf16.msra.mxu0 %v4299
      %4701 = vmatprep.subr.bf16.mxu0 0
      %4702 = vmatpush1.bf16.msra.mxu0 0
      %4703 = vmatprep.subr.bf16.mxu0 0
      %4704 = vmatpush1.bf16.msra.mxu0 0
      %4705 = vmatprep.mubr.bf16.mxu0 %v4242
      %4706 = vmatmul.mubr.bf16.gmra.mrb[0].mxu0 %v3952
      %v4707 = vpop.f32.mrb[0].mxu0
      %v4708 = vadd.f32 %v4238, %v4707
      %v4709 = vpop.f32.mrb[0].mxu0
      %v4710 = vadd.f32 %v4238, %v4709
      %v4711 = vpop.f32.mrb[0].mxu0
      %v4712 = vpop.f32.mrb[0].mxu0
      %4713 = vdwg.mxu0
      %4714 = vst [vmem:[%s298] sm:$0xff] %v4339
      %4715 = vst [vmem:[%s298 + $0x8] sm:$0xff] %v4341
      %4716 = vst [vmem:[%s298 + $0x10] sm:$0xff] %v4380
      %4717 = vst [vmem:[%s298 + $0x18] sm:$0xff] %v4382
      %4718 = vst [vmem:[%s298 + $0x20] sm:$0xff] %v4421
      %4719 = vst [vmem:[%s298 + $0x28] sm:$0xff] %v4423
      %4720 = vst [vmem:[%s298 + $0x30] sm:$0xff] %v4462
      %4721 = vst [vmem:[%s298 + $0x38] sm:$0xff] %v4464
      %4722 = vst [vmem:[%s298 + $0x40] sm:$0xff] %v4503
      %4723 = vst [vmem:[%s298 + $0x48] sm:$0xff] %v4505
      %4724 = vst [vmem:[%s298 + $0x50] sm:$0xff] %v4544
      %4725 = vst [vmem:[%s298 + $0x58] sm:$0xff] %v4546
      %4726 = vst [vmem:[%s298 + $0x60] sm:$0xff] %v4585
      %4727 = vst [vmem:[%s298 + $0x68] sm:$0xff] %v4587
      %4728 = vst [vmem:[%s298 + $0x70] sm:$0xff] %v4626
      %4729 = vst [vmem:[%s298 + $0x78] sm:$0xff] %v4628
      %4730 = vst [vmem:[%s298 + $0x80] sm:$0xff] %v4667
      %4731 = vst [vmem:[%s298 + $0x88] sm:$0xff] %v4669
      %4732 = vst [vmem:[%s298 + $0x90] sm:$0xff] %v4708
      %vm4733 = vcmask 998400
      %4734 = vst.msk [vmem:[%s298 + $0x98] sm:$0xff] %vm4733, %v4710
      %p4735 = scmp.lt.s32.totalorder %s18, 1
      %s4736 = scalar_select %p4735, %s18, 1
      %s4737 = smul.addr %s4736, 20
      %s4738 = smul.addr %s4737, 8
      %s4739 = scalar_lea.vmem %s7, %s4738
      // Predicated region
      $region49: #{upcatconv_forward.3} parent=47 // pred_check
        %p4740 = pneg %p193
      $region50: #{upcatconv_forward.3} parent=47 // pred_check_branch
        %4742 = sbr.rel (%p4740) target = $region52
      $region51: #{upcatconv_forward.3} parent=47 // pred_region
        _
      $region52: #{upcatconv_forward.3} parent=47 // pred_fallthru
        _
    $region48: #{upcatconv_forward.3} parent=5 // pred_fallthru
      _
    %p4743 = scmp.le.s32.totalorder 2, %s13
    // Predicated region
    $region53: #{upcatconv_forward.3} parent=5 // pred_check
      %p4744 = pneg %p4743
    $region54: #{upcatconv_forward.3} parent=5 // pred_check_branch
      %4746 = sbr.rel (%p4744) target = $region56
    $region55: #{upcatconv_forward.3} parent=5 // pred_region
      %s4747 = ssub.s32 %s13, 2
      // Predicated region
      $region57: #{upcatconv_forward.3} parent=55 // pred_check
        %p4748 = pneg %p199
      $region58: #{upcatconv_forward.3} parent=55 // pred_check_branch
        %4750 = sbr.rel (%p4748) target = $region60
      $region59: #{upcatconv_forward.3} parent=55 // pred_region
        %p4751 = scmp.lt.s32.totalorder %s19, 1
        %s4752 = scalar_select %p4751, %s19, 1
        %s4753 = smul.addr %s4752, 20
        %s4754 = smul.addr %s4753, 8
        %s4755 = scalar_lea.vmem %s7, %s4754
      $region60: #{upcatconv_forward.3} parent=55 // pred_fallthru
        _
    $region56: #{upcatconv_forward.3} parent=5 // pred_fallthru
      _
  $region6: #{upcatconv_forward.3} parent=0 // loop_footer
    %s17 = sadd.s32 1, %s13
  $region7: #{upcatconv_forward.3} parent=0 // loop_footer_branch
    %12 = sbr.rel target = $region3
  $region8: #{upcatconv_forward.3} parent=0 // loop_exit
    _

</llo_original>
